<compile_context>
chip_gen: v7x
topology: tpu7x:2x2x1
jax: 0.10.0
libtpu: 0.0.40
codegen_flags: <defaults>
</compile_context>

<pallas_src>
import functools

import jax
import jax.numpy as jnp
from jax.experimental import pallas as pl
from jax.experimental.pallas import tpu as pltpu


def _round_up(x, m):
    return ((x + m - 1) // m) * m


def _pool_fc_kernel(f_ref, w_ref, b_ref, o_ref):
    # Global average pool over the spatial axis (f32 sum + scalar reciprocal).
    s = f_ref.shape[1]
    pooled = jnp.sum(f_ref[...].astype(jnp.float32), axis=1) * (1.0 / s)  # (tb, C)
    # fc on the MXU: bf16 inputs, f32 accumulation.
    logits = jnp.dot(pooled.astype(jnp.bfloat16), w_ref[...],
                     preferred_element_type=jnp.float32)                  # (tb, O_pad)
    logits = logits + b_ref[...]                                          # f32 bias add
    o_ref[...] = logits.astype(o_ref.dtype)


@functools.partial(jax.jit, static_argnames=("num_classes", "block_b"))
def resnet101_head(features, w_fc, b_fc, *, num_classes, block_b=None):
    """Fused AdaptiveAvgPool2d(1) + fc head of IceResNet101.

    features: (B, S, C) trunk feature maps, S = H*W spatial positions, C = 2048.
    w_fc:     (C, O_pad) bf16 fc weight, transposed vs torch and lane-padded to 128.
    b_fc:     (1, O_pad) f32 fc bias, lane-padded to 128.
    Returns:  (B, num_classes) f32 logits.
    """
    B, S, C = features.shape
    O_pad = w_fc.shape[1]
    assert C % 128 == 0, "feature width must be lane-aligned (2048 for ResNet-101)"
    assert O_pad % 128 == 0, "fc weight must be lane-padded to a multiple of 128"

    # Pick the batch tile: as large as possible (MXU fill, fewer grid steps), but
    #  (a) keep the double-buffered feature tile within ~8 MiB/buffer (v7x VMEM),
    #  (b) keep >=2 grid steps when B allows so megacore 'parallel' sharding helps.
    if block_b is None:
        per_row = S * C * features.dtype.itemsize
        cap = max(8, ((8 << 20) // max(per_row, 1)) // 8 * 8)
        half = max(8, ((-(-B // 2)) + 7) // 8 * 8)
        block_b = max(8, min(256, cap, half))

    Bp = _round_up(B, block_b)
    if Bp != B:
        # Zero-padded tail instead of requiring B % block_b == 0.
        features = jnp.pad(features, ((0, Bp - B), (0, 0), (0, 0)))
    grid = (Bp // block_b,)

    # Explicit VMEM budget (double-buffered activations/outputs + resident weights).
    x_tile = block_b * S * C * features.dtype.itemsize
    o_tile = block_b * O_pad * 4
    need = 2 * (x_tile + o_tile) + w_fc.size * 2 + b_fc.size * 4
    vmem_limit = int(min(max(2 * need, 16 << 20), 48 << 20))

    out = pl.pallas_call(
        _pool_fc_kernel,
        out_shape=jax.ShapeDtypeStruct((Bp, O_pad), jnp.float32),
        grid_spec=pltpu.PrefetchScalarGridSpec(
            num_scalar_prefetch=0,
            grid=grid,
            in_specs=[
                pl.BlockSpec((block_b, S, C), lambda i: (i, 0, 0)),  # feature tile
                pl.BlockSpec((C, O_pad), lambda i: (0, 0)),          # fc weight (resident)
                pl.BlockSpec((1, O_pad), lambda i: (0, 0)),          # fc bias  (resident)
            ],
            out_specs=pl.BlockSpec((block_b, O_pad), lambda i: (i, 0)),
        ),
        compiler_params=pltpu.CompilerParams(
            dimension_semantics=("parallel",),
            vmem_limit_bytes=vmem_limit,
        ),
    )(features, w_fc, b_fc)

    return out[:B, :num_classes]


def init_fc_params(key, in_dim, num_classes):
    """torch.nn.Linear-style init, then lane-pad num_classes -> multiple of 128."""
    kw, kb = jax.random.split(key)
    bound = 1.0 / (in_dim ** 0.5)
    w = jax.random.uniform(kw, (in_dim, num_classes), jnp.float32, -bound, bound)
    b = jax.random.uniform(kb, (num_classes,), jnp.float32, -bound, bound)
    o_pad = _round_up(num_classes, 128)
    w_pad = jnp.zeros((in_dim, o_pad), jnp.bfloat16)
    w_pad = w_pad.at[:, :num_classes].set(w.astype(jnp.bfloat16))
    b_pad = jnp.zeros((1, o_pad), jnp.float32).at[0, :num_classes].set(b)
    return w_pad, b_pad


if __name__ == "__main__":
    NUM_CLASSES = 40      # IceResNet101(num_classes=40)
    C = 2048              # ResNet-101 fc input width
    HW = 16               # small 4x4 spatial trunk output for the test
    B = 24                # not a multiple of the batch tile -> exercises padded tail

    key = jax.random.PRNGKey(0)
    kf, kp = jax.random.split(key)
    features = jax.random.normal(kf, (B, HW, C), jnp.float32)
    w_pad, b_pad = init_fc_params(kp, C, NUM_CLASSES)

    out = resnet101_head(features, w_pad, b_pad, num_classes=NUM_CLASSES)
    out = jax.block_until_ready(out)

    # Reference: same bf16-matmul / f32-accumulate recipe via plain XLA ops.
    pooled = jnp.mean(features, axis=1)
    ref = jnp.dot(pooled.astype(jnp.bfloat16), w_pad[:, :NUM_CLASSES],
                  preferred_element_type=jnp.float32) + b_pad[0, :NUM_CLASSES]

    assert out.shape == (B, NUM_CLASSES), out.shape
    err = float(jnp.max(jnp.abs(out - ref)))
    assert err < 1e-3, err
    print("KERNEL_OK")
</pallas_src>

<mosaic_0001>
module attributes {stable_mosaic.version = 11 : i64} {
  func.func @_pool_fc_kernel(%arg0: i32, %arg1: memref<16x16x2048xf32, #tpu.memory_space<vmem>>, %arg2: memref<2048x128xbf16, #tpu.memory_space<vmem>>, %arg3: memref<1x128xf32, #tpu.memory_space<vmem>>, %arg4: memref<16x128xf32, #tpu.memory_space<vmem>>) attributes {dimension_semantics = [#tpu.dimension_semantics<parallel>], iteration_bounds = array<i64: 2>, scalar_prefetch = 0 : i64, scratch_operands = 0 : i64, tpu.core_type = #tpu.core_type<tc>, window_params = [{transform_indices = @transform_0, window_bounds = array<i64: 16, 16, 2048>}, {pipeline_mode = #tpu.pipeline_mode<synchronous>, transform_indices = @transform_1, window_bounds = array<i64: 2048, 128>}, {pipeline_mode = #tpu.pipeline_mode<synchronous>, transform_indices = @transform_2, window_bounds = array<i64: 1, 128>}, {transform_indices = @transform_3, window_bounds = array<i64: 16, 128>}]} {
    %c0 = arith.constant 0 : index
    %c0_0 = arith.constant 0 : index
    %c0_1 = arith.constant 0 : index
    %0 = vector.load %arg1[%c0, %c0_0, %c0_1] : memref<16x16x2048xf32, #tpu.memory_space<vmem>>, vector<16x16x2048xf32>
    %cst = arith.constant dense<0.000000e+00> : vector<16x2048xf32>
    %1 = vector.multi_reduction <add>, %0, %cst [1] : vector<16x16x2048xf32> to vector<16x2048xf32>
    %cst_2 = arith.constant 6.250000e-02 : f32
    %2 = vector.broadcast %cst_2 : f32 to vector<16x2048xf32>
    %3 = arith.mulf %1, %2 : vector<16x2048xf32>
    %4 = arith.truncf %3 : vector<16x2048xf32> to vector<16x2048xbf16>
    %c0_3 = arith.constant 0 : index
    %c0_4 = arith.constant 0 : index
    %5 = vector.load %arg2[%c0_3, %c0_4] : memref<2048x128xbf16, #tpu.memory_space<vmem>>, vector<2048x128xbf16>
    %cst_5 = arith.constant dense<0.000000e+00> : vector<16x128xf32>
    %6 = tpu.matmul %4, %5, %cst_5 {dimension_numbers = #tpu.dot_dimension_numbers<[1], [0], [0], [1], [0, 0, 1, 1], [], []>} : vector<16x2048xbf16>, vector<2048x128xbf16>, vector<16x128xf32> -> vector<16x128xf32>
    %c0_6 = arith.constant 0 : index
    %c0_7 = arith.constant 0 : index
    %7 = vector.load %arg3[%c0_6, %c0_7] : memref<1x128xf32, #tpu.memory_space<vmem>>, vector<1x128xf32>
    %8 = vector.broadcast %7 : vector<1x128xf32> to vector<16x128xf32>
    %9 = arith.addf %6, %8 : vector<16x128xf32>
    %c0_8 = arith.constant 0 : index
    %c0_9 = arith.constant 0 : index
    %10 = vector.load %arg4[%c0_8, %c0_9] : memref<16x128xf32, #tpu.memory_space<vmem>>, vector<16x128xf32>
    tpu.vector_store %arg4[%c0_8, %c0_9], %9 {strides = array<i32>} : memref<16x128xf32, #tpu.memory_space<vmem>>, vector<16x128xf32>,
    return
  }
  func.func @transform_0(%arg0: i32) -> (i32, i32, i32) {
    %c0_i32 = arith.constant 0 : i32
    %c0_i32_0 = arith.constant 0 : i32
    %c0_i32_1 = arith.constant 0 : i32
    return %arg0, %c0_i32, %c0_i32_0 : i32, i32, i32
  }
  func.func @transform_1(%arg0: i32) -> (i32, i32) {
    %c0_i32 = arith.constant 0 : i32
    %c0_i32_0 = arith.constant 0 : i32
    %c0_i32_1 = arith.constant 0 : i32
    return %c0_i32, %c0_i32_0 : i32, i32
  }
  func.func @transform_2(%arg0: i32) -> (i32, i32) {
    %c0_i32 = arith.constant 0 : i32
    %c0_i32_0 = arith.constant 0 : i32
    %c0_i32_1 = arith.constant 0 : i32
    return %c0_i32, %c0_i32_0 : i32, i32
  }
  func.func @transform_3(%arg0: i32) -> (i32, i32) {
    %c0_i32 = arith.constant 0 : i32
    %c0_i32_0 = arith.constant 0 : i32
    return %arg0, %c0_i32 : i32, i32
  }
}

</mosaic_0001>

<llo_original>
// kernel: resnet101_head.1
$region0: #{resnet101_head.1}
  #allocation0 [shape = 'u32[]', space=smem, size = 0x4, offset = 0x4, fixed_abs, tag = 'smem constant byte address 0x4 - core index']
  #allocation1 [shape = 'u32[144,128]{1,0:T(1,128)}', space=vmem, size = 0x12000, scoped, tag = 'internal scratch']
  %s0 = inlined_call_operand.vmem [shape: f32[32,16,2048], index: 0, kind: input, shape index: {}]
  %s1 = inlined_call_operand.vmem [shape: bf16[2048,128], index: 1, kind: input, shape index: {}]
  %s2 = inlined_call_operand.vmem [shape: f32[1,128], index: 2, kind: input, shape index: {}]
  %s3 = inlined_call_operand.vmem [shape: f32[32,128], index: 3, kind: output, shape index: {}]
  %s4 = sld [smem:[#allocation0]]
  $region45: #{resnet101_head.1} parent=0
    _
  %s6 = ssub.s32 1, %s4
  %s7 = scalar_select 0, %s6, %s4
  loop: start=0, step=1, limit=4
  $region2: #{resnet101_head.1} parent=0 // loop_pre_header
    _
  $region3: #{resnet101_head.1} parent=0 // loop_header
    %s9 = sphi 0, %s13
    %p10 = scmp.ge.s32.totalorder %s9, 4
    %s19 = sphi 0, %s21
    %s22 = sphi 0, %s19
    %s23 = sphi 0, %s22
    %s39 = sphi 0, %s23
    %s43 = sphi 0, %s43
    %s45 = sphi 0, %s43
    %s46 = sphi 0, %s45
    %s60 = sphi 0, %s46
    %s64 = sphi 0, %s64
    %s66 = sphi 0, %s64
    %s67 = sphi 0, %s66
    %s81 = sphi 0, %s67
    %s87 = sphi 0, %s89
    %s90 = sphi 0, %s87
    %s91 = sphi 0, %s90
    %s107 = sphi 0, %s91
  $region4: #{resnet101_head.1} parent=0 // loop_header_branch
    %12 = sbr.rel (%p10) target = $region8
  $region5: #{resnet101_head.1} parent=0 // loop_body
    %s14 = ssub.s32 %s9, 1
    %s15 = ssub.s32 %s9, 2
    %s16 = sadd.s32 %s9, 1
    %s17 = ssub.s32 %s9, %s16
    %p18 = scmp.eq.s32.totalorder %s17, 0
    %s20 = sadd.s32 %s19, 1
    %s21 = scalar_select %p18, %s19, %s20
    %p24 = pneg %p18
    %p25 = scmp.eq.s32.totalorder %s9, 1
    %p26 = por %p24, %p25
    %p27 = scmp.ne.s32.totalorder %s19, %s22
    %p28 = scmp.eq.s32.totalorder %s9, 0
    %p29 = por %p27, %p28
    %p30 = scmp.ne.s32.totalorder %s19, %s22
    %p31 = scmp.eq.s32.totalorder %s14, 1
    %p32 = por %p30, %p31
    %p33 = scmp.ne.s32.totalorder %s22, %s23
    %p34 = scmp.eq.s32.totalorder %s14, 0
    %p35 = por %p33, %p34
    %p36 = scmp.ne.s32.totalorder %s22, %s23
    %p37 = scmp.eq.s32.totalorder %s15, 1
    %p38 = por %p36, %p37
    %p40 = scmp.ne.s32.totalorder %s23, %s39
    %p41 = scmp.eq.s32.totalorder %s15, 0
    %p42 = por %p40, %p41
    %s44 = sadd.s32 %s43, 1
    %p47 = scmp.eq.s32.totalorder %s9, 1
    %p48 = scmp.ne.s32.totalorder %s43, %s45
    %p49 = scmp.eq.s32.totalorder %s9, 0
    %p50 = por %p48, %p49
    %p51 = scmp.ne.s32.totalorder %s43, %s45
    %p52 = scmp.eq.s32.totalorder %s14, 1
    %p53 = por %p51, %p52
    %p54 = scmp.ne.s32.totalorder %s45, %s46
    %p55 = scmp.eq.s32.totalorder %s14, 0
    %p56 = por %p54, %p55
    %p57 = scmp.ne.s32.totalorder %s45, %s46
    %p58 = scmp.eq.s32.totalorder %s15, 1
    %p59 = por %p57, %p58
    %p61 = scmp.ne.s32.totalorder %s46, %s60
    %p62 = scmp.eq.s32.totalorder %s15, 0
    %p63 = por %p61, %p62
    %s65 = sadd.s32 %s64, 1
    %p68 = scmp.eq.s32.totalorder %s9, 1
    %p69 = scmp.ne.s32.totalorder %s64, %s66
    %p70 = scmp.eq.s32.totalorder %s9, 0
    %p71 = por %p69, %p70
    %p72 = scmp.ne.s32.totalorder %s64, %s66
    %p73 = scmp.eq.s32.totalorder %s14, 1
    %p74 = por %p72, %p73
    %p75 = scmp.ne.s32.totalorder %s66, %s67
    %p76 = scmp.eq.s32.totalorder %s14, 0
    %p77 = por %p75, %p76
    %p78 = scmp.ne.s32.totalorder %s66, %s67
    %p79 = scmp.eq.s32.totalorder %s15, 1
    %p80 = por %p78, %p79
    %p82 = scmp.ne.s32.totalorder %s67, %s81
    %p83 = scmp.eq.s32.totalorder %s15, 0
    %p84 = por %p82, %p83
    %s85 = ssub.s32 %s9, %s16
    %p86 = scmp.eq.s32.totalorder %s85, 0
    %s88 = sadd.s32 %s87, 1
    %s89 = scalar_select %p86, %s87, %s88
    %p92 = pneg %p86
    %p93 = scmp.eq.s32.totalorder %s9, 1
    %p94 = por %p92, %p93
    %p95 = scmp.ne.s32.totalorder %s87, %s90
    %p96 = scmp.eq.s32.totalorder %s9, 0
    %p97 = por %p95, %p96
    %p98 = scmp.ne.s32.totalorder %s87, %s90
    %p99 = scmp.eq.s32.totalorder %s14, 1
    %p100 = por %p98, %p99
    %p101 = scmp.ne.s32.totalorder %s90, %s91
    %p102 = scmp.eq.s32.totalorder %s14, 0
    %p103 = por %p101, %p102
    %p104 = scmp.ne.s32.totalorder %s90, %s91
    %p105 = scmp.eq.s32.totalorder %s15, 1
    %p106 = por %p104, %p105
    %p108 = scmp.ne.s32.totalorder %s91, %s107
    %p109 = scmp.eq.s32.totalorder %s15, 0
    %p110 = por %p108, %p109
    %p111 = scmp.le.s32.totalorder 1, %s9
    %p112 = scmp.lt.s32.totalorder %s9, 3
    %p113 = pnand %p111, %p112
    %p114 = pneg %p113
    // Predicated region
    $region9: #{resnet101_head.1} parent=5 // pred_check
      _
    $region10: #{resnet101_head.1} parent=5 // pred_check_branch
      %116 = sbr.rel (%p113) target = $region12
    $region11: #{resnet101_head.1} parent=5 // pred_region
      %s117 = ssub.s32 %s9, 1
      // Predicated region
      $region13: #{resnet101_head.1} parent=11 // pred_check
        %p118 = pneg %p56
      $region14: #{resnet101_head.1} parent=11 // pred_check_branch
        %120 = sbr.rel (%p118) target = $region16
      $region15: #{resnet101_head.1} parent=11 // pred_region
        _
      $region16: #{resnet101_head.1} parent=11 // pred_fallthru
        _
      // Predicated region
      $region17: #{resnet101_head.1} parent=11 // pred_check
        %p121 = pneg %p77
      $region18: #{resnet101_head.1} parent=11 // pred_check_branch
        %123 = sbr.rel (%p121) target = $region20
      $region19: #{resnet101_head.1} parent=11 // pred_region
        _
      $region20: #{resnet101_head.1} parent=11 // pred_fallthru
        _
    $region12: #{resnet101_head.1} parent=5 // pred_fallthru
      _
    %p124 = scmp.lt.s32.totalorder %s9, 2
    // Predicated region
    $region21: #{resnet101_head.1} parent=5 // pred_check
      %p125 = pneg %p124
    $region22: #{resnet101_head.1} parent=5 // pred_check_branch
      %127 = sbr.rel (%p125) target = $region24
    $region23: #{resnet101_head.1} parent=5 // pred_region
      // Predicated region
      $region25: #{resnet101_head.1} parent=23 // pred_check
        %p128 = pneg %p29
      $region26: #{resnet101_head.1} parent=23 // pred_check_branch
        %130 = sbr.rel (%p128) target = $region28
      $region27: #{resnet101_head.1} parent=23 // pred_region
        %s131 = smul.u32 16, %s9
        %p132 = scmp.lt.s32.totalorder %s131, 31
        %s133 = scalar_select %p132, %s131, 31
        %s134 = smul.addr %s133, 32
        %s135 = smul.addr %s134, 8
        %s136 = scalar_lea.vmem %s0, %s135
        %s137 = smul.u32 16, %s9
      $region28: #{resnet101_head.1} parent=23 // pred_fallthru
        _
    $region24: #{resnet101_head.1} parent=5 // pred_fallthru
      _
    %p138 = scmp.le.s32.totalorder 1, %s9
    %p139 = scmp.lt.s32.totalorder %s9, 3
    %p140 = pnand %p138, %p139
    %p141 = pneg %p140
    // Predicated region
    $region29: #{resnet101_head.1} parent=5 // pred_check
      _
    $region30: #{resnet101_head.1} parent=5 // pred_check_branch
      %143 = sbr.rel (%p140) target = $region32
    $region31: #{resnet101_head.1} parent=5 // pred_region
      %s144 = ssub.s32 %s9, 1
      %s145 = smul.u32 16, %s14
      %p146 = scmp.lt.s32.totalorder %s145, 31
      %s147 = scalar_select %p146, %s145, 31
      %s148 = smul.addr %s147, 32
      %s149 = smul.addr %s148, 8
      %s150 = scalar_lea.vmem %s0, %s149
      %p151 = pneg %p35
      %p152 = pneg %p32
      %p153 = pneg %p56
      %p154 = pneg %p53
      %p155 = pneg %p77
      %p156 = pneg %p74
      %p157 = pneg %p103
      %p158 = pneg %p100
      %s159 = smul.u32 2, %s14
      %p160 = scmp.lt.s32.totalorder %s159, 3
      %s161 = scalar_select %p160, %s159, 3
      %s162 = smul.addr %s161, 8
      %s163 = scalar_lea.vmem %s3, %s162
      %s164 = smul.u32 16, %s14
      %p165 = scmp.lt.s32.totalorder %s164, 31
      %s166 = scalar_select %p165, %s164, 31
      %s167 = smul.addr %s166, 32
      %s168 = smul.addr %s167, 8
      %s169 = scalar_lea.vmem %s0, %s168
      %s170 = smul.u32 16, %s14
      %s171 = smul.u32 2, %s14
      %p172 = scmp.lt.s32.totalorder %s171, 3
      %s173 = scalar_select %p172, %s171, 3
      %s174 = smul.addr %s173, 8
      %s175 = scalar_lea.vmem %s3, %s174
      %s176 = smul.u32 2, %s14
      %v178 = vld [vmem:[%s169] sm:$0xff]
      %v179 = vld [vmem:[%s169 + $0x8] sm:$0xff]
      %v180 = vld [vmem:[%s169 + $0x10] sm:$0xff]
      %v181 = vld [vmem:[%s169 + $0x18] sm:$0xff]
      %v182 = vld [vmem:[%s169 + $0x20] sm:$0xff]
      %v183 = vld [vmem:[%s169 + $0x28] sm:$0xff]
      %v184 = vld [vmem:[%s169 + $0x30] sm:$0xff]
      %v185 = vld [vmem:[%s169 + $0x38] sm:$0xff]
      %v186 = vld [vmem:[%s169 + $0x40] sm:$0xff]
      %v187 = vld [vmem:[%s169 + $0x48] sm:$0xff]
      %v188 = vld [vmem:[%s169 + $0x50] sm:$0xff]
      %v189 = vld [vmem:[%s169 + $0x58] sm:$0xff]
      %v190 = vld [vmem:[%s169 + $0x60] sm:$0xff]
      %v191 = vld [vmem:[%s169 + $0x68] sm:$0xff]
      %v192 = vld [vmem:[%s169 + $0x70] sm:$0xff]
      %v193 = vld [vmem:[%s169 + $0x78] sm:$0xff]
      %v194 = vld [vmem:[%s169 + $0x80] sm:$0xff]
      %v195 = vld [vmem:[%s169 + $0x88] sm:$0xff]
      %v196 = vld [vmem:[%s169 + $0x90] sm:$0xff]
      %v197 = vld [vmem:[%s169 + $0x98] sm:$0xff]
      %v198 = vld [vmem:[%s169 + $0xa0] sm:$0xff]
      %v199 = vld [vmem:[%s169 + $0xa8] sm:$0xff]
      %v200 = vld [vmem:[%s169 + $0xb0] sm:$0xff]
      %v201 = vld [vmem:[%s169 + $0xb8] sm:$0xff]
      %v202 = vld [vmem:[%s169 + $0xc0] sm:$0xff]
      %v203 = vld [vmem:[%s169 + $0xc8] sm:$0xff]
      %v204 = vld [vmem:[%s169 + $0xd0] sm:$0xff]
      %v205 = vld [vmem:[%s169 + $0xd8] sm:$0xff]
      %v206 = vld [vmem:[%s169 + $0xe0] sm:$0xff]
      %v207 = vld [vmem:[%s169 + $0xe8] sm:$0xff]
      %v208 = vld [vmem:[%s169 + $0xf0] sm:$0xff]
      %v209 = vld [vmem:[%s169 + $0xf8] sm:$0xff]
      %v210 = vld [vmem:[%s169 + $0x100] sm:$0xff]
      %v211 = vld [vmem:[%s169 + $0x108] sm:$0xff]
      %v212 = vld [vmem:[%s169 + $0x110] sm:$0xff]
      %v213 = vld [vmem:[%s169 + $0x118] sm:$0xff]
      %v214 = vld [vmem:[%s169 + $0x120] sm:$0xff]
      %v215 = vld [vmem:[%s169 + $0x128] sm:$0xff]
      %v216 = vld [vmem:[%s169 + $0x130] sm:$0xff]
      %v217 = vld [vmem:[%s169 + $0x138] sm:$0xff]
      %v218 = vld [vmem:[%s169 + $0x140] sm:$0xff]
      %v219 = vld [vmem:[%s169 + $0x148] sm:$0xff]
      %v220 = vld [vmem:[%s169 + $0x150] sm:$0xff]
      %v221 = vld [vmem:[%s169 + $0x158] sm:$0xff]
      %v222 = vld [vmem:[%s169 + $0x160] sm:$0xff]
      %v223 = vld [vmem:[%s169 + $0x168] sm:$0xff]
      %v224 = vld [vmem:[%s169 + $0x170] sm:$0xff]
      %v225 = vld [vmem:[%s169 + $0x178] sm:$0xff]
      %v226 = vld [vmem:[%s169 + $0x180] sm:$0xff]
      %v227 = vld [vmem:[%s169 + $0x188] sm:$0xff]
      %v228 = vld [vmem:[%s169 + $0x190] sm:$0xff]
      %v229 = vld [vmem:[%s169 + $0x198] sm:$0xff]
      %v230 = vld [vmem:[%s169 + $0x1a0] sm:$0xff]
      %v231 = vld [vmem:[%s169 + $0x1a8] sm:$0xff]
      %v232 = vld [vmem:[%s169 + $0x1b0] sm:$0xff]
      %v233 = vld [vmem:[%s169 + $0x1b8] sm:$0xff]
      %v234 = vld [vmem:[%s169 + $0x1c0] sm:$0xff]
      %v235 = vld [vmem:[%s169 + $0x1c8] sm:$0xff]
      %v236 = vld [vmem:[%s169 + $0x1d0] sm:$0xff]
      %v237 = vld [vmem:[%s169 + $0x1d8] sm:$0xff]
      %v238 = vld [vmem:[%s169 + $0x1e0] sm:$0xff]
      %v239 = vld [vmem:[%s169 + $0x1e8] sm:$0xff]
      %v240 = vld [vmem:[%s169 + $0x1f0] sm:$0xff]
      %v241 = vld [vmem:[%s169 + $0x1f8] sm:$0xff]
      %v242 = vld [vmem:[%s169 + $0x200] sm:$0xff]
      %v243 = vld [vmem:[%s169 + $0x208] sm:$0xff]
      %v244 = vld [vmem:[%s169 + $0x210] sm:$0xff]
      %v245 = vld [vmem:[%s169 + $0x218] sm:$0xff]
      %v246 = vld [vmem:[%s169 + $0x220] sm:$0xff]
      %v247 = vld [vmem:[%s169 + $0x228] sm:$0xff]
      %v248 = vld [vmem:[%s169 + $0x230] sm:$0xff]
      %v249 = vld [vmem:[%s169 + $0x238] sm:$0xff]
      %v250 = vld [vmem:[%s169 + $0x240] sm:$0xff]
      %v251 = vld [vmem:[%s169 + $0x248] sm:$0xff]
      %v252 = vld [vmem:[%s169 + $0x250] sm:$0xff]
      %v253 = vld [vmem:[%s169 + $0x258] sm:$0xff]
      %v254 = vld [vmem:[%s169 + $0x260] sm:$0xff]
      %v255 = vld [vmem:[%s169 + $0x268] sm:$0xff]
      %v256 = vld [vmem:[%s169 + $0x270] sm:$0xff]
      %v257 = vld [vmem:[%s169 + $0x278] sm:$0xff]
      %v258 = vld [vmem:[%s169 + $0x280] sm:$0xff]
      %v259 = vld [vmem:[%s169 + $0x288] sm:$0xff]
      %v260 = vld [vmem:[%s169 + $0x290] sm:$0xff]
      %v261 = vld [vmem:[%s169 + $0x298] sm:$0xff]
      %v262 = vld [vmem:[%s169 + $0x2a0] sm:$0xff]
      %v263 = vld [vmem:[%s169 + $0x2a8] sm:$0xff]
      %v264 = vld [vmem:[%s169 + $0x2b0] sm:$0xff]
      %v265 = vld [vmem:[%s169 + $0x2b8] sm:$0xff]
      %v266 = vld [vmem:[%s169 + $0x2c0] sm:$0xff]
      %v267 = vld [vmem:[%s169 + $0x2c8] sm:$0xff]
      %v268 = vld [vmem:[%s169 + $0x2d0] sm:$0xff]
      %v269 = vld [vmem:[%s169 + $0x2d8] sm:$0xff]
      %v270 = vld [vmem:[%s169 + $0x2e0] sm:$0xff]
      %v271 = vld [vmem:[%s169 + $0x2e8] sm:$0xff]
      %v272 = vld [vmem:[%s169 + $0x2f0] sm:$0xff]
      %v273 = vld [vmem:[%s169 + $0x2f8] sm:$0xff]
      %v274 = vld [vmem:[%s169 + $0x300] sm:$0xff]
      %v275 = vld [vmem:[%s169 + $0x308] sm:$0xff]
      %v276 = vld [vmem:[%s169 + $0x310] sm:$0xff]
      %v277 = vld [vmem:[%s169 + $0x318] sm:$0xff]
      %v278 = vld [vmem:[%s169 + $0x320] sm:$0xff]
      %v279 = vld [vmem:[%s169 + $0x328] sm:$0xff]
      %v280 = vld [vmem:[%s169 + $0x330] sm:$0xff]
      %v281 = vld [vmem:[%s169 + $0x338] sm:$0xff]
      %v282 = vld [vmem:[%s169 + $0x340] sm:$0xff]
      %v283 = vld [vmem:[%s169 + $0x348] sm:$0xff]
      %v284 = vld [vmem:[%s169 + $0x350] sm:$0xff]
      %v285 = vld [vmem:[%s169 + $0x358] sm:$0xff]
      %v286 = vld [vmem:[%s169 + $0x360] sm:$0xff]
      %v287 = vld [vmem:[%s169 + $0x368] sm:$0xff]
      %v288 = vld [vmem:[%s169 + $0x370] sm:$0xff]
      %v289 = vld [vmem:[%s169 + $0x378] sm:$0xff]
      %v290 = vld [vmem:[%s169 + $0x380] sm:$0xff]
      %v291 = vld [vmem:[%s169 + $0x388] sm:$0xff]
      %v292 = vld [vmem:[%s169 + $0x390] sm:$0xff]
      %v293 = vld [vmem:[%s169 + $0x398] sm:$0xff]
      %v294 = vld [vmem:[%s169 + $0x3a0] sm:$0xff]
      %v295 = vld [vmem:[%s169 + $0x3a8] sm:$0xff]
      %v296 = vld [vmem:[%s169 + $0x3b0] sm:$0xff]
      %v297 = vld [vmem:[%s169 + $0x3b8] sm:$0xff]
      %v298 = vld [vmem:[%s169 + $0x3c0] sm:$0xff]
      %v299 = vld [vmem:[%s169 + $0x3c8] sm:$0xff]
      %v300 = vld [vmem:[%s169 + $0x3d0] sm:$0xff]
      %v301 = vld [vmem:[%s169 + $0x3d8] sm:$0xff]
      %v302 = vld [vmem:[%s169 + $0x3e0] sm:$0xff]
      %v303 = vld [vmem:[%s169 + $0x3e8] sm:$0xff]
      %v304 = vld [vmem:[%s169 + $0x3f0] sm:$0xff]
      %v305 = vld [vmem:[%s169 + $0x3f8] sm:$0xff]
      %v306 = vld [vmem:[%s169 + $0x400] sm:$0xff]
      %v307 = vld [vmem:[%s169 + $0x408] sm:$0xff]
      %v308 = vld [vmem:[%s169 + $0x410] sm:$0xff]
      %v309 = vld [vmem:[%s169 + $0x418] sm:$0xff]
      %v310 = vld [vmem:[%s169 + $0x420] sm:$0xff]
      %v311 = vld [vmem:[%s169 + $0x428] sm:$0xff]
      %v312 = vld [vmem:[%s169 + $0x430] sm:$0xff]
      %v313 = vld [vmem:[%s169 + $0x438] sm:$0xff]
      %v314 = vld [vmem:[%s169 + $0x440] sm:$0xff]
      %v315 = vld [vmem:[%s169 + $0x448] sm:$0xff]
      %v316 = vld [vmem:[%s169 + $0x450] sm:$0xff]
      %v317 = vld [vmem:[%s169 + $0x458] sm:$0xff]
      %v318 = vld [vmem:[%s169 + $0x460] sm:$0xff]
      %v319 = vld [vmem:[%s169 + $0x468] sm:$0xff]
      %v320 = vld [vmem:[%s169 + $0x470] sm:$0xff]
      %v321 = vld [vmem:[%s169 + $0x478] sm:$0xff]
      %v322 = vld [vmem:[%s169 + $0x480] sm:$0xff]
      %v323 = vld [vmem:[%s169 + $0x488] sm:$0xff]
      %v324 = vld [vmem:[%s169 + $0x490] sm:$0xff]
      %v325 = vld [vmem:[%s169 + $0x498] sm:$0xff]
      %v326 = vld [vmem:[%s169 + $0x4a0] sm:$0xff]
      %v327 = vld [vmem:[%s169 + $0x4a8] sm:$0xff]
      %v328 = vld [vmem:[%s169 + $0x4b0] sm:$0xff]
      %v329 = vld [vmem:[%s169 + $0x4b8] sm:$0xff]
      %v330 = vld [vmem:[%s169 + $0x4c0] sm:$0xff]
      %v331 = vld [vmem:[%s169 + $0x4c8] sm:$0xff]
      %v332 = vld [vmem:[%s169 + $0x4d0] sm:$0xff]
      %v333 = vld [vmem:[%s169 + $0x4d8] sm:$0xff]
      %v334 = vld [vmem:[%s169 + $0x4e0] sm:$0xff]
      %v335 = vld [vmem:[%s169 + $0x4e8] sm:$0xff]
      %v336 = vld [vmem:[%s169 + $0x4f0] sm:$0xff]
      %v337 = vld [vmem:[%s169 + $0x4f8] sm:$0xff]
      %v338 = vld [vmem:[%s169 + $0x500] sm:$0xff]
      %v339 = vld [vmem:[%s169 + $0x508] sm:$0xff]
      %v340 = vld [vmem:[%s169 + $0x510] sm:$0xff]
      %v341 = vld [vmem:[%s169 + $0x518] sm:$0xff]
      %v342 = vld [vmem:[%s169 + $0x520] sm:$0xff]
      %v343 = vld [vmem:[%s169 + $0x528] sm:$0xff]
      %v344 = vld [vmem:[%s169 + $0x530] sm:$0xff]
      %v345 = vld [vmem:[%s169 + $0x538] sm:$0xff]
      %v346 = vld [vmem:[%s169 + $0x540] sm:$0xff]
      %v347 = vld [vmem:[%s169 + $0x548] sm:$0xff]
      %v348 = vld [vmem:[%s169 + $0x550] sm:$0xff]
      %v349 = vld [vmem:[%s169 + $0x558] sm:$0xff]
      %v350 = vld [vmem:[%s169 + $0x560] sm:$0xff]
      %v351 = vld [vmem:[%s169 + $0x568] sm:$0xff]
      %v352 = vld [vmem:[%s169 + $0x570] sm:$0xff]
      %v353 = vld [vmem:[%s169 + $0x578] sm:$0xff]
      %v354 = vld [vmem:[%s169 + $0x580] sm:$0xff]
      %v355 = vld [vmem:[%s169 + $0x588] sm:$0xff]
      %v356 = vld [vmem:[%s169 + $0x590] sm:$0xff]
      %v357 = vld [vmem:[%s169 + $0x598] sm:$0xff]
      %v358 = vld [vmem:[%s169 + $0x5a0] sm:$0xff]
      %v359 = vld [vmem:[%s169 + $0x5a8] sm:$0xff]
      %v360 = vld [vmem:[%s169 + $0x5b0] sm:$0xff]
      %v361 = vld [vmem:[%s169 + $0x5b8] sm:$0xff]
      %v362 = vld [vmem:[%s169 + $0x5c0] sm:$0xff]
      %v363 = vld [vmem:[%s169 + $0x5c8] sm:$0xff]
      %v364 = vld [vmem:[%s169 + $0x5d0] sm:$0xff]
      %v365 = vld [vmem:[%s169 + $0x5d8] sm:$0xff]
      %v366 = vld [vmem:[%s169 + $0x5e0] sm:$0xff]
      %v367 = vld [vmem:[%s169 + $0x5e8] sm:$0xff]
      %v368 = vld [vmem:[%s169 + $0x5f0] sm:$0xff]
      %v369 = vld [vmem:[%s169 + $0x5f8] sm:$0xff]
      %v370 = vld [vmem:[%s169 + $0x600] sm:$0xff]
      %v371 = vld [vmem:[%s169 + $0x608] sm:$0xff]
      %v372 = vld [vmem:[%s169 + $0x610] sm:$0xff]
      %v373 = vld [vmem:[%s169 + $0x618] sm:$0xff]
      %v374 = vld [vmem:[%s169 + $0x620] sm:$0xff]
      %v375 = vld [vmem:[%s169 + $0x628] sm:$0xff]
      %v376 = vld [vmem:[%s169 + $0x630] sm:$0xff]
      %v377 = vld [vmem:[%s169 + $0x638] sm:$0xff]
      %v378 = vld [vmem:[%s169 + $0x640] sm:$0xff]
      %v379 = vld [vmem:[%s169 + $0x648] sm:$0xff]
      %v380 = vld [vmem:[%s169 + $0x650] sm:$0xff]
      %v381 = vld [vmem:[%s169 + $0x658] sm:$0xff]
      %v382 = vld [vmem:[%s169 + $0x660] sm:$0xff]
      %v383 = vld [vmem:[%s169 + $0x668] sm:$0xff]
      %v384 = vld [vmem:[%s169 + $0x670] sm:$0xff]
      %v385 = vld [vmem:[%s169 + $0x678] sm:$0xff]
      %v386 = vld [vmem:[%s169 + $0x680] sm:$0xff]
      %v387 = vld [vmem:[%s169 + $0x688] sm:$0xff]
      %v388 = vld [vmem:[%s169 + $0x690] sm:$0xff]
      %v389 = vld [vmem:[%s169 + $0x698] sm:$0xff]
      %v390 = vld [vmem:[%s169 + $0x6a0] sm:$0xff]
      %v391 = vld [vmem:[%s169 + $0x6a8] sm:$0xff]
      %v392 = vld [vmem:[%s169 + $0x6b0] sm:$0xff]
      %v393 = vld [vmem:[%s169 + $0x6b8] sm:$0xff]
      %v394 = vld [vmem:[%s169 + $0x6c0] sm:$0xff]
      %v395 = vld [vmem:[%s169 + $0x6c8] sm:$0xff]
      %v396 = vld [vmem:[%s169 + $0x6d0] sm:$0xff]
      %v397 = vld [vmem:[%s169 + $0x6d8] sm:$0xff]
      %v398 = vld [vmem:[%s169 + $0x6e0] sm:$0xff]
      %v399 = vld [vmem:[%s169 + $0x6e8] sm:$0xff]
      %v400 = vld [vmem:[%s169 + $0x6f0] sm:$0xff]
      %v401 = vld [vmem:[%s169 + $0x6f8] sm:$0xff]
      %v402 = vld [vmem:[%s169 + $0x700] sm:$0xff]
      %v403 = vld [vmem:[%s169 + $0x708] sm:$0xff]
      %v404 = vld [vmem:[%s169 + $0x710] sm:$0xff]
      %v405 = vld [vmem:[%s169 + $0x718] sm:$0xff]
      %v406 = vld [vmem:[%s169 + $0x720] sm:$0xff]
      %v407 = vld [vmem:[%s169 + $0x728] sm:$0xff]
      %v408 = vld [vmem:[%s169 + $0x730] sm:$0xff]
      %v409 = vld [vmem:[%s169 + $0x738] sm:$0xff]
      %v410 = vld [vmem:[%s169 + $0x740] sm:$0xff]
      %v411 = vld [vmem:[%s169 + $0x748] sm:$0xff]
      %v412 = vld [vmem:[%s169 + $0x750] sm:$0xff]
      %v413 = vld [vmem:[%s169 + $0x758] sm:$0xff]
      %v414 = vld [vmem:[%s169 + $0x760] sm:$0xff]
      %v415 = vld [vmem:[%s169 + $0x768] sm:$0xff]
      %v416 = vld [vmem:[%s169 + $0x770] sm:$0xff]
      %v417 = vld [vmem:[%s169 + $0x778] sm:$0xff]
      %v418 = vld [vmem:[%s169 + $0x780] sm:$0xff]
      %v419 = vld [vmem:[%s169 + $0x788] sm:$0xff]
      %v420 = vld [vmem:[%s169 + $0x790] sm:$0xff]
      %v421 = vld [vmem:[%s169 + $0x798] sm:$0xff]
      %v422 = vld [vmem:[%s169 + $0x7a0] sm:$0xff]
      %v423 = vld [vmem:[%s169 + $0x7a8] sm:$0xff]
      %v424 = vld [vmem:[%s169 + $0x7b0] sm:$0xff]
      %v425 = vld [vmem:[%s169 + $0x7b8] sm:$0xff]
      %v426 = vld [vmem:[%s169 + $0x7c0] sm:$0xff]
      %v427 = vld [vmem:[%s169 + $0x7c8] sm:$0xff]
      %v428 = vld [vmem:[%s169 + $0x7d0] sm:$0xff]
      %v429 = vld [vmem:[%s169 + $0x7d8] sm:$0xff]
      %v430 = vld [vmem:[%s169 + $0x7e0] sm:$0xff]
      %v431 = vld [vmem:[%s169 + $0x7e8] sm:$0xff]
      %v432 = vld [vmem:[%s169 + $0x7f0] sm:$0xff]
      %v433 = vld [vmem:[%s169 + $0x7f8] sm:$0xff]
      %v434 = vld [vmem:[%s169 + $0x800] sm:$0xff]
      %v435 = vld [vmem:[%s169 + $0x808] sm:$0xff]
      %v436 = vld [vmem:[%s169 + $0x810] sm:$0xff]
      %v437 = vld [vmem:[%s169 + $0x818] sm:$0xff]
      %v438 = vld [vmem:[%s169 + $0x820] sm:$0xff]
      %v439 = vld [vmem:[%s169 + $0x828] sm:$0xff]
      %v440 = vld [vmem:[%s169 + $0x830] sm:$0xff]
      %v441 = vld [vmem:[%s169 + $0x838] sm:$0xff]
      %v442 = vld [vmem:[%s169 + $0x840] sm:$0xff]
      %v443 = vld [vmem:[%s169 + $0x848] sm:$0xff]
      %v444 = vld [vmem:[%s169 + $0x850] sm:$0xff]
      %v445 = vld [vmem:[%s169 + $0x858] sm:$0xff]
      %v446 = vld [vmem:[%s169 + $0x860] sm:$0xff]
      %v447 = vld [vmem:[%s169 + $0x868] sm:$0xff]
      %v448 = vld [vmem:[%s169 + $0x870] sm:$0xff]
      %v449 = vld [vmem:[%s169 + $0x878] sm:$0xff]
      %v450 = vld [vmem:[%s169 + $0x880] sm:$0xff]
      %v451 = vld [vmem:[%s169 + $0x888] sm:$0xff]
      %v452 = vld [vmem:[%s169 + $0x890] sm:$0xff]
      %v453 = vld [vmem:[%s169 + $0x898] sm:$0xff]
      %v454 = vld [vmem:[%s169 + $0x8a0] sm:$0xff]
      %v455 = vld [vmem:[%s169 + $0x8a8] sm:$0xff]
      %v456 = vld [vmem:[%s169 + $0x8b0] sm:$0xff]
      %v457 = vld [vmem:[%s169 + $0x8b8] sm:$0xff]
      %v458 = vld [vmem:[%s169 + $0x8c0] sm:$0xff]
      %v459 = vld [vmem:[%s169 + $0x8c8] sm:$0xff]
      %v460 = vld [vmem:[%s169 + $0x8d0] sm:$0xff]
      %v461 = vld [vmem:[%s169 + $0x8d8] sm:$0xff]
      %v462 = vld [vmem:[%s169 + $0x8e0] sm:$0xff]
      %v463 = vld [vmem:[%s169 + $0x8e8] sm:$0xff]
      %v464 = vld [vmem:[%s169 + $0x8f0] sm:$0xff]
      %v465 = vld [vmem:[%s169 + $0x8f8] sm:$0xff]
      %v466 = vld [vmem:[%s169 + $0x900] sm:$0xff]
      %v467 = vld [vmem:[%s169 + $0x908] sm:$0xff]
      %v468 = vld [vmem:[%s169 + $0x910] sm:$0xff]
      %v469 = vld [vmem:[%s169 + $0x918] sm:$0xff]
      %v470 = vld [vmem:[%s169 + $0x920] sm:$0xff]
      %v471 = vld [vmem:[%s169 + $0x928] sm:$0xff]
      %v472 = vld [vmem:[%s169 + $0x930] sm:$0xff]
      %v473 = vld [vmem:[%s169 + $0x938] sm:$0xff]
      %v474 = vld [vmem:[%s169 + $0x940] sm:$0xff]
      %v475 = vld [vmem:[%s169 + $0x948] sm:$0xff]
      %v476 = vld [vmem:[%s169 + $0x950] sm:$0xff]
      %v477 = vld [vmem:[%s169 + $0x958] sm:$0xff]
      %v478 = vld [vmem:[%s169 + $0x960] sm:$0xff]
      %v479 = vld [vmem:[%s169 + $0x968] sm:$0xff]
      %v480 = vld [vmem:[%s169 + $0x970] sm:$0xff]
      %v481 = vld [vmem:[%s169 + $0x978] sm:$0xff]
      %v482 = vld [vmem:[%s169 + $0x980] sm:$0xff]
      %v483 = vld [vmem:[%s169 + $0x988] sm:$0xff]
      %v484 = vld [vmem:[%s169 + $0x990] sm:$0xff]
      %v485 = vld [vmem:[%s169 + $0x998] sm:$0xff]
      %v486 = vld [vmem:[%s169 + $0x9a0] sm:$0xff]
      %v487 = vld [vmem:[%s169 + $0x9a8] sm:$0xff]
      %v488 = vld [vmem:[%s169 + $0x9b0] sm:$0xff]
      %v489 = vld [vmem:[%s169 + $0x9b8] sm:$0xff]
      %v490 = vld [vmem:[%s169 + $0x9c0] sm:$0xff]
      %v491 = vld [vmem:[%s169 + $0x9c8] sm:$0xff]
      %v492 = vld [vmem:[%s169 + $0x9d0] sm:$0xff]
      %v493 = vld [vmem:[%s169 + $0x9d8] sm:$0xff]
      %v494 = vld [vmem:[%s169 + $0x9e0] sm:$0xff]
      %v495 = vld [vmem:[%s169 + $0x9e8] sm:$0xff]
      %v496 = vld [vmem:[%s169 + $0x9f0] sm:$0xff]
      %v497 = vld [vmem:[%s169 + $0x9f8] sm:$0xff]
      %v498 = vld [vmem:[%s169 + $0xa00] sm:$0xff]
      %v499 = vld [vmem:[%s169 + $0xa08] sm:$0xff]
      %v500 = vld [vmem:[%s169 + $0xa10] sm:$0xff]
      %v501 = vld [vmem:[%s169 + $0xa18] sm:$0xff]
      %v502 = vld [vmem:[%s169 + $0xa20] sm:$0xff]
      %v503 = vld [vmem:[%s169 + $0xa28] sm:$0xff]
      %v504 = vld [vmem:[%s169 + $0xa30] sm:$0xff]
      %v505 = vld [vmem:[%s169 + $0xa38] sm:$0xff]
      %v506 = vld [vmem:[%s169 + $0xa40] sm:$0xff]
      %v507 = vld [vmem:[%s169 + $0xa48] sm:$0xff]
      %v508 = vld [vmem:[%s169 + $0xa50] sm:$0xff]
      %v509 = vld [vmem:[%s169 + $0xa58] sm:$0xff]
      %v510 = vld [vmem:[%s169 + $0xa60] sm:$0xff]
      %v511 = vld [vmem:[%s169 + $0xa68] sm:$0xff]
      %v512 = vld [vmem:[%s169 + $0xa70] sm:$0xff]
      %v513 = vld [vmem:[%s169 + $0xa78] sm:$0xff]
      %v514 = vld [vmem:[%s169 + $0xa80] sm:$0xff]
      %v515 = vld [vmem:[%s169 + $0xa88] sm:$0xff]
      %v516 = vld [vmem:[%s169 + $0xa90] sm:$0xff]
      %v517 = vld [vmem:[%s169 + $0xa98] sm:$0xff]
      %v518 = vld [vmem:[%s169 + $0xaa0] sm:$0xff]
      %v519 = vld [vmem:[%s169 + $0xaa8] sm:$0xff]
      %v520 = vld [vmem:[%s169 + $0xab0] sm:$0xff]
      %v521 = vld [vmem:[%s169 + $0xab8] sm:$0xff]
      %v522 = vld [vmem:[%s169 + $0xac0] sm:$0xff]
      %v523 = vld [vmem:[%s169 + $0xac8] sm:$0xff]
      %v524 = vld [vmem:[%s169 + $0xad0] sm:$0xff]
      %v525 = vld [vmem:[%s169 + $0xad8] sm:$0xff]
      %v526 = vld [vmem:[%s169 + $0xae0] sm:$0xff]
      %v527 = vld [vmem:[%s169 + $0xae8] sm:$0xff]
      %v528 = vld [vmem:[%s169 + $0xaf0] sm:$0xff]
      %v529 = vld [vmem:[%s169 + $0xaf8] sm:$0xff]
      %v530 = vld [vmem:[%s169 + $0xb00] sm:$0xff]
      %v531 = vld [vmem:[%s169 + $0xb08] sm:$0xff]
      %v532 = vld [vmem:[%s169 + $0xb10] sm:$0xff]
      %v533 = vld [vmem:[%s169 + $0xb18] sm:$0xff]
      %v534 = vld [vmem:[%s169 + $0xb20] sm:$0xff]
      %v535 = vld [vmem:[%s169 + $0xb28] sm:$0xff]
      %v536 = vld [vmem:[%s169 + $0xb30] sm:$0xff]
      %v537 = vld [vmem:[%s169 + $0xb38] sm:$0xff]
      %v538 = vld [vmem:[%s169 + $0xb40] sm:$0xff]
      %v539 = vld [vmem:[%s169 + $0xb48] sm:$0xff]
      %v540 = vld [vmem:[%s169 + $0xb50] sm:$0xff]
      %v541 = vld [vmem:[%s169 + $0xb58] sm:$0xff]
      %v542 = vld [vmem:[%s169 + $0xb60] sm:$0xff]
      %v543 = vld [vmem:[%s169 + $0xb68] sm:$0xff]
      %v544 = vld [vmem:[%s169 + $0xb70] sm:$0xff]
      %v545 = vld [vmem:[%s169 + $0xb78] sm:$0xff]
      %v546 = vld [vmem:[%s169 + $0xb80] sm:$0xff]
      %v547 = vld [vmem:[%s169 + $0xb88] sm:$0xff]
      %v548 = vld [vmem:[%s169 + $0xb90] sm:$0xff]
      %v549 = vld [vmem:[%s169 + $0xb98] sm:$0xff]
      %v550 = vld [vmem:[%s169 + $0xba0] sm:$0xff]
      %v551 = vld [vmem:[%s169 + $0xba8] sm:$0xff]
      %v552 = vld [vmem:[%s169 + $0xbb0] sm:$0xff]
      %v553 = vld [vmem:[%s169 + $0xbb8] sm:$0xff]
      %v554 = vld [vmem:[%s169 + $0xbc0] sm:$0xff]
      %v555 = vld [vmem:[%s169 + $0xbc8] sm:$0xff]
      %v556 = vld [vmem:[%s169 + $0xbd0] sm:$0xff]
      %v557 = vld [vmem:[%s169 + $0xbd8] sm:$0xff]
      %v558 = vld [vmem:[%s169 + $0xbe0] sm:$0xff]
      %v559 = vld [vmem:[%s169 + $0xbe8] sm:$0xff]
      %v560 = vld [vmem:[%s169 + $0xbf0] sm:$0xff]
      %v561 = vld [vmem:[%s169 + $0xbf8] sm:$0xff]
      %v562 = vld [vmem:[%s169 + $0xc00] sm:$0xff]
      %v563 = vld [vmem:[%s169 + $0xc08] sm:$0xff]
      %v564 = vld [vmem:[%s169 + $0xc10] sm:$0xff]
      %v565 = vld [vmem:[%s169 + $0xc18] sm:$0xff]
      %v566 = vld [vmem:[%s169 + $0xc20] sm:$0xff]
      %v567 = vld [vmem:[%s169 + $0xc28] sm:$0xff]
      %v568 = vld [vmem:[%s169 + $0xc30] sm:$0xff]
      %v569 = vld [vmem:[%s169 + $0xc38] sm:$0xff]
      %v570 = vld [vmem:[%s169 + $0xc40] sm:$0xff]
      %v571 = vld [vmem:[%s169 + $0xc48] sm:$0xff]
      %v572 = vld [vmem:[%s169 + $0xc50] sm:$0xff]
      %v573 = vld [vmem:[%s169 + $0xc58] sm:$0xff]
      %v574 = vld [vmem:[%s169 + $0xc60] sm:$0xff]
      %v575 = vld [vmem:[%s169 + $0xc68] sm:$0xff]
      %v576 = vld [vmem:[%s169 + $0xc70] sm:$0xff]
      %v577 = vld [vmem:[%s169 + $0xc78] sm:$0xff]
      %v578 = vld [vmem:[%s169 + $0xc80] sm:$0xff]
      %v579 = vld [vmem:[%s169 + $0xc88] sm:$0xff]
      %v580 = vld [vmem:[%s169 + $0xc90] sm:$0xff]
      %v581 = vld [vmem:[%s169 + $0xc98] sm:$0xff]
      %v582 = vld [vmem:[%s169 + $0xca0] sm:$0xff]
      %v583 = vld [vmem:[%s169 + $0xca8] sm:$0xff]
      %v584 = vld [vmem:[%s169 + $0xcb0] sm:$0xff]
      %v585 = vld [vmem:[%s169 + $0xcb8] sm:$0xff]
      %v586 = vld [vmem:[%s169 + $0xcc0] sm:$0xff]
      %v587 = vld [vmem:[%s169 + $0xcc8] sm:$0xff]
      %v588 = vld [vmem:[%s169 + $0xcd0] sm:$0xff]
      %v589 = vld [vmem:[%s169 + $0xcd8] sm:$0xff]
      %v590 = vld [vmem:[%s169 + $0xce0] sm:$0xff]
      %v591 = vld [vmem:[%s169 + $0xce8] sm:$0xff]
      %v592 = vld [vmem:[%s169 + $0xcf0] sm:$0xff]
      %v593 = vld [vmem:[%s169 + $0xcf8] sm:$0xff]
      %v594 = vld [vmem:[%s169 + $0xd00] sm:$0xff]
      %v595 = vld [vmem:[%s169 + $0xd08] sm:$0xff]
      %v596 = vld [vmem:[%s169 + $0xd10] sm:$0xff]
      %v597 = vld [vmem:[%s169 + $0xd18] sm:$0xff]
      %v598 = vld [vmem:[%s169 + $0xd20] sm:$0xff]
      %v599 = vld [vmem:[%s169 + $0xd28] sm:$0xff]
      %v600 = vld [vmem:[%s169 + $0xd30] sm:$0xff]
      %v601 = vld [vmem:[%s169 + $0xd38] sm:$0xff]
      %v602 = vld [vmem:[%s169 + $0xd40] sm:$0xff]
      %v603 = vld [vmem:[%s169 + $0xd48] sm:$0xff]
      %v604 = vld [vmem:[%s169 + $0xd50] sm:$0xff]
      %v605 = vld [vmem:[%s169 + $0xd58] sm:$0xff]
      %v606 = vld [vmem:[%s169 + $0xd60] sm:$0xff]
      %v607 = vld [vmem:[%s169 + $0xd68] sm:$0xff]
      %v608 = vld [vmem:[%s169 + $0xd70] sm:$0xff]
      %v609 = vld [vmem:[%s169 + $0xd78] sm:$0xff]
      %v610 = vld [vmem:[%s169 + $0xd80] sm:$0xff]
      %v611 = vld [vmem:[%s169 + $0xd88] sm:$0xff]
      %v612 = vld [vmem:[%s169 + $0xd90] sm:$0xff]
      %v613 = vld [vmem:[%s169 + $0xd98] sm:$0xff]
      %v614 = vld [vmem:[%s169 + $0xda0] sm:$0xff]
      %v615 = vld [vmem:[%s169 + $0xda8] sm:$0xff]
      %v616 = vld [vmem:[%s169 + $0xdb0] sm:$0xff]
      %v617 = vld [vmem:[%s169 + $0xdb8] sm:$0xff]
      %v618 = vld [vmem:[%s169 + $0xdc0] sm:$0xff]
      %v619 = vld [vmem:[%s169 + $0xdc8] sm:$0xff]
      %v620 = vld [vmem:[%s169 + $0xdd0] sm:$0xff]
      %v621 = vld [vmem:[%s169 + $0xdd8] sm:$0xff]
      %v622 = vld [vmem:[%s169 + $0xde0] sm:$0xff]
      %v623 = vld [vmem:[%s169 + $0xde8] sm:$0xff]
      %v624 = vld [vmem:[%s169 + $0xdf0] sm:$0xff]
      %v625 = vld [vmem:[%s169 + $0xdf8] sm:$0xff]
      %v626 = vld [vmem:[%s169 + $0xe00] sm:$0xff]
      %v627 = vld [vmem:[%s169 + $0xe08] sm:$0xff]
      %v628 = vld [vmem:[%s169 + $0xe10] sm:$0xff]
      %v629 = vld [vmem:[%s169 + $0xe18] sm:$0xff]
      %v630 = vld [vmem:[%s169 + $0xe20] sm:$0xff]
      %v631 = vld [vmem:[%s169 + $0xe28] sm:$0xff]
      %v632 = vld [vmem:[%s169 + $0xe30] sm:$0xff]
      %v633 = vld [vmem:[%s169 + $0xe38] sm:$0xff]
      %v634 = vld [vmem:[%s169 + $0xe40] sm:$0xff]
      %v635 = vld [vmem:[%s169 + $0xe48] sm:$0xff]
      %v636 = vld [vmem:[%s169 + $0xe50] sm:$0xff]
      %v637 = vld [vmem:[%s169 + $0xe58] sm:$0xff]
      %v638 = vld [vmem:[%s169 + $0xe60] sm:$0xff]
      %v639 = vld [vmem:[%s169 + $0xe68] sm:$0xff]
      %v640 = vld [vmem:[%s169 + $0xe70] sm:$0xff]
      %v641 = vld [vmem:[%s169 + $0xe78] sm:$0xff]
      %v642 = vld [vmem:[%s169 + $0xe80] sm:$0xff]
      %v643 = vld [vmem:[%s169 + $0xe88] sm:$0xff]
      %v644 = vld [vmem:[%s169 + $0xe90] sm:$0xff]
      %v645 = vld [vmem:[%s169 + $0xe98] sm:$0xff]
      %v646 = vld [vmem:[%s169 + $0xea0] sm:$0xff]
      %v647 = vld [vmem:[%s169 + $0xea8] sm:$0xff]
      %v648 = vld [vmem:[%s169 + $0xeb0] sm:$0xff]
      %v649 = vld [vmem:[%s169 + $0xeb8] sm:$0xff]
      %v650 = vld [vmem:[%s169 + $0xec0] sm:$0xff]
      %v651 = vld [vmem:[%s169 + $0xec8] sm:$0xff]
      %v652 = vld [vmem:[%s169 + $0xed0] sm:$0xff]
      %v653 = vld [vmem:[%s169 + $0xed8] sm:$0xff]
      %v654 = vld [vmem:[%s169 + $0xee0] sm:$0xff]
      %v655 = vld [vmem:[%s169 + $0xee8] sm:$0xff]
      %v656 = vld [vmem:[%s169 + $0xef0] sm:$0xff]
      %v657 = vld [vmem:[%s169 + $0xef8] sm:$0xff]
      %v658 = vld [vmem:[%s169 + $0xf00] sm:$0xff]
      %v659 = vld [vmem:[%s169 + $0xf08] sm:$0xff]
      %v660 = vld [vmem:[%s169 + $0xf10] sm:$0xff]
      %v661 = vld [vmem:[%s169 + $0xf18] sm:$0xff]
      %v662 = vld [vmem:[%s169 + $0xf20] sm:$0xff]
      %v663 = vld [vmem:[%s169 + $0xf28] sm:$0xff]
      %v664 = vld [vmem:[%s169 + $0xf30] sm:$0xff]
      %v665 = vld [vmem:[%s169 + $0xf38] sm:$0xff]
      %v666 = vld [vmem:[%s169 + $0xf40] sm:$0xff]
      %v667 = vld [vmem:[%s169 + $0xf48] sm:$0xff]
      %v668 = vld [vmem:[%s169 + $0xf50] sm:$0xff]
      %v669 = vld [vmem:[%s169 + $0xf58] sm:$0xff]
      %v670 = vld [vmem:[%s169 + $0xf60] sm:$0xff]
      %v671 = vld [vmem:[%s169 + $0xf68] sm:$0xff]
      %v672 = vld [vmem:[%s169 + $0xf70] sm:$0xff]
      %v673 = vld [vmem:[%s169 + $0xf78] sm:$0xff]
      %v674 = vld [vmem:[%s169 + $0xf80] sm:$0xff]
      %v675 = vld [vmem:[%s169 + $0xf88] sm:$0xff]
      %v676 = vld [vmem:[%s169 + $0xf90] sm:$0xff]
      %v677 = vld [vmem:[%s169 + $0xf98] sm:$0xff]
      %v678 = vld [vmem:[%s169 + $0xfa0] sm:$0xff]
      %v679 = vld [vmem:[%s169 + $0xfa8] sm:$0xff]
      %v680 = vld [vmem:[%s169 + $0xfb0] sm:$0xff]
      %v681 = vld [vmem:[%s169 + $0xfb8] sm:$0xff]
      %v682 = vld [vmem:[%s169 + $0xfc0] sm:$0xff]
      %v683 = vld [vmem:[%s169 + $0xfc8] sm:$0xff]
      %v684 = vld [vmem:[%s169 + $0xfd0] sm:$0xff]
      %v685 = vld [vmem:[%s169 + $0xfd8] sm:$0xff]
      %v686 = vld [vmem:[%s169 + $0xfe0] sm:$0xff]
      %v687 = vld [vmem:[%s169 + $0xfe8] sm:$0xff]
      %v688 = vld [vmem:[%s169 + $0xff0] sm:$0xff]
      %v689 = vld [vmem:[%s169 + $0xff8] sm:$0xff]
      %v690 = vadd.f32 %v178, %v194
      %v691 = vrot.slane %v690, 4
      %v692 = vadd.f32 %v690, %v691
      %v693 = vrot.slane %v692, 2
      %v694 = vadd.f32 %v692, %v693
      %v695 = vrot.slane %v694, 1
      %v696 = vadd.f32 %v694, %v695
      %v697 = vadd.f32 %v179, %v195
      %v698 = vrot.slane %v697, 4
      %v699 = vadd.f32 %v697, %v698
      %v700 = vrot.slane %v699, 2
      %v701 = vadd.f32 %v699, %v700
      %v702 = vrot.slane %v701, 1
      %v703 = vadd.f32 %v701, %v702
      %v704 = vadd.f32 %v180, %v196
      %v705 = vrot.slane %v704, 4
      %v706 = vadd.f32 %v704, %v705
      %v707 = vrot.slane %v706, 2
      %v708 = vadd.f32 %v706, %v707
      %v709 = vrot.slane %v708, 1
      %v710 = vadd.f32 %v708, %v709
      %v711 = vadd.f32 %v181, %v197
      %v712 = vrot.slane %v711, 4
      %v713 = vadd.f32 %v711, %v712
      %v714 = vrot.slane %v713, 2
      %v715 = vadd.f32 %v713, %v714
      %v716 = vrot.slane %v715, 1
      %v717 = vadd.f32 %v715, %v716
      %v718 = vadd.f32 %v182, %v198
      %v719 = vrot.slane %v718, 4
      %v720 = vadd.f32 %v718, %v719
      %v721 = vrot.slane %v720, 2
      %v722 = vadd.f32 %v720, %v721
      %v723 = vrot.slane %v722, 1
      %v724 = vadd.f32 %v722, %v723
      %v725 = vadd.f32 %v183, %v199
      %v726 = vrot.slane %v725, 4
      %v727 = vadd.f32 %v725, %v726
      %v728 = vrot.slane %v727, 2
      %v729 = vadd.f32 %v727, %v728
      %v730 = vrot.slane %v729, 1
      %v731 = vadd.f32 %v729, %v730
      %v732 = vadd.f32 %v184, %v200
      %v733 = vrot.slane %v732, 4
      %v734 = vadd.f32 %v732, %v733
      %v735 = vrot.slane %v734, 2
      %v736 = vadd.f32 %v734, %v735
      %v737 = vrot.slane %v736, 1
      %v738 = vadd.f32 %v736, %v737
      %v739 = vadd.f32 %v185, %v201
      %v740 = vrot.slane %v739, 4
      %v741 = vadd.f32 %v739, %v740
      %v742 = vrot.slane %v741, 2
      %v743 = vadd.f32 %v741, %v742
      %v744 = vrot.slane %v743, 1
      %v745 = vadd.f32 %v743, %v744
      %v746 = vadd.f32 %v186, %v202
      %v747 = vrot.slane %v746, 4
      %v748 = vadd.f32 %v746, %v747
      %v749 = vrot.slane %v748, 2
      %v750 = vadd.f32 %v748, %v749
      %v751 = vrot.slane %v750, 1
      %v752 = vadd.f32 %v750, %v751
      %v753 = vadd.f32 %v187, %v203
      %v754 = vrot.slane %v753, 4
      %v755 = vadd.f32 %v753, %v754
      %v756 = vrot.slane %v755, 2
      %v757 = vadd.f32 %v755, %v756
      %v758 = vrot.slane %v757, 1
      %v759 = vadd.f32 %v757, %v758
      %v760 = vadd.f32 %v188, %v204
      %v761 = vrot.slane %v760, 4
      %v762 = vadd.f32 %v760, %v761
      %v763 = vrot.slane %v762, 2
      %v764 = vadd.f32 %v762, %v763
      %v765 = vrot.slane %v764, 1
      %v766 = vadd.f32 %v764, %v765
      %v767 = vadd.f32 %v189, %v205
      %v768 = vrot.slane %v767, 4
      %v769 = vadd.f32 %v767, %v768
      %v770 = vrot.slane %v769, 2
      %v771 = vadd.f32 %v769, %v770
      %v772 = vrot.slane %v771, 1
      %v773 = vadd.f32 %v771, %v772
      %v774 = vadd.f32 %v190, %v206
      %v775 = vrot.slane %v774, 4
      %v776 = vadd.f32 %v774, %v775
      %v777 = vrot.slane %v776, 2
      %v778 = vadd.f32 %v776, %v777
      %v779 = vrot.slane %v778, 1
      %v780 = vadd.f32 %v778, %v779
      %v781 = vadd.f32 %v191, %v207
      %v782 = vrot.slane %v781, 4
      %v783 = vadd.f32 %v781, %v782
      %v784 = vrot.slane %v783, 2
      %v785 = vadd.f32 %v783, %v784
      %v786 = vrot.slane %v785, 1
      %v787 = vadd.f32 %v785, %v786
      %v788 = vadd.f32 %v192, %v208
      %v789 = vrot.slane %v788, 4
      %v790 = vadd.f32 %v788, %v789
      %v791 = vrot.slane %v790, 2
      %v792 = vadd.f32 %v790, %v791
      %v793 = vrot.slane %v792, 1
      %v794 = vadd.f32 %v792, %v793
      %v795 = vadd.f32 %v193, %v209
      %v796 = vrot.slane %v795, 4
      %v797 = vadd.f32 %v795, %v796
      %v798 = vrot.slane %v797, 2
      %v799 = vadd.f32 %v797, %v798
      %v800 = vrot.slane %v799, 1
      %v801 = vadd.f32 %v799, %v800
      %v802 = vadd.f32 %v210, %v226
      %v803 = vrot.slane %v802, 4
      %v804 = vadd.f32 %v802, %v803
      %v805 = vrot.slane %v804, 2
      %v806 = vadd.f32 %v804, %v805
      %v807 = vrot.slane %v806, 1
      %v808 = vadd.f32 %v806, %v807
      %v809 = vadd.f32 %v211, %v227
      %v810 = vrot.slane %v809, 4
      %v811 = vadd.f32 %v809, %v810
      %v812 = vrot.slane %v811, 2
      %v813 = vadd.f32 %v811, %v812
      %v814 = vrot.slane %v813, 1
      %v815 = vadd.f32 %v813, %v814
      %v816 = vadd.f32 %v212, %v228
      %v817 = vrot.slane %v816, 4
      %v818 = vadd.f32 %v816, %v817
      %v819 = vrot.slane %v818, 2
      %v820 = vadd.f32 %v818, %v819
      %v821 = vrot.slane %v820, 1
      %v822 = vadd.f32 %v820, %v821
      %v823 = vadd.f32 %v213, %v229
      %v824 = vrot.slane %v823, 4
      %v825 = vadd.f32 %v823, %v824
      %v826 = vrot.slane %v825, 2
      %v827 = vadd.f32 %v825, %v826
      %v828 = vrot.slane %v827, 1
      %v829 = vadd.f32 %v827, %v828
      %v830 = vadd.f32 %v214, %v230
      %v831 = vrot.slane %v830, 4
      %v832 = vadd.f32 %v830, %v831
      %v833 = vrot.slane %v832, 2
      %v834 = vadd.f32 %v832, %v833
      %v835 = vrot.slane %v834, 1
      %v836 = vadd.f32 %v834, %v835
      %v837 = vadd.f32 %v215, %v231
      %v838 = vrot.slane %v837, 4
      %v839 = vadd.f32 %v837, %v838
      %v840 = vrot.slane %v839, 2
      %v841 = vadd.f32 %v839, %v840
      %v842 = vrot.slane %v841, 1
      %v843 = vadd.f32 %v841, %v842
      %v844 = vadd.f32 %v216, %v232
      %v845 = vrot.slane %v844, 4
      %v846 = vadd.f32 %v844, %v845
      %v847 = vrot.slane %v846, 2
      %v848 = vadd.f32 %v846, %v847
      %v849 = vrot.slane %v848, 1
      %v850 = vadd.f32 %v848, %v849
      %v851 = vadd.f32 %v217, %v233
      %v852 = vrot.slane %v851, 4
      %v853 = vadd.f32 %v851, %v852
      %v854 = vrot.slane %v853, 2
      %v855 = vadd.f32 %v853, %v854
      %v856 = vrot.slane %v855, 1
      %v857 = vadd.f32 %v855, %v856
      %v858 = vadd.f32 %v218, %v234
      %v859 = vrot.slane %v858, 4
      %v860 = vadd.f32 %v858, %v859
      %v861 = vrot.slane %v860, 2
      %v862 = vadd.f32 %v860, %v861
      %v863 = vrot.slane %v862, 1
      %v864 = vadd.f32 %v862, %v863
      %v865 = vadd.f32 %v219, %v235
      %v866 = vrot.slane %v865, 4
      %v867 = vadd.f32 %v865, %v866
      %v868 = vrot.slane %v867, 2
      %v869 = vadd.f32 %v867, %v868
      %v870 = vrot.slane %v869, 1
      %v871 = vadd.f32 %v869, %v870
      %v872 = vadd.f32 %v220, %v236
      %v873 = vrot.slane %v872, 4
      %v874 = vadd.f32 %v872, %v873
      %v875 = vrot.slane %v874, 2
      %v876 = vadd.f32 %v874, %v875
      %v877 = vrot.slane %v876, 1
      %v878 = vadd.f32 %v876, %v877
      %v879 = vadd.f32 %v221, %v237
      %v880 = vrot.slane %v879, 4
      %v881 = vadd.f32 %v879, %v880
      %v882 = vrot.slane %v881, 2
      %v883 = vadd.f32 %v881, %v882
      %v884 = vrot.slane %v883, 1
      %v885 = vadd.f32 %v883, %v884
      %v886 = vadd.f32 %v222, %v238
      %v887 = vrot.slane %v886, 4
      %v888 = vadd.f32 %v886, %v887
      %v889 = vrot.slane %v888, 2
      %v890 = vadd.f32 %v888, %v889
      %v891 = vrot.slane %v890, 1
      %v892 = vadd.f32 %v890, %v891
      %v893 = vadd.f32 %v223, %v239
      %v894 = vrot.slane %v893, 4
      %v895 = vadd.f32 %v893, %v894
      %v896 = vrot.slane %v895, 2
      %v897 = vadd.f32 %v895, %v896
      %v898 = vrot.slane %v897, 1
      %v899 = vadd.f32 %v897, %v898
      %v900 = vadd.f32 %v224, %v240
      %v901 = vrot.slane %v900, 4
      %v902 = vadd.f32 %v900, %v901
      %v903 = vrot.slane %v902, 2
      %v904 = vadd.f32 %v902, %v903
      %v905 = vrot.slane %v904, 1
      %v906 = vadd.f32 %v904, %v905
      %v907 = vadd.f32 %v225, %v241
      %v908 = vrot.slane %v907, 4
      %v909 = vadd.f32 %v907, %v908
      %v910 = vrot.slane %v909, 2
      %v911 = vadd.f32 %v909, %v910
      %v912 = vrot.slane %v911, 1
      %v913 = vadd.f32 %v911, %v912
      %v914 = vadd.f32 %v242, %v258
      %v915 = vrot.slane %v914, 4
      %v916 = vadd.f32 %v914, %v915
      %v917 = vrot.slane %v916, 2
      %v918 = vadd.f32 %v916, %v917
      %v919 = vrot.slane %v918, 1
      %v920 = vadd.f32 %v918, %v919
      %v921 = vadd.f32 %v243, %v259
      %v922 = vrot.slane %v921, 4
      %v923 = vadd.f32 %v921, %v922
      %v924 = vrot.slane %v923, 2
      %v925 = vadd.f32 %v923, %v924
      %v926 = vrot.slane %v925, 1
      %v927 = vadd.f32 %v925, %v926
      %v928 = vadd.f32 %v244, %v260
      %v929 = vrot.slane %v928, 4
      %v930 = vadd.f32 %v928, %v929
      %v931 = vrot.slane %v930, 2
      %v932 = vadd.f32 %v930, %v931
      %v933 = vrot.slane %v932, 1
      %v934 = vadd.f32 %v932, %v933
      %v935 = vadd.f32 %v245, %v261
      %v936 = vrot.slane %v935, 4
      %v937 = vadd.f32 %v935, %v936
      %v938 = vrot.slane %v937, 2
      %v939 = vadd.f32 %v937, %v938
      %v940 = vrot.slane %v939, 1
      %v941 = vadd.f32 %v939, %v940
      %v942 = vadd.f32 %v246, %v262
      %v943 = vrot.slane %v942, 4
      %v944 = vadd.f32 %v942, %v943
      %v945 = vrot.slane %v944, 2
      %v946 = vadd.f32 %v944, %v945
      %v947 = vrot.slane %v946, 1
      %v948 = vadd.f32 %v946, %v947
      %v949 = vadd.f32 %v247, %v263
      %v950 = vrot.slane %v949, 4
      %v951 = vadd.f32 %v949, %v950
      %v952 = vrot.slane %v951, 2
      %v953 = vadd.f32 %v951, %v952
      %v954 = vrot.slane %v953, 1
      %v955 = vadd.f32 %v953, %v954
      %v956 = vadd.f32 %v248, %v264
      %v957 = vrot.slane %v956, 4
      %v958 = vadd.f32 %v956, %v957
      %v959 = vrot.slane %v958, 2
      %v960 = vadd.f32 %v958, %v959
      %v961 = vrot.slane %v960, 1
      %v962 = vadd.f32 %v960, %v961
      %v963 = vadd.f32 %v249, %v265
      %v964 = vrot.slane %v963, 4
      %v965 = vadd.f32 %v963, %v964
      %v966 = vrot.slane %v965, 2
      %v967 = vadd.f32 %v965, %v966
      %v968 = vrot.slane %v967, 1
      %v969 = vadd.f32 %v967, %v968
      %v970 = vadd.f32 %v250, %v266
      %v971 = vrot.slane %v970, 4
      %v972 = vadd.f32 %v970, %v971
      %v973 = vrot.slane %v972, 2
      %v974 = vadd.f32 %v972, %v973
      %v975 = vrot.slane %v974, 1
      %v976 = vadd.f32 %v974, %v975
      %v977 = vadd.f32 %v251, %v267
      %v978 = vrot.slane %v977, 4
      %v979 = vadd.f32 %v977, %v978
      %v980 = vrot.slane %v979, 2
      %v981 = vadd.f32 %v979, %v980
      %v982 = vrot.slane %v981, 1
      %v983 = vadd.f32 %v981, %v982
      %v984 = vadd.f32 %v252, %v268
      %v985 = vrot.slane %v984, 4
      %v986 = vadd.f32 %v984, %v985
      %v987 = vrot.slane %v986, 2
      %v988 = vadd.f32 %v986, %v987
      %v989 = vrot.slane %v988, 1
      %v990 = vadd.f32 %v988, %v989
      %v991 = vadd.f32 %v253, %v269
      %v992 = vrot.slane %v991, 4
      %v993 = vadd.f32 %v991, %v992
      %v994 = vrot.slane %v993, 2
      %v995 = vadd.f32 %v993, %v994
      %v996 = vrot.slane %v995, 1
      %v997 = vadd.f32 %v995, %v996
      %v998 = vadd.f32 %v254, %v270
      %v999 = vrot.slane %v998, 4
      %v1000 = vadd.f32 %v998, %v999
      %v1001 = vrot.slane %v1000, 2
      %v1002 = vadd.f32 %v1000, %v1001
      %v1003 = vrot.slane %v1002, 1
      %v1004 = vadd.f32 %v1002, %v1003
      %v1005 = vadd.f32 %v255, %v271
      %v1006 = vrot.slane %v1005, 4
      %v1007 = vadd.f32 %v1005, %v1006
      %v1008 = vrot.slane %v1007, 2
      %v1009 = vadd.f32 %v1007, %v1008
      %v1010 = vrot.slane %v1009, 1
      %v1011 = vadd.f32 %v1009, %v1010
      %v1012 = vadd.f32 %v256, %v272
      %v1013 = vrot.slane %v1012, 4
      %v1014 = vadd.f32 %v1012, %v1013
      %v1015 = vrot.slane %v1014, 2
      %v1016 = vadd.f32 %v1014, %v1015
      %v1017 = vrot.slane %v1016, 1
      %v1018 = vadd.f32 %v1016, %v1017
      %v1019 = vadd.f32 %v257, %v273
      %v1020 = vrot.slane %v1019, 4
      %v1021 = vadd.f32 %v1019, %v1020
      %v1022 = vrot.slane %v1021, 2
      %v1023 = vadd.f32 %v1021, %v1022
      %v1024 = vrot.slane %v1023, 1
      %v1025 = vadd.f32 %v1023, %v1024
      %v1026 = vadd.f32 %v274, %v290
      %v1027 = vrot.slane %v1026, 4
      %v1028 = vadd.f32 %v1026, %v1027
      %v1029 = vrot.slane %v1028, 2
      %v1030 = vadd.f32 %v1028, %v1029
      %v1031 = vrot.slane %v1030, 1
      %v1032 = vadd.f32 %v1030, %v1031
      %v1033 = vadd.f32 %v275, %v291
      %v1034 = vrot.slane %v1033, 4
      %v1035 = vadd.f32 %v1033, %v1034
      %v1036 = vrot.slane %v1035, 2
      %v1037 = vadd.f32 %v1035, %v1036
      %v1038 = vrot.slane %v1037, 1
      %v1039 = vadd.f32 %v1037, %v1038
      %v1040 = vadd.f32 %v276, %v292
      %v1041 = vrot.slane %v1040, 4
      %v1042 = vadd.f32 %v1040, %v1041
      %v1043 = vrot.slane %v1042, 2
      %v1044 = vadd.f32 %v1042, %v1043
      %v1045 = vrot.slane %v1044, 1
      %v1046 = vadd.f32 %v1044, %v1045
      %v1047 = vadd.f32 %v277, %v293
      %v1048 = vrot.slane %v1047, 4
      %v1049 = vadd.f32 %v1047, %v1048
      %v1050 = vrot.slane %v1049, 2
      %v1051 = vadd.f32 %v1049, %v1050
      %v1052 = vrot.slane %v1051, 1
      %v1053 = vadd.f32 %v1051, %v1052
      %v1054 = vadd.f32 %v278, %v294
      %v1055 = vrot.slane %v1054, 4
      %v1056 = vadd.f32 %v1054, %v1055
      %v1057 = vrot.slane %v1056, 2
      %v1058 = vadd.f32 %v1056, %v1057
      %v1059 = vrot.slane %v1058, 1
      %v1060 = vadd.f32 %v1058, %v1059
      %v1061 = vadd.f32 %v279, %v295
      %v1062 = vrot.slane %v1061, 4
      %v1063 = vadd.f32 %v1061, %v1062
      %v1064 = vrot.slane %v1063, 2
      %v1065 = vadd.f32 %v1063, %v1064
      %v1066 = vrot.slane %v1065, 1
      %v1067 = vadd.f32 %v1065, %v1066
      %v1068 = vadd.f32 %v280, %v296
      %v1069 = vrot.slane %v1068, 4
      %v1070 = vadd.f32 %v1068, %v1069
      %v1071 = vrot.slane %v1070, 2
      %v1072 = vadd.f32 %v1070, %v1071
      %v1073 = vrot.slane %v1072, 1
      %v1074 = vadd.f32 %v1072, %v1073
      %v1075 = vadd.f32 %v281, %v297
      %v1076 = vrot.slane %v1075, 4
      %v1077 = vadd.f32 %v1075, %v1076
      %v1078 = vrot.slane %v1077, 2
      %v1079 = vadd.f32 %v1077, %v1078
      %v1080 = vrot.slane %v1079, 1
      %v1081 = vadd.f32 %v1079, %v1080
      %v1082 = vadd.f32 %v282, %v298
      %v1083 = vrot.slane %v1082, 4
      %v1084 = vadd.f32 %v1082, %v1083
      %v1085 = vrot.slane %v1084, 2
      %v1086 = vadd.f32 %v1084, %v1085
      %v1087 = vrot.slane %v1086, 1
      %v1088 = vadd.f32 %v1086, %v1087
      %v1089 = vadd.f32 %v283, %v299
      %v1090 = vrot.slane %v1089, 4
      %v1091 = vadd.f32 %v1089, %v1090
      %v1092 = vrot.slane %v1091, 2
      %v1093 = vadd.f32 %v1091, %v1092
      %v1094 = vrot.slane %v1093, 1
      %v1095 = vadd.f32 %v1093, %v1094
      %v1096 = vadd.f32 %v284, %v300
      %v1097 = vrot.slane %v1096, 4
      %v1098 = vadd.f32 %v1096, %v1097
      %v1099 = vrot.slane %v1098, 2
      %v1100 = vadd.f32 %v1098, %v1099
      %v1101 = vrot.slane %v1100, 1
      %v1102 = vadd.f32 %v1100, %v1101
      %v1103 = vadd.f32 %v285, %v301
      %v1104 = vrot.slane %v1103, 4
      %v1105 = vadd.f32 %v1103, %v1104
      %v1106 = vrot.slane %v1105, 2
      %v1107 = vadd.f32 %v1105, %v1106
      %v1108 = vrot.slane %v1107, 1
      %v1109 = vadd.f32 %v1107, %v1108
      %v1110 = vadd.f32 %v286, %v302
      %v1111 = vrot.slane %v1110, 4
      %v1112 = vadd.f32 %v1110, %v1111
      %v1113 = vrot.slane %v1112, 2
      %v1114 = vadd.f32 %v1112, %v1113
      %v1115 = vrot.slane %v1114, 1
      %v1116 = vadd.f32 %v1114, %v1115
      %v1117 = vadd.f32 %v287, %v303
      %v1118 = vrot.slane %v1117, 4
      %v1119 = vadd.f32 %v1117, %v1118
      %v1120 = vrot.slane %v1119, 2
      %v1121 = vadd.f32 %v1119, %v1120
      %v1122 = vrot.slane %v1121, 1
      %v1123 = vadd.f32 %v1121, %v1122
      %v1124 = vadd.f32 %v288, %v304
      %v1125 = vrot.slane %v1124, 4
      %v1126 = vadd.f32 %v1124, %v1125
      %v1127 = vrot.slane %v1126, 2
      %v1128 = vadd.f32 %v1126, %v1127
      %v1129 = vrot.slane %v1128, 1
      %v1130 = vadd.f32 %v1128, %v1129
      %v1131 = vadd.f32 %v289, %v305
      %v1132 = vrot.slane %v1131, 4
      %v1133 = vadd.f32 %v1131, %v1132
      %v1134 = vrot.slane %v1133, 2
      %v1135 = vadd.f32 %v1133, %v1134
      %v1136 = vrot.slane %v1135, 1
      %v1137 = vadd.f32 %v1135, %v1136
      %v1138 = vadd.f32 %v306, %v322
      %v1139 = vrot.slane %v1138, 4
      %v1140 = vadd.f32 %v1138, %v1139
      %v1141 = vrot.slane %v1140, 2
      %v1142 = vadd.f32 %v1140, %v1141
      %v1143 = vrot.slane %v1142, 1
      %v1144 = vadd.f32 %v1142, %v1143
      %v1145 = vadd.f32 %v307, %v323
      %v1146 = vrot.slane %v1145, 4
      %v1147 = vadd.f32 %v1145, %v1146
      %v1148 = vrot.slane %v1147, 2
      %v1149 = vadd.f32 %v1147, %v1148
      %v1150 = vrot.slane %v1149, 1
      %v1151 = vadd.f32 %v1149, %v1150
      %v1152 = vadd.f32 %v308, %v324
      %v1153 = vrot.slane %v1152, 4
      %v1154 = vadd.f32 %v1152, %v1153
      %v1155 = vrot.slane %v1154, 2
      %v1156 = vadd.f32 %v1154, %v1155
      %v1157 = vrot.slane %v1156, 1
      %v1158 = vadd.f32 %v1156, %v1157
      %v1159 = vadd.f32 %v309, %v325
      %v1160 = vrot.slane %v1159, 4
      %v1161 = vadd.f32 %v1159, %v1160
      %v1162 = vrot.slane %v1161, 2
      %v1163 = vadd.f32 %v1161, %v1162
      %v1164 = vrot.slane %v1163, 1
      %v1165 = vadd.f32 %v1163, %v1164
      %v1166 = vadd.f32 %v310, %v326
      %v1167 = vrot.slane %v1166, 4
      %v1168 = vadd.f32 %v1166, %v1167
      %v1169 = vrot.slane %v1168, 2
      %v1170 = vadd.f32 %v1168, %v1169
      %v1171 = vrot.slane %v1170, 1
      %v1172 = vadd.f32 %v1170, %v1171
      %v1173 = vadd.f32 %v311, %v327
      %v1174 = vrot.slane %v1173, 4
      %v1175 = vadd.f32 %v1173, %v1174
      %v1176 = vrot.slane %v1175, 2
      %v1177 = vadd.f32 %v1175, %v1176
      %v1178 = vrot.slane %v1177, 1
      %v1179 = vadd.f32 %v1177, %v1178
      %v1180 = vadd.f32 %v312, %v328
      %v1181 = vrot.slane %v1180, 4
      %v1182 = vadd.f32 %v1180, %v1181
      %v1183 = vrot.slane %v1182, 2
      %v1184 = vadd.f32 %v1182, %v1183
      %v1185 = vrot.slane %v1184, 1
      %v1186 = vadd.f32 %v1184, %v1185
      %v1187 = vadd.f32 %v313, %v329
      %v1188 = vrot.slane %v1187, 4
      %v1189 = vadd.f32 %v1187, %v1188
      %v1190 = vrot.slane %v1189, 2
      %v1191 = vadd.f32 %v1189, %v1190
      %v1192 = vrot.slane %v1191, 1
      %v1193 = vadd.f32 %v1191, %v1192
      %v1194 = vadd.f32 %v314, %v330
      %v1195 = vrot.slane %v1194, 4
      %v1196 = vadd.f32 %v1194, %v1195
      %v1197 = vrot.slane %v1196, 2
      %v1198 = vadd.f32 %v1196, %v1197
      %v1199 = vrot.slane %v1198, 1
      %v1200 = vadd.f32 %v1198, %v1199
      %v1201 = vadd.f32 %v315, %v331
      %v1202 = vrot.slane %v1201, 4
      %v1203 = vadd.f32 %v1201, %v1202
      %v1204 = vrot.slane %v1203, 2
      %v1205 = vadd.f32 %v1203, %v1204
      %v1206 = vrot.slane %v1205, 1
      %v1207 = vadd.f32 %v1205, %v1206
      %v1208 = vadd.f32 %v316, %v332
      %v1209 = vrot.slane %v1208, 4
      %v1210 = vadd.f32 %v1208, %v1209
      %v1211 = vrot.slane %v1210, 2
      %v1212 = vadd.f32 %v1210, %v1211
      %v1213 = vrot.slane %v1212, 1
      %v1214 = vadd.f32 %v1212, %v1213
      %v1215 = vadd.f32 %v317, %v333
      %v1216 = vrot.slane %v1215, 4
      %v1217 = vadd.f32 %v1215, %v1216
      %v1218 = vrot.slane %v1217, 2
      %v1219 = vadd.f32 %v1217, %v1218
      %v1220 = vrot.slane %v1219, 1
      %v1221 = vadd.f32 %v1219, %v1220
      %v1222 = vadd.f32 %v318, %v334
      %v1223 = vrot.slane %v1222, 4
      %v1224 = vadd.f32 %v1222, %v1223
      %v1225 = vrot.slane %v1224, 2
      %v1226 = vadd.f32 %v1224, %v1225
      %v1227 = vrot.slane %v1226, 1
      %v1228 = vadd.f32 %v1226, %v1227
      %v1229 = vadd.f32 %v319, %v335
      %v1230 = vrot.slane %v1229, 4
      %v1231 = vadd.f32 %v1229, %v1230
      %v1232 = vrot.slane %v1231, 2
      %v1233 = vadd.f32 %v1231, %v1232
      %v1234 = vrot.slane %v1233, 1
      %v1235 = vadd.f32 %v1233, %v1234
      %v1236 = vadd.f32 %v320, %v336
      %v1237 = vrot.slane %v1236, 4
      %v1238 = vadd.f32 %v1236, %v1237
      %v1239 = vrot.slane %v1238, 2
      %v1240 = vadd.f32 %v1238, %v1239
      %v1241 = vrot.slane %v1240, 1
      %v1242 = vadd.f32 %v1240, %v1241
      %v1243 = vadd.f32 %v321, %v337
      %v1244 = vrot.slane %v1243, 4
      %v1245 = vadd.f32 %v1243, %v1244
      %v1246 = vrot.slane %v1245, 2
      %v1247 = vadd.f32 %v1245, %v1246
      %v1248 = vrot.slane %v1247, 1
      %v1249 = vadd.f32 %v1247, %v1248
      %v1250 = vadd.f32 %v338, %v354
      %v1251 = vrot.slane %v1250, 4
      %v1252 = vadd.f32 %v1250, %v1251
      %v1253 = vrot.slane %v1252, 2
      %v1254 = vadd.f32 %v1252, %v1253
      %v1255 = vrot.slane %v1254, 1
      %v1256 = vadd.f32 %v1254, %v1255
      %v1257 = vadd.f32 %v339, %v355
      %v1258 = vrot.slane %v1257, 4
      %v1259 = vadd.f32 %v1257, %v1258
      %v1260 = vrot.slane %v1259, 2
      %v1261 = vadd.f32 %v1259, %v1260
      %v1262 = vrot.slane %v1261, 1
      %v1263 = vadd.f32 %v1261, %v1262
      %v1264 = vadd.f32 %v340, %v356
      %v1265 = vrot.slane %v1264, 4
      %v1266 = vadd.f32 %v1264, %v1265
      %v1267 = vrot.slane %v1266, 2
      %v1268 = vadd.f32 %v1266, %v1267
      %v1269 = vrot.slane %v1268, 1
      %v1270 = vadd.f32 %v1268, %v1269
      %v1271 = vadd.f32 %v341, %v357
      %v1272 = vrot.slane %v1271, 4
      %v1273 = vadd.f32 %v1271, %v1272
      %v1274 = vrot.slane %v1273, 2
      %v1275 = vadd.f32 %v1273, %v1274
      %v1276 = vrot.slane %v1275, 1
      %v1277 = vadd.f32 %v1275, %v1276
      %v1278 = vadd.f32 %v342, %v358
      %v1279 = vrot.slane %v1278, 4
      %v1280 = vadd.f32 %v1278, %v1279
      %v1281 = vrot.slane %v1280, 2
      %v1282 = vadd.f32 %v1280, %v1281
      %v1283 = vrot.slane %v1282, 1
      %v1284 = vadd.f32 %v1282, %v1283
      %v1285 = vadd.f32 %v343, %v359
      %v1286 = vrot.slane %v1285, 4
      %v1287 = vadd.f32 %v1285, %v1286
      %v1288 = vrot.slane %v1287, 2
      %v1289 = vadd.f32 %v1287, %v1288
      %v1290 = vrot.slane %v1289, 1
      %v1291 = vadd.f32 %v1289, %v1290
      %v1292 = vadd.f32 %v344, %v360
      %v1293 = vrot.slane %v1292, 4
      %v1294 = vadd.f32 %v1292, %v1293
      %v1295 = vrot.slane %v1294, 2
      %v1296 = vadd.f32 %v1294, %v1295
      %v1297 = vrot.slane %v1296, 1
      %v1298 = vadd.f32 %v1296, %v1297
      %v1299 = vadd.f32 %v345, %v361
      %v1300 = vrot.slane %v1299, 4
      %v1301 = vadd.f32 %v1299, %v1300
      %v1302 = vrot.slane %v1301, 2
      %v1303 = vadd.f32 %v1301, %v1302
      %v1304 = vrot.slane %v1303, 1
      %v1305 = vadd.f32 %v1303, %v1304
      %v1306 = vadd.f32 %v346, %v362
      %v1307 = vrot.slane %v1306, 4
      %v1308 = vadd.f32 %v1306, %v1307
      %v1309 = vrot.slane %v1308, 2
      %v1310 = vadd.f32 %v1308, %v1309
      %v1311 = vrot.slane %v1310, 1
      %v1312 = vadd.f32 %v1310, %v1311
      %v1313 = vadd.f32 %v347, %v363
      %v1314 = vrot.slane %v1313, 4
      %v1315 = vadd.f32 %v1313, %v1314
      %v1316 = vrot.slane %v1315, 2
      %v1317 = vadd.f32 %v1315, %v1316
      %v1318 = vrot.slane %v1317, 1
      %v1319 = vadd.f32 %v1317, %v1318
      %v1320 = vadd.f32 %v348, %v364
      %v1321 = vrot.slane %v1320, 4
      %v1322 = vadd.f32 %v1320, %v1321
      %v1323 = vrot.slane %v1322, 2
      %v1324 = vadd.f32 %v1322, %v1323
      %v1325 = vrot.slane %v1324, 1
      %v1326 = vadd.f32 %v1324, %v1325
      %v1327 = vadd.f32 %v349, %v365
      %v1328 = vrot.slane %v1327, 4
      %v1329 = vadd.f32 %v1327, %v1328
      %v1330 = vrot.slane %v1329, 2
      %v1331 = vadd.f32 %v1329, %v1330
      %v1332 = vrot.slane %v1331, 1
      %v1333 = vadd.f32 %v1331, %v1332
      %v1334 = vadd.f32 %v350, %v366
      %v1335 = vrot.slane %v1334, 4
      %v1336 = vadd.f32 %v1334, %v1335
      %v1337 = vrot.slane %v1336, 2
      %v1338 = vadd.f32 %v1336, %v1337
      %v1339 = vrot.slane %v1338, 1
      %v1340 = vadd.f32 %v1338, %v1339
      %v1341 = vadd.f32 %v351, %v367
      %v1342 = vrot.slane %v1341, 4
      %v1343 = vadd.f32 %v1341, %v1342
      %v1344 = vrot.slane %v1343, 2
      %v1345 = vadd.f32 %v1343, %v1344
      %v1346 = vrot.slane %v1345, 1
      %v1347 = vadd.f32 %v1345, %v1346
      %v1348 = vadd.f32 %v352, %v368
      %v1349 = vrot.slane %v1348, 4
      %v1350 = vadd.f32 %v1348, %v1349
      %v1351 = vrot.slane %v1350, 2
      %v1352 = vadd.f32 %v1350, %v1351
      %v1353 = vrot.slane %v1352, 1
      %v1354 = vadd.f32 %v1352, %v1353
      %v1355 = vadd.f32 %v353, %v369
      %v1356 = vrot.slane %v1355, 4
      %v1357 = vadd.f32 %v1355, %v1356
      %v1358 = vrot.slane %v1357, 2
      %v1359 = vadd.f32 %v1357, %v1358
      %v1360 = vrot.slane %v1359, 1
      %v1361 = vadd.f32 %v1359, %v1360
      %v1362 = vadd.f32 %v370, %v386
      %v1363 = vrot.slane %v1362, 4
      %v1364 = vadd.f32 %v1362, %v1363
      %v1365 = vrot.slane %v1364, 2
      %v1366 = vadd.f32 %v1364, %v1365
      %v1367 = vrot.slane %v1366, 1
      %v1368 = vadd.f32 %v1366, %v1367
      %v1369 = vadd.f32 %v371, %v387
      %v1370 = vrot.slane %v1369, 4
      %v1371 = vadd.f32 %v1369, %v1370
      %v1372 = vrot.slane %v1371, 2
      %v1373 = vadd.f32 %v1371, %v1372
      %v1374 = vrot.slane %v1373, 1
      %v1375 = vadd.f32 %v1373, %v1374
      %v1376 = vadd.f32 %v372, %v388
      %v1377 = vrot.slane %v1376, 4
      %v1378 = vadd.f32 %v1376, %v1377
      %v1379 = vrot.slane %v1378, 2
      %v1380 = vadd.f32 %v1378, %v1379
      %v1381 = vrot.slane %v1380, 1
      %v1382 = vadd.f32 %v1380, %v1381
      %v1383 = vadd.f32 %v373, %v389
      %v1384 = vrot.slane %v1383, 4
      %v1385 = vadd.f32 %v1383, %v1384
      %v1386 = vrot.slane %v1385, 2
      %v1387 = vadd.f32 %v1385, %v1386
      %v1388 = vrot.slane %v1387, 1
      %v1389 = vadd.f32 %v1387, %v1388
      %v1390 = vadd.f32 %v374, %v390
      %v1391 = vrot.slane %v1390, 4
      %v1392 = vadd.f32 %v1390, %v1391
      %v1393 = vrot.slane %v1392, 2
      %v1394 = vadd.f32 %v1392, %v1393
      %v1395 = vrot.slane %v1394, 1
      %v1396 = vadd.f32 %v1394, %v1395
      %v1397 = vadd.f32 %v375, %v391
      %v1398 = vrot.slane %v1397, 4
      %v1399 = vadd.f32 %v1397, %v1398
      %v1400 = vrot.slane %v1399, 2
      %v1401 = vadd.f32 %v1399, %v1400
      %v1402 = vrot.slane %v1401, 1
      %v1403 = vadd.f32 %v1401, %v1402
      %v1404 = vadd.f32 %v376, %v392
      %v1405 = vrot.slane %v1404, 4
      %v1406 = vadd.f32 %v1404, %v1405
      %v1407 = vrot.slane %v1406, 2
      %v1408 = vadd.f32 %v1406, %v1407
      %v1409 = vrot.slane %v1408, 1
      %v1410 = vadd.f32 %v1408, %v1409
      %v1411 = vadd.f32 %v377, %v393
      %v1412 = vrot.slane %v1411, 4
      %v1413 = vadd.f32 %v1411, %v1412
      %v1414 = vrot.slane %v1413, 2
      %v1415 = vadd.f32 %v1413, %v1414
      %v1416 = vrot.slane %v1415, 1
      %v1417 = vadd.f32 %v1415, %v1416
      %v1418 = vadd.f32 %v378, %v394
      %v1419 = vrot.slane %v1418, 4
      %v1420 = vadd.f32 %v1418, %v1419
      %v1421 = vrot.slane %v1420, 2
      %v1422 = vadd.f32 %v1420, %v1421
      %v1423 = vrot.slane %v1422, 1
      %v1424 = vadd.f32 %v1422, %v1423
      %v1425 = vadd.f32 %v379, %v395
      %v1426 = vrot.slane %v1425, 4
      %v1427 = vadd.f32 %v1425, %v1426
      %v1428 = vrot.slane %v1427, 2
      %v1429 = vadd.f32 %v1427, %v1428
      %v1430 = vrot.slane %v1429, 1
      %v1431 = vadd.f32 %v1429, %v1430
      %v1432 = vadd.f32 %v380, %v396
      %v1433 = vrot.slane %v1432, 4
      %v1434 = vadd.f32 %v1432, %v1433
      %v1435 = vrot.slane %v1434, 2
      %v1436 = vadd.f32 %v1434, %v1435
      %v1437 = vrot.slane %v1436, 1
      %v1438 = vadd.f32 %v1436, %v1437
      %v1439 = vadd.f32 %v381, %v397
      %v1440 = vrot.slane %v1439, 4
      %v1441 = vadd.f32 %v1439, %v1440
      %v1442 = vrot.slane %v1441, 2
      %v1443 = vadd.f32 %v1441, %v1442
      %v1444 = vrot.slane %v1443, 1
      %v1445 = vadd.f32 %v1443, %v1444
      %v1446 = vadd.f32 %v382, %v398
      %v1447 = vrot.slane %v1446, 4
      %v1448 = vadd.f32 %v1446, %v1447
      %v1449 = vrot.slane %v1448, 2
      %v1450 = vadd.f32 %v1448, %v1449
      %v1451 = vrot.slane %v1450, 1
      %v1452 = vadd.f32 %v1450, %v1451
      %v1453 = vadd.f32 %v383, %v399
      %v1454 = vrot.slane %v1453, 4
      %v1455 = vadd.f32 %v1453, %v1454
      %v1456 = vrot.slane %v1455, 2
      %v1457 = vadd.f32 %v1455, %v1456
      %v1458 = vrot.slane %v1457, 1
      %v1459 = vadd.f32 %v1457, %v1458
      %v1460 = vadd.f32 %v384, %v400
      %v1461 = vrot.slane %v1460, 4
      %v1462 = vadd.f32 %v1460, %v1461
      %v1463 = vrot.slane %v1462, 2
      %v1464 = vadd.f32 %v1462, %v1463
      %v1465 = vrot.slane %v1464, 1
      %v1466 = vadd.f32 %v1464, %v1465
      %v1467 = vadd.f32 %v385, %v401
      %v1468 = vrot.slane %v1467, 4
      %v1469 = vadd.f32 %v1467, %v1468
      %v1470 = vrot.slane %v1469, 2
      %v1471 = vadd.f32 %v1469, %v1470
      %v1472 = vrot.slane %v1471, 1
      %v1473 = vadd.f32 %v1471, %v1472
      %v1474 = vadd.f32 %v402, %v418
      %v1475 = vrot.slane %v1474, 4
      %v1476 = vadd.f32 %v1474, %v1475
      %v1477 = vrot.slane %v1476, 2
      %v1478 = vadd.f32 %v1476, %v1477
      %v1479 = vrot.slane %v1478, 1
      %v1480 = vadd.f32 %v1478, %v1479
      %v1481 = vadd.f32 %v403, %v419
      %v1482 = vrot.slane %v1481, 4
      %v1483 = vadd.f32 %v1481, %v1482
      %v1484 = vrot.slane %v1483, 2
      %v1485 = vadd.f32 %v1483, %v1484
      %v1486 = vrot.slane %v1485, 1
      %v1487 = vadd.f32 %v1485, %v1486
      %v1488 = vadd.f32 %v404, %v420
      %v1489 = vrot.slane %v1488, 4
      %v1490 = vadd.f32 %v1488, %v1489
      %v1491 = vrot.slane %v1490, 2
      %v1492 = vadd.f32 %v1490, %v1491
      %v1493 = vrot.slane %v1492, 1
      %v1494 = vadd.f32 %v1492, %v1493
      %v1495 = vadd.f32 %v405, %v421
      %v1496 = vrot.slane %v1495, 4
      %v1497 = vadd.f32 %v1495, %v1496
      %v1498 = vrot.slane %v1497, 2
      %v1499 = vadd.f32 %v1497, %v1498
      %v1500 = vrot.slane %v1499, 1
      %v1501 = vadd.f32 %v1499, %v1500
      %v1502 = vadd.f32 %v406, %v422
      %v1503 = vrot.slane %v1502, 4
      %v1504 = vadd.f32 %v1502, %v1503
      %v1505 = vrot.slane %v1504, 2
      %v1506 = vadd.f32 %v1504, %v1505
      %v1507 = vrot.slane %v1506, 1
      %v1508 = vadd.f32 %v1506, %v1507
      %v1509 = vadd.f32 %v407, %v423
      %v1510 = vrot.slane %v1509, 4
      %v1511 = vadd.f32 %v1509, %v1510
      %v1512 = vrot.slane %v1511, 2
      %v1513 = vadd.f32 %v1511, %v1512
      %v1514 = vrot.slane %v1513, 1
      %v1515 = vadd.f32 %v1513, %v1514
      %v1516 = vadd.f32 %v408, %v424
      %v1517 = vrot.slane %v1516, 4
      %v1518 = vadd.f32 %v1516, %v1517
      %v1519 = vrot.slane %v1518, 2
      %v1520 = vadd.f32 %v1518, %v1519
      %v1521 = vrot.slane %v1520, 1
      %v1522 = vadd.f32 %v1520, %v1521
      %v1523 = vadd.f32 %v409, %v425
      %v1524 = vrot.slane %v1523, 4
      %v1525 = vadd.f32 %v1523, %v1524
      %v1526 = vrot.slane %v1525, 2
      %v1527 = vadd.f32 %v1525, %v1526
      %v1528 = vrot.slane %v1527, 1
      %v1529 = vadd.f32 %v1527, %v1528
      %v1530 = vadd.f32 %v410, %v426
      %v1531 = vrot.slane %v1530, 4
      %v1532 = vadd.f32 %v1530, %v1531
      %v1533 = vrot.slane %v1532, 2
      %v1534 = vadd.f32 %v1532, %v1533
      %v1535 = vrot.slane %v1534, 1
      %v1536 = vadd.f32 %v1534, %v1535
      %v1537 = vadd.f32 %v411, %v427
      %v1538 = vrot.slane %v1537, 4
      %v1539 = vadd.f32 %v1537, %v1538
      %v1540 = vrot.slane %v1539, 2
      %v1541 = vadd.f32 %v1539, %v1540
      %v1542 = vrot.slane %v1541, 1
      %v1543 = vadd.f32 %v1541, %v1542
      %v1544 = vadd.f32 %v412, %v428
      %v1545 = vrot.slane %v1544, 4
      %v1546 = vadd.f32 %v1544, %v1545
      %v1547 = vrot.slane %v1546, 2
      %v1548 = vadd.f32 %v1546, %v1547
      %v1549 = vrot.slane %v1548, 1
      %v1550 = vadd.f32 %v1548, %v1549
      %v1551 = vadd.f32 %v413, %v429
      %v1552 = vrot.slane %v1551, 4
      %v1553 = vadd.f32 %v1551, %v1552
      %v1554 = vrot.slane %v1553, 2
      %v1555 = vadd.f32 %v1553, %v1554
      %v1556 = vrot.slane %v1555, 1
      %v1557 = vadd.f32 %v1555, %v1556
      %v1558 = vadd.f32 %v414, %v430
      %v1559 = vrot.slane %v1558, 4
      %v1560 = vadd.f32 %v1558, %v1559
      %v1561 = vrot.slane %v1560, 2
      %v1562 = vadd.f32 %v1560, %v1561
      %v1563 = vrot.slane %v1562, 1
      %v1564 = vadd.f32 %v1562, %v1563
      %v1565 = vadd.f32 %v415, %v431
      %v1566 = vrot.slane %v1565, 4
      %v1567 = vadd.f32 %v1565, %v1566
      %v1568 = vrot.slane %v1567, 2
      %v1569 = vadd.f32 %v1567, %v1568
      %v1570 = vrot.slane %v1569, 1
      %v1571 = vadd.f32 %v1569, %v1570
      %v1572 = vadd.f32 %v416, %v432
      %v1573 = vrot.slane %v1572, 4
      %v1574 = vadd.f32 %v1572, %v1573
      %v1575 = vrot.slane %v1574, 2
      %v1576 = vadd.f32 %v1574, %v1575
      %v1577 = vrot.slane %v1576, 1
      %v1578 = vadd.f32 %v1576, %v1577
      %v1579 = vadd.f32 %v417, %v433
      %v1580 = vrot.slane %v1579, 4
      %v1581 = vadd.f32 %v1579, %v1580
      %v1582 = vrot.slane %v1581, 2
      %v1583 = vadd.f32 %v1581, %v1582
      %v1584 = vrot.slane %v1583, 1
      %v1585 = vadd.f32 %v1583, %v1584
      %v1586 = vadd.f32 %v434, %v450
      %v1587 = vrot.slane %v1586, 4
      %v1588 = vadd.f32 %v1586, %v1587
      %v1589 = vrot.slane %v1588, 2
      %v1590 = vadd.f32 %v1588, %v1589
      %v1591 = vrot.slane %v1590, 1
      %v1592 = vadd.f32 %v1590, %v1591
      %v1593 = vadd.f32 %v435, %v451
      %v1594 = vrot.slane %v1593, 4
      %v1595 = vadd.f32 %v1593, %v1594
      %v1596 = vrot.slane %v1595, 2
      %v1597 = vadd.f32 %v1595, %v1596
      %v1598 = vrot.slane %v1597, 1
      %v1599 = vadd.f32 %v1597, %v1598
      %v1600 = vadd.f32 %v436, %v452
      %v1601 = vrot.slane %v1600, 4
      %v1602 = vadd.f32 %v1600, %v1601
      %v1603 = vrot.slane %v1602, 2
      %v1604 = vadd.f32 %v1602, %v1603
      %v1605 = vrot.slane %v1604, 1
      %v1606 = vadd.f32 %v1604, %v1605
      %v1607 = vadd.f32 %v437, %v453
      %v1608 = vrot.slane %v1607, 4
      %v1609 = vadd.f32 %v1607, %v1608
      %v1610 = vrot.slane %v1609, 2
      %v1611 = vadd.f32 %v1609, %v1610
      %v1612 = vrot.slane %v1611, 1
      %v1613 = vadd.f32 %v1611, %v1612
      %v1614 = vadd.f32 %v438, %v454
      %v1615 = vrot.slane %v1614, 4
      %v1616 = vadd.f32 %v1614, %v1615
      %v1617 = vrot.slane %v1616, 2
      %v1618 = vadd.f32 %v1616, %v1617
      %v1619 = vrot.slane %v1618, 1
      %v1620 = vadd.f32 %v1618, %v1619
      %v1621 = vadd.f32 %v439, %v455
      %v1622 = vrot.slane %v1621, 4
      %v1623 = vadd.f32 %v1621, %v1622
      %v1624 = vrot.slane %v1623, 2
      %v1625 = vadd.f32 %v1623, %v1624
      %v1626 = vrot.slane %v1625, 1
      %v1627 = vadd.f32 %v1625, %v1626
      %v1628 = vadd.f32 %v440, %v456
      %v1629 = vrot.slane %v1628, 4
      %v1630 = vadd.f32 %v1628, %v1629
      %v1631 = vrot.slane %v1630, 2
      %v1632 = vadd.f32 %v1630, %v1631
      %v1633 = vrot.slane %v1632, 1
      %v1634 = vadd.f32 %v1632, %v1633
      %v1635 = vadd.f32 %v441, %v457
      %v1636 = vrot.slane %v1635, 4
      %v1637 = vadd.f32 %v1635, %v1636
      %v1638 = vrot.slane %v1637, 2
      %v1639 = vadd.f32 %v1637, %v1638
      %v1640 = vrot.slane %v1639, 1
      %v1641 = vadd.f32 %v1639, %v1640
      %v1642 = vadd.f32 %v442, %v458
      %v1643 = vrot.slane %v1642, 4
      %v1644 = vadd.f32 %v1642, %v1643
      %v1645 = vrot.slane %v1644, 2
      %v1646 = vadd.f32 %v1644, %v1645
      %v1647 = vrot.slane %v1646, 1
      %v1648 = vadd.f32 %v1646, %v1647
      %v1649 = vadd.f32 %v443, %v459
      %v1650 = vrot.slane %v1649, 4
      %v1651 = vadd.f32 %v1649, %v1650
      %v1652 = vrot.slane %v1651, 2
      %v1653 = vadd.f32 %v1651, %v1652
      %v1654 = vrot.slane %v1653, 1
      %v1655 = vadd.f32 %v1653, %v1654
      %v1656 = vadd.f32 %v444, %v460
      %v1657 = vrot.slane %v1656, 4
      %v1658 = vadd.f32 %v1656, %v1657
      %v1659 = vrot.slane %v1658, 2
      %v1660 = vadd.f32 %v1658, %v1659
      %v1661 = vrot.slane %v1660, 1
      %v1662 = vadd.f32 %v1660, %v1661
      %v1663 = vadd.f32 %v445, %v461
      %v1664 = vrot.slane %v1663, 4
      %v1665 = vadd.f32 %v1663, %v1664
      %v1666 = vrot.slane %v1665, 2
      %v1667 = vadd.f32 %v1665, %v1666
      %v1668 = vrot.slane %v1667, 1
      %v1669 = vadd.f32 %v1667, %v1668
      %v1670 = vadd.f32 %v446, %v462
      %v1671 = vrot.slane %v1670, 4
      %v1672 = vadd.f32 %v1670, %v1671
      %v1673 = vrot.slane %v1672, 2
      %v1674 = vadd.f32 %v1672, %v1673
      %v1675 = vrot.slane %v1674, 1
      %v1676 = vadd.f32 %v1674, %v1675
      %v1677 = vadd.f32 %v447, %v463
      %v1678 = vrot.slane %v1677, 4
      %v1679 = vadd.f32 %v1677, %v1678
      %v1680 = vrot.slane %v1679, 2
      %v1681 = vadd.f32 %v1679, %v1680
      %v1682 = vrot.slane %v1681, 1
      %v1683 = vadd.f32 %v1681, %v1682
      %v1684 = vadd.f32 %v448, %v464
      %v1685 = vrot.slane %v1684, 4
      %v1686 = vadd.f32 %v1684, %v1685
      %v1687 = vrot.slane %v1686, 2
      %v1688 = vadd.f32 %v1686, %v1687
      %v1689 = vrot.slane %v1688, 1
      %v1690 = vadd.f32 %v1688, %v1689
      %v1691 = vadd.f32 %v449, %v465
      %v1692 = vrot.slane %v1691, 4
      %v1693 = vadd.f32 %v1691, %v1692
      %v1694 = vrot.slane %v1693, 2
      %v1695 = vadd.f32 %v1693, %v1694
      %v1696 = vrot.slane %v1695, 1
      %v1697 = vadd.f32 %v1695, %v1696
      %v1698 = vadd.f32 %v466, %v482
      %v1699 = vrot.slane %v1698, 4
      %v1700 = vadd.f32 %v1698, %v1699
      %v1701 = vrot.slane %v1700, 2
      %v1702 = vadd.f32 %v1700, %v1701
      %v1703 = vrot.slane %v1702, 1
      %v1704 = vadd.f32 %v1702, %v1703
      %v1705 = vadd.f32 %v467, %v483
      %v1706 = vrot.slane %v1705, 4
      %v1707 = vadd.f32 %v1705, %v1706
      %v1708 = vrot.slane %v1707, 2
      %v1709 = vadd.f32 %v1707, %v1708
      %v1710 = vrot.slane %v1709, 1
      %v1711 = vadd.f32 %v1709, %v1710
      %v1712 = vadd.f32 %v468, %v484
      %v1713 = vrot.slane %v1712, 4
      %v1714 = vadd.f32 %v1712, %v1713
      %v1715 = vrot.slane %v1714, 2
      %v1716 = vadd.f32 %v1714, %v1715
      %v1717 = vrot.slane %v1716, 1
      %v1718 = vadd.f32 %v1716, %v1717
      %v1719 = vadd.f32 %v469, %v485
      %v1720 = vrot.slane %v1719, 4
      %v1721 = vadd.f32 %v1719, %v1720
      %v1722 = vrot.slane %v1721, 2
      %v1723 = vadd.f32 %v1721, %v1722
      %v1724 = vrot.slane %v1723, 1
      %v1725 = vadd.f32 %v1723, %v1724
      %v1726 = vadd.f32 %v470, %v486
      %v1727 = vrot.slane %v1726, 4
      %v1728 = vadd.f32 %v1726, %v1727
      %v1729 = vrot.slane %v1728, 2
      %v1730 = vadd.f32 %v1728, %v1729
      %v1731 = vrot.slane %v1730, 1
      %v1732 = vadd.f32 %v1730, %v1731
      %v1733 = vadd.f32 %v471, %v487
      %v1734 = vrot.slane %v1733, 4
      %v1735 = vadd.f32 %v1733, %v1734
      %v1736 = vrot.slane %v1735, 2
      %v1737 = vadd.f32 %v1735, %v1736
      %v1738 = vrot.slane %v1737, 1
      %v1739 = vadd.f32 %v1737, %v1738
      %v1740 = vadd.f32 %v472, %v488
      %v1741 = vrot.slane %v1740, 4
      %v1742 = vadd.f32 %v1740, %v1741
      %v1743 = vrot.slane %v1742, 2
      %v1744 = vadd.f32 %v1742, %v1743
      %v1745 = vrot.slane %v1744, 1
      %v1746 = vadd.f32 %v1744, %v1745
      %v1747 = vadd.f32 %v473, %v489
      %v1748 = vrot.slane %v1747, 4
      %v1749 = vadd.f32 %v1747, %v1748
      %v1750 = vrot.slane %v1749, 2
      %v1751 = vadd.f32 %v1749, %v1750
      %v1752 = vrot.slane %v1751, 1
      %v1753 = vadd.f32 %v1751, %v1752
      %v1754 = vadd.f32 %v474, %v490
      %v1755 = vrot.slane %v1754, 4
      %v1756 = vadd.f32 %v1754, %v1755
      %v1757 = vrot.slane %v1756, 2
      %v1758 = vadd.f32 %v1756, %v1757
      %v1759 = vrot.slane %v1758, 1
      %v1760 = vadd.f32 %v1758, %v1759
      %v1761 = vadd.f32 %v475, %v491
      %v1762 = vrot.slane %v1761, 4
      %v1763 = vadd.f32 %v1761, %v1762
      %v1764 = vrot.slane %v1763, 2
      %v1765 = vadd.f32 %v1763, %v1764
      %v1766 = vrot.slane %v1765, 1
      %v1767 = vadd.f32 %v1765, %v1766
      %v1768 = vadd.f32 %v476, %v492
      %v1769 = vrot.slane %v1768, 4
      %v1770 = vadd.f32 %v1768, %v1769
      %v1771 = vrot.slane %v1770, 2
      %v1772 = vadd.f32 %v1770, %v1771
      %v1773 = vrot.slane %v1772, 1
      %v1774 = vadd.f32 %v1772, %v1773
      %v1775 = vadd.f32 %v477, %v493
      %v1776 = vrot.slane %v1775, 4
      %v1777 = vadd.f32 %v1775, %v1776
      %v1778 = vrot.slane %v1777, 2
      %v1779 = vadd.f32 %v1777, %v1778
      %v1780 = vrot.slane %v1779, 1
      %v1781 = vadd.f32 %v1779, %v1780
      %v1782 = vadd.f32 %v478, %v494
      %v1783 = vrot.slane %v1782, 4
      %v1784 = vadd.f32 %v1782, %v1783
      %v1785 = vrot.slane %v1784, 2
      %v1786 = vadd.f32 %v1784, %v1785
      %v1787 = vrot.slane %v1786, 1
      %v1788 = vadd.f32 %v1786, %v1787
      %v1789 = vadd.f32 %v479, %v495
      %v1790 = vrot.slane %v1789, 4
      %v1791 = vadd.f32 %v1789, %v1790
      %v1792 = vrot.slane %v1791, 2
      %v1793 = vadd.f32 %v1791, %v1792
      %v1794 = vrot.slane %v1793, 1
      %v1795 = vadd.f32 %v1793, %v1794
      %v1796 = vadd.f32 %v480, %v496
      %v1797 = vrot.slane %v1796, 4
      %v1798 = vadd.f32 %v1796, %v1797
      %v1799 = vrot.slane %v1798, 2
      %v1800 = vadd.f32 %v1798, %v1799
      %v1801 = vrot.slane %v1800, 1
      %v1802 = vadd.f32 %v1800, %v1801
      %v1803 = vadd.f32 %v481, %v497
      %v1804 = vrot.slane %v1803, 4
      %v1805 = vadd.f32 %v1803, %v1804
      %v1806 = vrot.slane %v1805, 2
      %v1807 = vadd.f32 %v1805, %v1806
      %v1808 = vrot.slane %v1807, 1
      %v1809 = vadd.f32 %v1807, %v1808
      %v1810 = vadd.f32 %v498, %v514
      %v1811 = vrot.slane %v1810, 4
      %v1812 = vadd.f32 %v1810, %v1811
      %v1813 = vrot.slane %v1812, 2
      %v1814 = vadd.f32 %v1812, %v1813
      %v1815 = vrot.slane %v1814, 1
      %v1816 = vadd.f32 %v1814, %v1815
      %v1817 = vadd.f32 %v499, %v515
      %v1818 = vrot.slane %v1817, 4
      %v1819 = vadd.f32 %v1817, %v1818
      %v1820 = vrot.slane %v1819, 2
      %v1821 = vadd.f32 %v1819, %v1820
      %v1822 = vrot.slane %v1821, 1
      %v1823 = vadd.f32 %v1821, %v1822
      %v1824 = vadd.f32 %v500, %v516
      %v1825 = vrot.slane %v1824, 4
      %v1826 = vadd.f32 %v1824, %v1825
      %v1827 = vrot.slane %v1826, 2
      %v1828 = vadd.f32 %v1826, %v1827
      %v1829 = vrot.slane %v1828, 1
      %v1830 = vadd.f32 %v1828, %v1829
      %v1831 = vadd.f32 %v501, %v517
      %v1832 = vrot.slane %v1831, 4
      %v1833 = vadd.f32 %v1831, %v1832
      %v1834 = vrot.slane %v1833, 2
      %v1835 = vadd.f32 %v1833, %v1834
      %v1836 = vrot.slane %v1835, 1
      %v1837 = vadd.f32 %v1835, %v1836
      %v1838 = vadd.f32 %v502, %v518
      %v1839 = vrot.slane %v1838, 4
      %v1840 = vadd.f32 %v1838, %v1839
      %v1841 = vrot.slane %v1840, 2
      %v1842 = vadd.f32 %v1840, %v1841
      %v1843 = vrot.slane %v1842, 1
      %v1844 = vadd.f32 %v1842, %v1843
      %v1845 = vadd.f32 %v503, %v519
      %v1846 = vrot.slane %v1845, 4
      %v1847 = vadd.f32 %v1845, %v1846
      %v1848 = vrot.slane %v1847, 2
      %v1849 = vadd.f32 %v1847, %v1848
      %v1850 = vrot.slane %v1849, 1
      %v1851 = vadd.f32 %v1849, %v1850
      %v1852 = vadd.f32 %v504, %v520
      %v1853 = vrot.slane %v1852, 4
      %v1854 = vadd.f32 %v1852, %v1853
      %v1855 = vrot.slane %v1854, 2
      %v1856 = vadd.f32 %v1854, %v1855
      %v1857 = vrot.slane %v1856, 1
      %v1858 = vadd.f32 %v1856, %v1857
      %v1859 = vadd.f32 %v505, %v521
      %v1860 = vrot.slane %v1859, 4
      %v1861 = vadd.f32 %v1859, %v1860
      %v1862 = vrot.slane %v1861, 2
      %v1863 = vadd.f32 %v1861, %v1862
      %v1864 = vrot.slane %v1863, 1
      %v1865 = vadd.f32 %v1863, %v1864
      %v1866 = vadd.f32 %v506, %v522
      %v1867 = vrot.slane %v1866, 4
      %v1868 = vadd.f32 %v1866, %v1867
      %v1869 = vrot.slane %v1868, 2
      %v1870 = vadd.f32 %v1868, %v1869
      %v1871 = vrot.slane %v1870, 1
      %v1872 = vadd.f32 %v1870, %v1871
      %v1873 = vadd.f32 %v507, %v523
      %v1874 = vrot.slane %v1873, 4
      %v1875 = vadd.f32 %v1873, %v1874
      %v1876 = vrot.slane %v1875, 2
      %v1877 = vadd.f32 %v1875, %v1876
      %v1878 = vrot.slane %v1877, 1
      %v1879 = vadd.f32 %v1877, %v1878
      %v1880 = vadd.f32 %v508, %v524
      %v1881 = vrot.slane %v1880, 4
      %v1882 = vadd.f32 %v1880, %v1881
      %v1883 = vrot.slane %v1882, 2
      %v1884 = vadd.f32 %v1882, %v1883
      %v1885 = vrot.slane %v1884, 1
      %v1886 = vadd.f32 %v1884, %v1885
      %v1887 = vadd.f32 %v509, %v525
      %v1888 = vrot.slane %v1887, 4
      %v1889 = vadd.f32 %v1887, %v1888
      %v1890 = vrot.slane %v1889, 2
      %v1891 = vadd.f32 %v1889, %v1890
      %v1892 = vrot.slane %v1891, 1
      %v1893 = vadd.f32 %v1891, %v1892
      %v1894 = vadd.f32 %v510, %v526
      %v1895 = vrot.slane %v1894, 4
      %v1896 = vadd.f32 %v1894, %v1895
      %v1897 = vrot.slane %v1896, 2
      %v1898 = vadd.f32 %v1896, %v1897
      %v1899 = vrot.slane %v1898, 1
      %v1900 = vadd.f32 %v1898, %v1899
      %v1901 = vadd.f32 %v511, %v527
      %v1902 = vrot.slane %v1901, 4
      %v1903 = vadd.f32 %v1901, %v1902
      %v1904 = vrot.slane %v1903, 2
      %v1905 = vadd.f32 %v1903, %v1904
      %v1906 = vrot.slane %v1905, 1
      %v1907 = vadd.f32 %v1905, %v1906
      %v1908 = vadd.f32 %v512, %v528
      %v1909 = vrot.slane %v1908, 4
      %v1910 = vadd.f32 %v1908, %v1909
      %v1911 = vrot.slane %v1910, 2
      %v1912 = vadd.f32 %v1910, %v1911
      %v1913 = vrot.slane %v1912, 1
      %v1914 = vadd.f32 %v1912, %v1913
      %v1915 = vadd.f32 %v513, %v529
      %v1916 = vrot.slane %v1915, 4
      %v1917 = vadd.f32 %v1915, %v1916
      %v1918 = vrot.slane %v1917, 2
      %v1919 = vadd.f32 %v1917, %v1918
      %v1920 = vrot.slane %v1919, 1
      %v1921 = vadd.f32 %v1919, %v1920
      %v1922 = vadd.f32 %v530, %v546
      %v1923 = vrot.slane %v1922, 4
      %v1924 = vadd.f32 %v1922, %v1923
      %v1925 = vrot.slane %v1924, 2
      %v1926 = vadd.f32 %v1924, %v1925
      %v1927 = vrot.slane %v1926, 1
      %v1928 = vadd.f32 %v1926, %v1927
      %v1929 = vadd.f32 %v531, %v547
      %v1930 = vrot.slane %v1929, 4
      %v1931 = vadd.f32 %v1929, %v1930
      %v1932 = vrot.slane %v1931, 2
      %v1933 = vadd.f32 %v1931, %v1932
      %v1934 = vrot.slane %v1933, 1
      %v1935 = vadd.f32 %v1933, %v1934
      %v1936 = vadd.f32 %v532, %v548
      %v1937 = vrot.slane %v1936, 4
      %v1938 = vadd.f32 %v1936, %v1937
      %v1939 = vrot.slane %v1938, 2
      %v1940 = vadd.f32 %v1938, %v1939
      %v1941 = vrot.slane %v1940, 1
      %v1942 = vadd.f32 %v1940, %v1941
      %v1943 = vadd.f32 %v533, %v549
      %v1944 = vrot.slane %v1943, 4
      %v1945 = vadd.f32 %v1943, %v1944
      %v1946 = vrot.slane %v1945, 2
      %v1947 = vadd.f32 %v1945, %v1946
      %v1948 = vrot.slane %v1947, 1
      %v1949 = vadd.f32 %v1947, %v1948
      %v1950 = vadd.f32 %v534, %v550
      %v1951 = vrot.slane %v1950, 4
      %v1952 = vadd.f32 %v1950, %v1951
      %v1953 = vrot.slane %v1952, 2
      %v1954 = vadd.f32 %v1952, %v1953
      %v1955 = vrot.slane %v1954, 1
      %v1956 = vadd.f32 %v1954, %v1955
      %v1957 = vadd.f32 %v535, %v551
      %v1958 = vrot.slane %v1957, 4
      %v1959 = vadd.f32 %v1957, %v1958
      %v1960 = vrot.slane %v1959, 2
      %v1961 = vadd.f32 %v1959, %v1960
      %v1962 = vrot.slane %v1961, 1
      %v1963 = vadd.f32 %v1961, %v1962
      %v1964 = vadd.f32 %v536, %v552
      %v1965 = vrot.slane %v1964, 4
      %v1966 = vadd.f32 %v1964, %v1965
      %v1967 = vrot.slane %v1966, 2
      %v1968 = vadd.f32 %v1966, %v1967
      %v1969 = vrot.slane %v1968, 1
      %v1970 = vadd.f32 %v1968, %v1969
      %v1971 = vadd.f32 %v537, %v553
      %v1972 = vrot.slane %v1971, 4
      %v1973 = vadd.f32 %v1971, %v1972
      %v1974 = vrot.slane %v1973, 2
      %v1975 = vadd.f32 %v1973, %v1974
      %v1976 = vrot.slane %v1975, 1
      %v1977 = vadd.f32 %v1975, %v1976
      %v1978 = vadd.f32 %v538, %v554
      %v1979 = vrot.slane %v1978, 4
      %v1980 = vadd.f32 %v1978, %v1979
      %v1981 = vrot.slane %v1980, 2
      %v1982 = vadd.f32 %v1980, %v1981
      %v1983 = vrot.slane %v1982, 1
      %v1984 = vadd.f32 %v1982, %v1983
      %v1985 = vadd.f32 %v539, %v555
      %v1986 = vrot.slane %v1985, 4
      %v1987 = vadd.f32 %v1985, %v1986
      %v1988 = vrot.slane %v1987, 2
      %v1989 = vadd.f32 %v1987, %v1988
      %v1990 = vrot.slane %v1989, 1
      %v1991 = vadd.f32 %v1989, %v1990
      %v1992 = vadd.f32 %v540, %v556
      %v1993 = vrot.slane %v1992, 4
      %v1994 = vadd.f32 %v1992, %v1993
      %v1995 = vrot.slane %v1994, 2
      %v1996 = vadd.f32 %v1994, %v1995
      %v1997 = vrot.slane %v1996, 1
      %v1998 = vadd.f32 %v1996, %v1997
      %v1999 = vadd.f32 %v541, %v557
      %v2000 = vrot.slane %v1999, 4
      %v2001 = vadd.f32 %v1999, %v2000
      %v2002 = vrot.slane %v2001, 2
      %v2003 = vadd.f32 %v2001, %v2002
      %v2004 = vrot.slane %v2003, 1
      %v2005 = vadd.f32 %v2003, %v2004
      %v2006 = vadd.f32 %v542, %v558
      %v2007 = vrot.slane %v2006, 4
      %v2008 = vadd.f32 %v2006, %v2007
      %v2009 = vrot.slane %v2008, 2
      %v2010 = vadd.f32 %v2008, %v2009
      %v2011 = vrot.slane %v2010, 1
      %v2012 = vadd.f32 %v2010, %v2011
      %v2013 = vadd.f32 %v543, %v559
      %v2014 = vrot.slane %v2013, 4
      %v2015 = vadd.f32 %v2013, %v2014
      %v2016 = vrot.slane %v2015, 2
      %v2017 = vadd.f32 %v2015, %v2016
      %v2018 = vrot.slane %v2017, 1
      %v2019 = vadd.f32 %v2017, %v2018
      %v2020 = vadd.f32 %v544, %v560
      %v2021 = vrot.slane %v2020, 4
      %v2022 = vadd.f32 %v2020, %v2021
      %v2023 = vrot.slane %v2022, 2
      %v2024 = vadd.f32 %v2022, %v2023
      %v2025 = vrot.slane %v2024, 1
      %v2026 = vadd.f32 %v2024, %v2025
      %v2027 = vadd.f32 %v545, %v561
      %v2028 = vrot.slane %v2027, 4
      %v2029 = vadd.f32 %v2027, %v2028
      %v2030 = vrot.slane %v2029, 2
      %v2031 = vadd.f32 %v2029, %v2030
      %v2032 = vrot.slane %v2031, 1
      %v2033 = vadd.f32 %v2031, %v2032
      %v2034 = vadd.f32 %v562, %v578
      %v2035 = vrot.slane %v2034, 4
      %v2036 = vadd.f32 %v2034, %v2035
      %v2037 = vrot.slane %v2036, 2
      %v2038 = vadd.f32 %v2036, %v2037
      %v2039 = vrot.slane %v2038, 1
      %v2040 = vadd.f32 %v2038, %v2039
      %v2041 = vadd.f32 %v563, %v579
      %v2042 = vrot.slane %v2041, 4
      %v2043 = vadd.f32 %v2041, %v2042
      %v2044 = vrot.slane %v2043, 2
      %v2045 = vadd.f32 %v2043, %v2044
      %v2046 = vrot.slane %v2045, 1
      %v2047 = vadd.f32 %v2045, %v2046
      %v2048 = vadd.f32 %v564, %v580
      %v2049 = vrot.slane %v2048, 4
      %v2050 = vadd.f32 %v2048, %v2049
      %v2051 = vrot.slane %v2050, 2
      %v2052 = vadd.f32 %v2050, %v2051
      %v2053 = vrot.slane %v2052, 1
      %v2054 = vadd.f32 %v2052, %v2053
      %v2055 = vadd.f32 %v565, %v581
      %v2056 = vrot.slane %v2055, 4
      %v2057 = vadd.f32 %v2055, %v2056
      %v2058 = vrot.slane %v2057, 2
      %v2059 = vadd.f32 %v2057, %v2058
      %v2060 = vrot.slane %v2059, 1
      %v2061 = vadd.f32 %v2059, %v2060
      %v2062 = vadd.f32 %v566, %v582
      %v2063 = vrot.slane %v2062, 4
      %v2064 = vadd.f32 %v2062, %v2063
      %v2065 = vrot.slane %v2064, 2
      %v2066 = vadd.f32 %v2064, %v2065
      %v2067 = vrot.slane %v2066, 1
      %v2068 = vadd.f32 %v2066, %v2067
      %v2069 = vadd.f32 %v567, %v583
      %v2070 = vrot.slane %v2069, 4
      %v2071 = vadd.f32 %v2069, %v2070
      %v2072 = vrot.slane %v2071, 2
      %v2073 = vadd.f32 %v2071, %v2072
      %v2074 = vrot.slane %v2073, 1
      %v2075 = vadd.f32 %v2073, %v2074
      %v2076 = vadd.f32 %v568, %v584
      %v2077 = vrot.slane %v2076, 4
      %v2078 = vadd.f32 %v2076, %v2077
      %v2079 = vrot.slane %v2078, 2
      %v2080 = vadd.f32 %v2078, %v2079
      %v2081 = vrot.slane %v2080, 1
      %v2082 = vadd.f32 %v2080, %v2081
      %v2083 = vadd.f32 %v569, %v585
      %v2084 = vrot.slane %v2083, 4
      %v2085 = vadd.f32 %v2083, %v2084
      %v2086 = vrot.slane %v2085, 2
      %v2087 = vadd.f32 %v2085, %v2086
      %v2088 = vrot.slane %v2087, 1
      %v2089 = vadd.f32 %v2087, %v2088
      %v2090 = vadd.f32 %v570, %v586
      %v2091 = vrot.slane %v2090, 4
      %v2092 = vadd.f32 %v2090, %v2091
      %v2093 = vrot.slane %v2092, 2
      %v2094 = vadd.f32 %v2092, %v2093
      %v2095 = vrot.slane %v2094, 1
      %v2096 = vadd.f32 %v2094, %v2095
      %v2097 = vadd.f32 %v571, %v587
      %v2098 = vrot.slane %v2097, 4
      %v2099 = vadd.f32 %v2097, %v2098
      %v2100 = vrot.slane %v2099, 2
      %v2101 = vadd.f32 %v2099, %v2100
      %v2102 = vrot.slane %v2101, 1
      %v2103 = vadd.f32 %v2101, %v2102
      %v2104 = vadd.f32 %v572, %v588
      %v2105 = vrot.slane %v2104, 4
      %v2106 = vadd.f32 %v2104, %v2105
      %v2107 = vrot.slane %v2106, 2
      %v2108 = vadd.f32 %v2106, %v2107
      %v2109 = vrot.slane %v2108, 1
      %v2110 = vadd.f32 %v2108, %v2109
      %v2111 = vadd.f32 %v573, %v589
      %v2112 = vrot.slane %v2111, 4
      %v2113 = vadd.f32 %v2111, %v2112
      %v2114 = vrot.slane %v2113, 2
      %v2115 = vadd.f32 %v2113, %v2114
      %v2116 = vrot.slane %v2115, 1
      %v2117 = vadd.f32 %v2115, %v2116
      %v2118 = vadd.f32 %v574, %v590
      %v2119 = vrot.slane %v2118, 4
      %v2120 = vadd.f32 %v2118, %v2119
      %v2121 = vrot.slane %v2120, 2
      %v2122 = vadd.f32 %v2120, %v2121
      %v2123 = vrot.slane %v2122, 1
      %v2124 = vadd.f32 %v2122, %v2123
      %v2125 = vadd.f32 %v575, %v591
      %v2126 = vrot.slane %v2125, 4
      %v2127 = vadd.f32 %v2125, %v2126
      %v2128 = vrot.slane %v2127, 2
      %v2129 = vadd.f32 %v2127, %v2128
      %v2130 = vrot.slane %v2129, 1
      %v2131 = vadd.f32 %v2129, %v2130
      %v2132 = vadd.f32 %v576, %v592
      %v2133 = vrot.slane %v2132, 4
      %v2134 = vadd.f32 %v2132, %v2133
      %v2135 = vrot.slane %v2134, 2
      %v2136 = vadd.f32 %v2134, %v2135
      %v2137 = vrot.slane %v2136, 1
      %v2138 = vadd.f32 %v2136, %v2137
      %v2139 = vadd.f32 %v577, %v593
      %v2140 = vrot.slane %v2139, 4
      %v2141 = vadd.f32 %v2139, %v2140
      %v2142 = vrot.slane %v2141, 2
      %v2143 = vadd.f32 %v2141, %v2142
      %v2144 = vrot.slane %v2143, 1
      %v2145 = vadd.f32 %v2143, %v2144
      %v2146 = vadd.f32 %v594, %v610
      %v2147 = vrot.slane %v2146, 4
      %v2148 = vadd.f32 %v2146, %v2147
      %v2149 = vrot.slane %v2148, 2
      %v2150 = vadd.f32 %v2148, %v2149
      %v2151 = vrot.slane %v2150, 1
      %v2152 = vadd.f32 %v2150, %v2151
      %v2153 = vadd.f32 %v595, %v611
      %v2154 = vrot.slane %v2153, 4
      %v2155 = vadd.f32 %v2153, %v2154
      %v2156 = vrot.slane %v2155, 2
      %v2157 = vadd.f32 %v2155, %v2156
      %v2158 = vrot.slane %v2157, 1
      %v2159 = vadd.f32 %v2157, %v2158
      %v2160 = vadd.f32 %v596, %v612
      %v2161 = vrot.slane %v2160, 4
      %v2162 = vadd.f32 %v2160, %v2161
      %v2163 = vrot.slane %v2162, 2
      %v2164 = vadd.f32 %v2162, %v2163
      %v2165 = vrot.slane %v2164, 1
      %v2166 = vadd.f32 %v2164, %v2165
      %v2167 = vadd.f32 %v597, %v613
      %v2168 = vrot.slane %v2167, 4
      %v2169 = vadd.f32 %v2167, %v2168
      %v2170 = vrot.slane %v2169, 2
      %v2171 = vadd.f32 %v2169, %v2170
      %v2172 = vrot.slane %v2171, 1
      %v2173 = vadd.f32 %v2171, %v2172
      %v2174 = vadd.f32 %v598, %v614
      %v2175 = vrot.slane %v2174, 4
      %v2176 = vadd.f32 %v2174, %v2175
      %v2177 = vrot.slane %v2176, 2
      %v2178 = vadd.f32 %v2176, %v2177
      %v2179 = vrot.slane %v2178, 1
      %v2180 = vadd.f32 %v2178, %v2179
      %v2181 = vadd.f32 %v599, %v615
      %v2182 = vrot.slane %v2181, 4
      %v2183 = vadd.f32 %v2181, %v2182
      %v2184 = vrot.slane %v2183, 2
      %v2185 = vadd.f32 %v2183, %v2184
      %v2186 = vrot.slane %v2185, 1
      %v2187 = vadd.f32 %v2185, %v2186
      %v2188 = vadd.f32 %v600, %v616
      %v2189 = vrot.slane %v2188, 4
      %v2190 = vadd.f32 %v2188, %v2189
      %v2191 = vrot.slane %v2190, 2
      %v2192 = vadd.f32 %v2190, %v2191
      %v2193 = vrot.slane %v2192, 1
      %v2194 = vadd.f32 %v2192, %v2193
      %v2195 = vadd.f32 %v601, %v617
      %v2196 = vrot.slane %v2195, 4
      %v2197 = vadd.f32 %v2195, %v2196
      %v2198 = vrot.slane %v2197, 2
      %v2199 = vadd.f32 %v2197, %v2198
      %v2200 = vrot.slane %v2199, 1
      %v2201 = vadd.f32 %v2199, %v2200
      %v2202 = vadd.f32 %v602, %v618
      %v2203 = vrot.slane %v2202, 4
      %v2204 = vadd.f32 %v2202, %v2203
      %v2205 = vrot.slane %v2204, 2
      %v2206 = vadd.f32 %v2204, %v2205
      %v2207 = vrot.slane %v2206, 1
      %v2208 = vadd.f32 %v2206, %v2207
      %v2209 = vadd.f32 %v603, %v619
      %v2210 = vrot.slane %v2209, 4
      %v2211 = vadd.f32 %v2209, %v2210
      %v2212 = vrot.slane %v2211, 2
      %v2213 = vadd.f32 %v2211, %v2212
      %v2214 = vrot.slane %v2213, 1
      %v2215 = vadd.f32 %v2213, %v2214
      %v2216 = vadd.f32 %v604, %v620
      %v2217 = vrot.slane %v2216, 4
      %v2218 = vadd.f32 %v2216, %v2217
      %v2219 = vrot.slane %v2218, 2
      %v2220 = vadd.f32 %v2218, %v2219
      %v2221 = vrot.slane %v2220, 1
      %v2222 = vadd.f32 %v2220, %v2221
      %v2223 = vadd.f32 %v605, %v621
      %v2224 = vrot.slane %v2223, 4
      %v2225 = vadd.f32 %v2223, %v2224
      %v2226 = vrot.slane %v2225, 2
      %v2227 = vadd.f32 %v2225, %v2226
      %v2228 = vrot.slane %v2227, 1
      %v2229 = vadd.f32 %v2227, %v2228
      %v2230 = vadd.f32 %v606, %v622
      %v2231 = vrot.slane %v2230, 4
      %v2232 = vadd.f32 %v2230, %v2231
      %v2233 = vrot.slane %v2232, 2
      %v2234 = vadd.f32 %v2232, %v2233
      %v2235 = vrot.slane %v2234, 1
      %v2236 = vadd.f32 %v2234, %v2235
      %v2237 = vadd.f32 %v607, %v623
      %v2238 = vrot.slane %v2237, 4
      %v2239 = vadd.f32 %v2237, %v2238
      %v2240 = vrot.slane %v2239, 2
      %v2241 = vadd.f32 %v2239, %v2240
      %v2242 = vrot.slane %v2241, 1
      %v2243 = vadd.f32 %v2241, %v2242
      %v2244 = vadd.f32 %v608, %v624
      %v2245 = vrot.slane %v2244, 4
      %v2246 = vadd.f32 %v2244, %v2245
      %v2247 = vrot.slane %v2246, 2
      %v2248 = vadd.f32 %v2246, %v2247
      %v2249 = vrot.slane %v2248, 1
      %v2250 = vadd.f32 %v2248, %v2249
      %v2251 = vadd.f32 %v609, %v625
      %v2252 = vrot.slane %v2251, 4
      %v2253 = vadd.f32 %v2251, %v2252
      %v2254 = vrot.slane %v2253, 2
      %v2255 = vadd.f32 %v2253, %v2254
      %v2256 = vrot.slane %v2255, 1
      %v2257 = vadd.f32 %v2255, %v2256
      %v2258 = vadd.f32 %v626, %v642
      %v2259 = vrot.slane %v2258, 4
      %v2260 = vadd.f32 %v2258, %v2259
      %v2261 = vrot.slane %v2260, 2
      %v2262 = vadd.f32 %v2260, %v2261
      %v2263 = vrot.slane %v2262, 1
      %v2264 = vadd.f32 %v2262, %v2263
      %v2265 = vadd.f32 %v627, %v643
      %v2266 = vrot.slane %v2265, 4
      %v2267 = vadd.f32 %v2265, %v2266
      %v2268 = vrot.slane %v2267, 2
      %v2269 = vadd.f32 %v2267, %v2268
      %v2270 = vrot.slane %v2269, 1
      %v2271 = vadd.f32 %v2269, %v2270
      %v2272 = vadd.f32 %v628, %v644
      %v2273 = vrot.slane %v2272, 4
      %v2274 = vadd.f32 %v2272, %v2273
      %v2275 = vrot.slane %v2274, 2
      %v2276 = vadd.f32 %v2274, %v2275
      %v2277 = vrot.slane %v2276, 1
      %v2278 = vadd.f32 %v2276, %v2277
      %v2279 = vadd.f32 %v629, %v645
      %v2280 = vrot.slane %v2279, 4
      %v2281 = vadd.f32 %v2279, %v2280
      %v2282 = vrot.slane %v2281, 2
      %v2283 = vadd.f32 %v2281, %v2282
      %v2284 = vrot.slane %v2283, 1
      %v2285 = vadd.f32 %v2283, %v2284
      %v2286 = vadd.f32 %v630, %v646
      %v2287 = vrot.slane %v2286, 4
      %v2288 = vadd.f32 %v2286, %v2287
      %v2289 = vrot.slane %v2288, 2
      %v2290 = vadd.f32 %v2288, %v2289
      %v2291 = vrot.slane %v2290, 1
      %v2292 = vadd.f32 %v2290, %v2291
      %v2293 = vadd.f32 %v631, %v647
      %v2294 = vrot.slane %v2293, 4
      %v2295 = vadd.f32 %v2293, %v2294
      %v2296 = vrot.slane %v2295, 2
      %v2297 = vadd.f32 %v2295, %v2296
      %v2298 = vrot.slane %v2297, 1
      %v2299 = vadd.f32 %v2297, %v2298
      %v2300 = vadd.f32 %v632, %v648
      %v2301 = vrot.slane %v2300, 4
      %v2302 = vadd.f32 %v2300, %v2301
      %v2303 = vrot.slane %v2302, 2
      %v2304 = vadd.f32 %v2302, %v2303
      %v2305 = vrot.slane %v2304, 1
      %v2306 = vadd.f32 %v2304, %v2305
      %v2307 = vadd.f32 %v633, %v649
      %v2308 = vrot.slane %v2307, 4
      %v2309 = vadd.f32 %v2307, %v2308
      %v2310 = vrot.slane %v2309, 2
      %v2311 = vadd.f32 %v2309, %v2310
      %v2312 = vrot.slane %v2311, 1
      %v2313 = vadd.f32 %v2311, %v2312
      %v2314 = vadd.f32 %v634, %v650
      %v2315 = vrot.slane %v2314, 4
      %v2316 = vadd.f32 %v2314, %v2315
      %v2317 = vrot.slane %v2316, 2
      %v2318 = vadd.f32 %v2316, %v2317
      %v2319 = vrot.slane %v2318, 1
      %v2320 = vadd.f32 %v2318, %v2319
      %v2321 = vadd.f32 %v635, %v651
      %v2322 = vrot.slane %v2321, 4
      %v2323 = vadd.f32 %v2321, %v2322
      %v2324 = vrot.slane %v2323, 2
      %v2325 = vadd.f32 %v2323, %v2324
      %v2326 = vrot.slane %v2325, 1
      %v2327 = vadd.f32 %v2325, %v2326
      %v2328 = vadd.f32 %v636, %v652
      %v2329 = vrot.slane %v2328, 4
      %v2330 = vadd.f32 %v2328, %v2329
      %v2331 = vrot.slane %v2330, 2
      %v2332 = vadd.f32 %v2330, %v2331
      %v2333 = vrot.slane %v2332, 1
      %v2334 = vadd.f32 %v2332, %v2333
      %v2335 = vadd.f32 %v637, %v653
      %v2336 = vrot.slane %v2335, 4
      %v2337 = vadd.f32 %v2335, %v2336
      %v2338 = vrot.slane %v2337, 2
      %v2339 = vadd.f32 %v2337, %v2338
      %v2340 = vrot.slane %v2339, 1
      %v2341 = vadd.f32 %v2339, %v2340
      %v2342 = vadd.f32 %v638, %v654
      %v2343 = vrot.slane %v2342, 4
      %v2344 = vadd.f32 %v2342, %v2343
      %v2345 = vrot.slane %v2344, 2
      %v2346 = vadd.f32 %v2344, %v2345
      %v2347 = vrot.slane %v2346, 1
      %v2348 = vadd.f32 %v2346, %v2347
      %v2349 = vadd.f32 %v639, %v655
      %v2350 = vrot.slane %v2349, 4
      %v2351 = vadd.f32 %v2349, %v2350
      %v2352 = vrot.slane %v2351, 2
      %v2353 = vadd.f32 %v2351, %v2352
      %v2354 = vrot.slane %v2353, 1
      %v2355 = vadd.f32 %v2353, %v2354
      %v2356 = vadd.f32 %v640, %v656
      %v2357 = vrot.slane %v2356, 4
      %v2358 = vadd.f32 %v2356, %v2357
      %v2359 = vrot.slane %v2358, 2
      %v2360 = vadd.f32 %v2358, %v2359
      %v2361 = vrot.slane %v2360, 1
      %v2362 = vadd.f32 %v2360, %v2361
      %v2363 = vadd.f32 %v641, %v657
      %v2364 = vrot.slane %v2363, 4
      %v2365 = vadd.f32 %v2363, %v2364
      %v2366 = vrot.slane %v2365, 2
      %v2367 = vadd.f32 %v2365, %v2366
      %v2368 = vrot.slane %v2367, 1
      %v2369 = vadd.f32 %v2367, %v2368
      %v2370 = vadd.f32 %v658, %v674
      %v2371 = vrot.slane %v2370, 4
      %v2372 = vadd.f32 %v2370, %v2371
      %v2373 = vrot.slane %v2372, 2
      %v2374 = vadd.f32 %v2372, %v2373
      %v2375 = vrot.slane %v2374, 1
      %v2376 = vadd.f32 %v2374, %v2375
      %v2377 = vadd.f32 %v659, %v675
      %v2378 = vrot.slane %v2377, 4
      %v2379 = vadd.f32 %v2377, %v2378
      %v2380 = vrot.slane %v2379, 2
      %v2381 = vadd.f32 %v2379, %v2380
      %v2382 = vrot.slane %v2381, 1
      %v2383 = vadd.f32 %v2381, %v2382
      %v2384 = vadd.f32 %v660, %v676
      %v2385 = vrot.slane %v2384, 4
      %v2386 = vadd.f32 %v2384, %v2385
      %v2387 = vrot.slane %v2386, 2
      %v2388 = vadd.f32 %v2386, %v2387
      %v2389 = vrot.slane %v2388, 1
      %v2390 = vadd.f32 %v2388, %v2389
      %v2391 = vadd.f32 %v661, %v677
      %v2392 = vrot.slane %v2391, 4
      %v2393 = vadd.f32 %v2391, %v2392
      %v2394 = vrot.slane %v2393, 2
      %v2395 = vadd.f32 %v2393, %v2394
      %v2396 = vrot.slane %v2395, 1
      %v2397 = vadd.f32 %v2395, %v2396
      %v2398 = vadd.f32 %v662, %v678
      %v2399 = vrot.slane %v2398, 4
      %v2400 = vadd.f32 %v2398, %v2399
      %v2401 = vrot.slane %v2400, 2
      %v2402 = vadd.f32 %v2400, %v2401
      %v2403 = vrot.slane %v2402, 1
      %v2404 = vadd.f32 %v2402, %v2403
      %v2405 = vadd.f32 %v663, %v679
      %v2406 = vrot.slane %v2405, 4
      %v2407 = vadd.f32 %v2405, %v2406
      %v2408 = vrot.slane %v2407, 2
      %v2409 = vadd.f32 %v2407, %v2408
      %v2410 = vrot.slane %v2409, 1
      %v2411 = vadd.f32 %v2409, %v2410
      %v2412 = vadd.f32 %v664, %v680
      %v2413 = vrot.slane %v2412, 4
      %v2414 = vadd.f32 %v2412, %v2413
      %v2415 = vrot.slane %v2414, 2
      %v2416 = vadd.f32 %v2414, %v2415
      %v2417 = vrot.slane %v2416, 1
      %v2418 = vadd.f32 %v2416, %v2417
      %v2419 = vadd.f32 %v665, %v681
      %v2420 = vrot.slane %v2419, 4
      %v2421 = vadd.f32 %v2419, %v2420
      %v2422 = vrot.slane %v2421, 2
      %v2423 = vadd.f32 %v2421, %v2422
      %v2424 = vrot.slane %v2423, 1
      %v2425 = vadd.f32 %v2423, %v2424
      %v2426 = vadd.f32 %v666, %v682
      %v2427 = vrot.slane %v2426, 4
      %v2428 = vadd.f32 %v2426, %v2427
      %v2429 = vrot.slane %v2428, 2
      %v2430 = vadd.f32 %v2428, %v2429
      %v2431 = vrot.slane %v2430, 1
      %v2432 = vadd.f32 %v2430, %v2431
      %v2433 = vadd.f32 %v667, %v683
      %v2434 = vrot.slane %v2433, 4
      %v2435 = vadd.f32 %v2433, %v2434
      %v2436 = vrot.slane %v2435, 2
      %v2437 = vadd.f32 %v2435, %v2436
      %v2438 = vrot.slane %v2437, 1
      %v2439 = vadd.f32 %v2437, %v2438
      %v2440 = vadd.f32 %v668, %v684
      %v2441 = vrot.slane %v2440, 4
      %v2442 = vadd.f32 %v2440, %v2441
      %v2443 = vrot.slane %v2442, 2
      %v2444 = vadd.f32 %v2442, %v2443
      %v2445 = vrot.slane %v2444, 1
      %v2446 = vadd.f32 %v2444, %v2445
      %v2447 = vadd.f32 %v669, %v685
      %v2448 = vrot.slane %v2447, 4
      %v2449 = vadd.f32 %v2447, %v2448
      %v2450 = vrot.slane %v2449, 2
      %v2451 = vadd.f32 %v2449, %v2450
      %v2452 = vrot.slane %v2451, 1
      %v2453 = vadd.f32 %v2451, %v2452
      %v2454 = vadd.f32 %v670, %v686
      %v2455 = vrot.slane %v2454, 4
      %v2456 = vadd.f32 %v2454, %v2455
      %v2457 = vrot.slane %v2456, 2
      %v2458 = vadd.f32 %v2456, %v2457
      %v2459 = vrot.slane %v2458, 1
      %v2460 = vadd.f32 %v2458, %v2459
      %v2461 = vadd.f32 %v671, %v687
      %v2462 = vrot.slane %v2461, 4
      %v2463 = vadd.f32 %v2461, %v2462
      %v2464 = vrot.slane %v2463, 2
      %v2465 = vadd.f32 %v2463, %v2464
      %v2466 = vrot.slane %v2465, 1
      %v2467 = vadd.f32 %v2465, %v2466
      %v2468 = vadd.f32 %v672, %v688
      %v2469 = vrot.slane %v2468, 4
      %v2470 = vadd.f32 %v2468, %v2469
      %v2471 = vrot.slane %v2470, 2
      %v2472 = vadd.f32 %v2470, %v2471
      %v2473 = vrot.slane %v2472, 1
      %v2474 = vadd.f32 %v2472, %v2473
      %v2475 = vadd.f32 %v673, %v689
      %v2476 = vrot.slane %v2475, 4
      %v2477 = vadd.f32 %v2475, %v2476
      %v2478 = vrot.slane %v2477, 2
      %v2479 = vadd.f32 %v2477, %v2478
      %v2480 = vrot.slane %v2479, 1
      %v2481 = vadd.f32 %v2479, %v2480
      %v2482 = vmul.f32 %v696, 0.0625
      %v2483 = vmul.f32 %v703, 0.0625
      %v2484 = vmul.f32 %v710, 0.0625
      %v2485 = vmul.f32 %v717, 0.0625
      %v2486 = vmul.f32 %v724, 0.0625
      %v2487 = vmul.f32 %v731, 0.0625
      %v2488 = vmul.f32 %v738, 0.0625
      %v2489 = vmul.f32 %v745, 0.0625
      %v2490 = vmul.f32 %v752, 0.0625
      %v2491 = vmul.f32 %v759, 0.0625
      %v2492 = vmul.f32 %v766, 0.0625
      %v2493 = vmul.f32 %v773, 0.0625
      %v2494 = vmul.f32 %v780, 0.0625
      %v2495 = vmul.f32 %v787, 0.0625
      %v2496 = vmul.f32 %v794, 0.0625
      %v2497 = vmul.f32 %v801, 0.0625
      %v2498 = vmul.f32 %v808, 0.0625
      %v2499 = vmul.f32 %v815, 0.0625
      %v2500 = vmul.f32 %v822, 0.0625
      %v2501 = vmul.f32 %v829, 0.0625
      %v2502 = vmul.f32 %v836, 0.0625
      %v2503 = vmul.f32 %v843, 0.0625
      %v2504 = vmul.f32 %v850, 0.0625
      %v2505 = vmul.f32 %v857, 0.0625
      %v2506 = vmul.f32 %v864, 0.0625
      %v2507 = vmul.f32 %v871, 0.0625
      %v2508 = vmul.f32 %v878, 0.0625
      %v2509 = vmul.f32 %v885, 0.0625
      %v2510 = vmul.f32 %v892, 0.0625
      %v2511 = vmul.f32 %v899, 0.0625
      %v2512 = vmul.f32 %v906, 0.0625
      %v2513 = vmul.f32 %v913, 0.0625
      %v2514 = vmul.f32 %v920, 0.0625
      %v2515 = vmul.f32 %v927, 0.0625
      %v2516 = vmul.f32 %v934, 0.0625
      %v2517 = vmul.f32 %v941, 0.0625
      %v2518 = vmul.f32 %v948, 0.0625
      %v2519 = vmul.f32 %v955, 0.0625
      %v2520 = vmul.f32 %v962, 0.0625
      %v2521 = vmul.f32 %v969, 0.0625
      %v2522 = vmul.f32 %v976, 0.0625
      %v2523 = vmul.f32 %v983, 0.0625
      %v2524 = vmul.f32 %v990, 0.0625
      %v2525 = vmul.f32 %v997, 0.0625
      %v2526 = vmul.f32 %v1004, 0.0625
      %v2527 = vmul.f32 %v1011, 0.0625
      %v2528 = vmul.f32 %v1018, 0.0625
      %v2529 = vmul.f32 %v1025, 0.0625
      %v2530 = vmul.f32 %v1032, 0.0625
      %v2531 = vmul.f32 %v1039, 0.0625
      %v2532 = vmul.f32 %v1046, 0.0625
      %v2533 = vmul.f32 %v1053, 0.0625
      %v2534 = vmul.f32 %v1060, 0.0625
      %v2535 = vmul.f32 %v1067, 0.0625
      %v2536 = vmul.f32 %v1074, 0.0625
      %v2537 = vmul.f32 %v1081, 0.0625
      %v2538 = vmul.f32 %v1088, 0.0625
      %v2539 = vmul.f32 %v1095, 0.0625
      %v2540 = vmul.f32 %v1102, 0.0625
      %v2541 = vmul.f32 %v1109, 0.0625
      %v2542 = vmul.f32 %v1116, 0.0625
      %v2543 = vmul.f32 %v1123, 0.0625
      %v2544 = vmul.f32 %v1130, 0.0625
      %v2545 = vmul.f32 %v1137, 0.0625
      %v2546 = vmul.f32 %v1144, 0.0625
      %v2547 = vmul.f32 %v1151, 0.0625
      %v2548 = vmul.f32 %v1158, 0.0625
      %v2549 = vmul.f32 %v1165, 0.0625
      %v2550 = vmul.f32 %v1172, 0.0625
      %v2551 = vmul.f32 %v1179, 0.0625
      %v2552 = vmul.f32 %v1186, 0.0625
      %v2553 = vmul.f32 %v1193, 0.0625
      %v2554 = vmul.f32 %v1200, 0.0625
      %v2555 = vmul.f32 %v1207, 0.0625
      %v2556 = vmul.f32 %v1214, 0.0625
      %v2557 = vmul.f32 %v1221, 0.0625
      %v2558 = vmul.f32 %v1228, 0.0625
      %v2559 = vmul.f32 %v1235, 0.0625
      %v2560 = vmul.f32 %v1242, 0.0625
      %v2561 = vmul.f32 %v1249, 0.0625
      %v2562 = vmul.f32 %v1256, 0.0625
      %v2563 = vmul.f32 %v1263, 0.0625
      %v2564 = vmul.f32 %v1270, 0.0625
      %v2565 = vmul.f32 %v1277, 0.0625
      %v2566 = vmul.f32 %v1284, 0.0625
      %v2567 = vmul.f32 %v1291, 0.0625
      %v2568 = vmul.f32 %v1298, 0.0625
      %v2569 = vmul.f32 %v1305, 0.0625
      %v2570 = vmul.f32 %v1312, 0.0625
      %v2571 = vmul.f32 %v1319, 0.0625
      %v2572 = vmul.f32 %v1326, 0.0625
      %v2573 = vmul.f32 %v1333, 0.0625
      %v2574 = vmul.f32 %v1340, 0.0625
      %v2575 = vmul.f32 %v1347, 0.0625
      %v2576 = vmul.f32 %v1354, 0.0625
      %v2577 = vmul.f32 %v1361, 0.0625
      %v2578 = vmul.f32 %v1368, 0.0625
      %v2579 = vmul.f32 %v1375, 0.0625
      %v2580 = vmul.f32 %v1382, 0.0625
      %v2581 = vmul.f32 %v1389, 0.0625
      %v2582 = vmul.f32 %v1396, 0.0625
      %v2583 = vmul.f32 %v1403, 0.0625
      %v2584 = vmul.f32 %v1410, 0.0625
      %v2585 = vmul.f32 %v1417, 0.0625
      %v2586 = vmul.f32 %v1424, 0.0625
      %v2587 = vmul.f32 %v1431, 0.0625
      %v2588 = vmul.f32 %v1438, 0.0625
      %v2589 = vmul.f32 %v1445, 0.0625
      %v2590 = vmul.f32 %v1452, 0.0625
      %v2591 = vmul.f32 %v1459, 0.0625
      %v2592 = vmul.f32 %v1466, 0.0625
      %v2593 = vmul.f32 %v1473, 0.0625
      %v2594 = vmul.f32 %v1480, 0.0625
      %v2595 = vmul.f32 %v1487, 0.0625
      %v2596 = vmul.f32 %v1494, 0.0625
      %v2597 = vmul.f32 %v1501, 0.0625
      %v2598 = vmul.f32 %v1508, 0.0625
      %v2599 = vmul.f32 %v1515, 0.0625
      %v2600 = vmul.f32 %v1522, 0.0625
      %v2601 = vmul.f32 %v1529, 0.0625
      %v2602 = vmul.f32 %v1536, 0.0625
      %v2603 = vmul.f32 %v1543, 0.0625
      %v2604 = vmul.f32 %v1550, 0.0625
      %v2605 = vmul.f32 %v1557, 0.0625
      %v2606 = vmul.f32 %v1564, 0.0625
      %v2607 = vmul.f32 %v1571, 0.0625
      %v2608 = vmul.f32 %v1578, 0.0625
      %v2609 = vmul.f32 %v1585, 0.0625
      %v2610 = vmul.f32 %v1592, 0.0625
      %v2611 = vmul.f32 %v1599, 0.0625
      %v2612 = vmul.f32 %v1606, 0.0625
      %v2613 = vmul.f32 %v1613, 0.0625
      %v2614 = vmul.f32 %v1620, 0.0625
      %v2615 = vmul.f32 %v1627, 0.0625
      %v2616 = vmul.f32 %v1634, 0.0625
      %v2617 = vmul.f32 %v1641, 0.0625
      %v2618 = vmul.f32 %v1648, 0.0625
      %v2619 = vmul.f32 %v1655, 0.0625
      %v2620 = vmul.f32 %v1662, 0.0625
      %v2621 = vmul.f32 %v1669, 0.0625
      %v2622 = vmul.f32 %v1676, 0.0625
      %v2623 = vmul.f32 %v1683, 0.0625
      %v2624 = vmul.f32 %v1690, 0.0625
      %v2625 = vmul.f32 %v1697, 0.0625
      %v2626 = vmul.f32 %v1704, 0.0625
      %v2627 = vmul.f32 %v1711, 0.0625
      %v2628 = vmul.f32 %v1718, 0.0625
      %v2629 = vmul.f32 %v1725, 0.0625
      %v2630 = vmul.f32 %v1732, 0.0625
      %v2631 = vmul.f32 %v1739, 0.0625
      %v2632 = vmul.f32 %v1746, 0.0625
      %v2633 = vmul.f32 %v1753, 0.0625
      %v2634 = vmul.f32 %v1760, 0.0625
      %v2635 = vmul.f32 %v1767, 0.0625
      %v2636 = vmul.f32 %v1774, 0.0625
      %v2637 = vmul.f32 %v1781, 0.0625
      %v2638 = vmul.f32 %v1788, 0.0625
      %v2639 = vmul.f32 %v1795, 0.0625
      %v2640 = vmul.f32 %v1802, 0.0625
      %v2641 = vmul.f32 %v1809, 0.0625
      %v2642 = vmul.f32 %v1816, 0.0625
      %v2643 = vmul.f32 %v1823, 0.0625
      %v2644 = vmul.f32 %v1830, 0.0625
      %v2645 = vmul.f32 %v1837, 0.0625
      %v2646 = vmul.f32 %v1844, 0.0625
      %v2647 = vmul.f32 %v1851, 0.0625
      %v2648 = vmul.f32 %v1858, 0.0625
      %v2649 = vmul.f32 %v1865, 0.0625
      %v2650 = vmul.f32 %v1872, 0.0625
      %v2651 = vmul.f32 %v1879, 0.0625
      %v2652 = vmul.f32 %v1886, 0.0625
      %v2653 = vmul.f32 %v1893, 0.0625
      %v2654 = vmul.f32 %v1900, 0.0625
      %v2655 = vmul.f32 %v1907, 0.0625
      %v2656 = vmul.f32 %v1914, 0.0625
      %v2657 = vmul.f32 %v1921, 0.0625
      %v2658 = vmul.f32 %v1928, 0.0625
      %v2659 = vmul.f32 %v1935, 0.0625
      %v2660 = vmul.f32 %v1942, 0.0625
      %v2661 = vmul.f32 %v1949, 0.0625
      %v2662 = vmul.f32 %v1956, 0.0625
      %v2663 = vmul.f32 %v1963, 0.0625
      %v2664 = vmul.f32 %v1970, 0.0625
      %v2665 = vmul.f32 %v1977, 0.0625
      %v2666 = vmul.f32 %v1984, 0.0625
      %v2667 = vmul.f32 %v1991, 0.0625
      %v2668 = vmul.f32 %v1998, 0.0625
      %v2669 = vmul.f32 %v2005, 0.0625
      %v2670 = vmul.f32 %v2012, 0.0625
      %v2671 = vmul.f32 %v2019, 0.0625
      %v2672 = vmul.f32 %v2026, 0.0625
      %v2673 = vmul.f32 %v2033, 0.0625
      %v2674 = vmul.f32 %v2040, 0.0625
      %v2675 = vmul.f32 %v2047, 0.0625
      %v2676 = vmul.f32 %v2054, 0.0625
      %v2677 = vmul.f32 %v2061, 0.0625
      %v2678 = vmul.f32 %v2068, 0.0625
      %v2679 = vmul.f32 %v2075, 0.0625
      %v2680 = vmul.f32 %v2082, 0.0625
      %v2681 = vmul.f32 %v2089, 0.0625
      %v2682 = vmul.f32 %v2096, 0.0625
      %v2683 = vmul.f32 %v2103, 0.0625
      %v2684 = vmul.f32 %v2110, 0.0625
      %v2685 = vmul.f32 %v2117, 0.0625
      %v2686 = vmul.f32 %v2124, 0.0625
      %v2687 = vmul.f32 %v2131, 0.0625
      %v2688 = vmul.f32 %v2138, 0.0625
      %v2689 = vmul.f32 %v2145, 0.0625
      %v2690 = vmul.f32 %v2152, 0.0625
      %v2691 = vmul.f32 %v2159, 0.0625
      %v2692 = vmul.f32 %v2166, 0.0625
      %v2693 = vmul.f32 %v2173, 0.0625
      %v2694 = vmul.f32 %v2180, 0.0625
      %v2695 = vmul.f32 %v2187, 0.0625
      %v2696 = vmul.f32 %v2194, 0.0625
      %v2697 = vmul.f32 %v2201, 0.0625
      %v2698 = vmul.f32 %v2208, 0.0625
      %v2699 = vmul.f32 %v2215, 0.0625
      %v2700 = vmul.f32 %v2222, 0.0625
      %v2701 = vmul.f32 %v2229, 0.0625
      %v2702 = vmul.f32 %v2236, 0.0625
      %v2703 = vmul.f32 %v2243, 0.0625
      %v2704 = vmul.f32 %v2250, 0.0625
      %v2705 = vmul.f32 %v2257, 0.0625
      %v2706 = vmul.f32 %v2264, 0.0625
      %v2707 = vmul.f32 %v2271, 0.0625
      %v2708 = vmul.f32 %v2278, 0.0625
      %v2709 = vmul.f32 %v2285, 0.0625
      %v2710 = vmul.f32 %v2292, 0.0625
      %v2711 = vmul.f32 %v2299, 0.0625
      %v2712 = vmul.f32 %v2306, 0.0625
      %v2713 = vmul.f32 %v2313, 0.0625
      %v2714 = vmul.f32 %v2320, 0.0625
      %v2715 = vmul.f32 %v2327, 0.0625
      %v2716 = vmul.f32 %v2334, 0.0625
      %v2717 = vmul.f32 %v2341, 0.0625
      %v2718 = vmul.f32 %v2348, 0.0625
      %v2719 = vmul.f32 %v2355, 0.0625
      %v2720 = vmul.f32 %v2362, 0.0625
      %v2721 = vmul.f32 %v2369, 0.0625
      %v2722 = vmul.f32 %v2376, 0.0625
      %v2723 = vmul.f32 %v2383, 0.0625
      %v2724 = vmul.f32 %v2390, 0.0625
      %v2725 = vmul.f32 %v2397, 0.0625
      %v2726 = vmul.f32 %v2404, 0.0625
      %v2727 = vmul.f32 %v2411, 0.0625
      %v2728 = vmul.f32 %v2418, 0.0625
      %v2729 = vmul.f32 %v2425, 0.0625
      %v2730 = vmul.f32 %v2432, 0.0625
      %v2731 = vmul.f32 %v2439, 0.0625
      %v2732 = vmul.f32 %v2446, 0.0625
      %v2733 = vmul.f32 %v2453, 0.0625
      %v2734 = vmul.f32 %v2460, 0.0625
      %v2735 = vmul.f32 %v2467, 0.0625
      %v2736 = vmul.f32 %v2474, 0.0625
      %v2737 = vmul.f32 %v2481, 0.0625
      %v2738 = vpack.c.bf16 %v2482, %v2482
      %v2739 = vpack.c.bf16 %v2483, %v2483
      %v2740 = vpack.c.bf16 %v2484, %v2484
      %v2741 = vpack.c.bf16 %v2485, %v2485
      %v2742 = vpack.c.bf16 %v2486, %v2486
      %v2743 = vpack.c.bf16 %v2487, %v2487
      %v2744 = vpack.c.bf16 %v2488, %v2488
      %v2745 = vpack.c.bf16 %v2489, %v2489
      %v2746 = vpack.c.bf16 %v2490, %v2490
      %v2747 = vpack.c.bf16 %v2491, %v2491
      %v2748 = vpack.c.bf16 %v2492, %v2492
      %v2749 = vpack.c.bf16 %v2493, %v2493
      %v2750 = vpack.c.bf16 %v2494, %v2494
      %v2751 = vpack.c.bf16 %v2495, %v2495
      %v2752 = vpack.c.bf16 %v2496, %v2496
      %v2753 = vpack.c.bf16 %v2497, %v2497
      %v2754 = vpack.c.bf16 %v2498, %v2498
      %v2755 = vpack.c.bf16 %v2499, %v2499
      %v2756 = vpack.c.bf16 %v2500, %v2500
      %v2757 = vpack.c.bf16 %v2501, %v2501
      %v2758 = vpack.c.bf16 %v2502, %v2502
      %v2759 = vpack.c.bf16 %v2503, %v2503
      %v2760 = vpack.c.bf16 %v2504, %v2504
      %v2761 = vpack.c.bf16 %v2505, %v2505
      %v2762 = vpack.c.bf16 %v2506, %v2506
      %v2763 = vpack.c.bf16 %v2507, %v2507
      %v2764 = vpack.c.bf16 %v2508, %v2508
      %v2765 = vpack.c.bf16 %v2509, %v2509
      %v2766 = vpack.c.bf16 %v2510, %v2510
      %v2767 = vpack.c.bf16 %v2511, %v2511
      %v2768 = vpack.c.bf16 %v2512, %v2512
      %v2769 = vpack.c.bf16 %v2513, %v2513
      %v2770 = vpack.c.bf16 %v2514, %v2514
      %v2771 = vpack.c.bf16 %v2515, %v2515
      %v2772 = vpack.c.bf16 %v2516, %v2516
      %v2773 = vpack.c.bf16 %v2517, %v2517
      %v2774 = vpack.c.bf16 %v2518, %v2518
      %v2775 = vpack.c.bf16 %v2519, %v2519
      %v2776 = vpack.c.bf16 %v2520, %v2520
      %v2777 = vpack.c.bf16 %v2521, %v2521
      %v2778 = vpack.c.bf16 %v2522, %v2522
      %v2779 = vpack.c.bf16 %v2523, %v2523
      %v2780 = vpack.c.bf16 %v2524, %v2524
      %v2781 = vpack.c.bf16 %v2525, %v2525
      %v2782 = vpack.c.bf16 %v2526, %v2526
      %v2783 = vpack.c.bf16 %v2527, %v2527
      %v2784 = vpack.c.bf16 %v2528, %v2528
      %v2785 = vpack.c.bf16 %v2529, %v2529
      %v2786 = vpack.c.bf16 %v2530, %v2530
      %v2787 = vpack.c.bf16 %v2531, %v2531
      %v2788 = vpack.c.bf16 %v2532, %v2532
      %v2789 = vpack.c.bf16 %v2533, %v2533
      %v2790 = vpack.c.bf16 %v2534, %v2534
      %v2791 = vpack.c.bf16 %v2535, %v2535
      %v2792 = vpack.c.bf16 %v2536, %v2536
      %v2793 = vpack.c.bf16 %v2537, %v2537
      %v2794 = vpack.c.bf16 %v2538, %v2538
      %v2795 = vpack.c.bf16 %v2539, %v2539
      %v2796 = vpack.c.bf16 %v2540, %v2540
      %v2797 = vpack.c.bf16 %v2541, %v2541
      %v2798 = vpack.c.bf16 %v2542, %v2542
      %v2799 = vpack.c.bf16 %v2543, %v2543
      %v2800 = vpack.c.bf16 %v2544, %v2544
      %v2801 = vpack.c.bf16 %v2545, %v2545
      %v2802 = vpack.c.bf16 %v2546, %v2546
      %v2803 = vpack.c.bf16 %v2547, %v2547
      %v2804 = vpack.c.bf16 %v2548, %v2548
      %v2805 = vpack.c.bf16 %v2549, %v2549
      %v2806 = vpack.c.bf16 %v2550, %v2550
      %v2807 = vpack.c.bf16 %v2551, %v2551
      %v2808 = vpack.c.bf16 %v2552, %v2552
      %v2809 = vpack.c.bf16 %v2553, %v2553
      %v2810 = vpack.c.bf16 %v2554, %v2554
      %v2811 = vpack.c.bf16 %v2555, %v2555
      %v2812 = vpack.c.bf16 %v2556, %v2556
      %v2813 = vpack.c.bf16 %v2557, %v2557
      %v2814 = vpack.c.bf16 %v2558, %v2558
      %v2815 = vpack.c.bf16 %v2559, %v2559
      %v2816 = vpack.c.bf16 %v2560, %v2560
      %v2817 = vpack.c.bf16 %v2561, %v2561
      %v2818 = vpack.c.bf16 %v2562, %v2562
      %v2819 = vpack.c.bf16 %v2563, %v2563
      %v2820 = vpack.c.bf16 %v2564, %v2564
      %v2821 = vpack.c.bf16 %v2565, %v2565
      %v2822 = vpack.c.bf16 %v2566, %v2566
      %v2823 = vpack.c.bf16 %v2567, %v2567
      %v2824 = vpack.c.bf16 %v2568, %v2568
      %v2825 = vpack.c.bf16 %v2569, %v2569
      %v2826 = vpack.c.bf16 %v2570, %v2570
      %v2827 = vpack.c.bf16 %v2571, %v2571
      %v2828 = vpack.c.bf16 %v2572, %v2572
      %v2829 = vpack.c.bf16 %v2573, %v2573
      %v2830 = vpack.c.bf16 %v2574, %v2574
      %v2831 = vpack.c.bf16 %v2575, %v2575
      %v2832 = vpack.c.bf16 %v2576, %v2576
      %v2833 = vpack.c.bf16 %v2577, %v2577
      %v2834 = vpack.c.bf16 %v2578, %v2578
      %v2835 = vpack.c.bf16 %v2579, %v2579
      %v2836 = vpack.c.bf16 %v2580, %v2580
      %v2837 = vpack.c.bf16 %v2581, %v2581
      %v2838 = vpack.c.bf16 %v2582, %v2582
      %v2839 = vpack.c.bf16 %v2583, %v2583
      %v2840 = vpack.c.bf16 %v2584, %v2584
      %v2841 = vpack.c.bf16 %v2585, %v2585
      %v2842 = vpack.c.bf16 %v2586, %v2586
      %v2843 = vpack.c.bf16 %v2587, %v2587
      %v2844 = vpack.c.bf16 %v2588, %v2588
      %v2845 = vpack.c.bf16 %v2589, %v2589
      %v2846 = vpack.c.bf16 %v2590, %v2590
      %v2847 = vpack.c.bf16 %v2591, %v2591
      %v2848 = vpack.c.bf16 %v2592, %v2592
      %v2849 = vpack.c.bf16 %v2593, %v2593
      %v2850 = vpack.c.bf16 %v2594, %v2594
      %v2851 = vpack.c.bf16 %v2595, %v2595
      %v2852 = vpack.c.bf16 %v2596, %v2596
      %v2853 = vpack.c.bf16 %v2597, %v2597
      %v2854 = vpack.c.bf16 %v2598, %v2598
      %v2855 = vpack.c.bf16 %v2599, %v2599
      %v2856 = vpack.c.bf16 %v2600, %v2600
      %v2857 = vpack.c.bf16 %v2601, %v2601
      %v2858 = vpack.c.bf16 %v2602, %v2602
      %v2859 = vpack.c.bf16 %v2603, %v2603
      %v2860 = vpack.c.bf16 %v2604, %v2604
      %v2861 = vpack.c.bf16 %v2605, %v2605
      %v2862 = vpack.c.bf16 %v2606, %v2606
      %v2863 = vpack.c.bf16 %v2607, %v2607
      %v2864 = vpack.c.bf16 %v2608, %v2608
      %v2865 = vpack.c.bf16 %v2609, %v2609
      %v2866 = vpack.c.bf16 %v2610, %v2610
      %v2867 = vpack.c.bf16 %v2611, %v2611
      %v2868 = vpack.c.bf16 %v2612, %v2612
      %v2869 = vpack.c.bf16 %v2613, %v2613
      %v2870 = vpack.c.bf16 %v2614, %v2614
      %v2871 = vpack.c.bf16 %v2615, %v2615
      %v2872 = vpack.c.bf16 %v2616, %v2616
      %v2873 = vpack.c.bf16 %v2617, %v2617
      %v2874 = vpack.c.bf16 %v2618, %v2618
      %v2875 = vpack.c.bf16 %v2619, %v2619
      %v2876 = vpack.c.bf16 %v2620, %v2620
      %v2877 = vpack.c.bf16 %v2621, %v2621
      %v2878 = vpack.c.bf16 %v2622, %v2622
      %v2879 = vpack.c.bf16 %v2623, %v2623
      %v2880 = vpack.c.bf16 %v2624, %v2624
      %v2881 = vpack.c.bf16 %v2625, %v2625
      %v2882 = vpack.c.bf16 %v2626, %v2626
      %v2883 = vpack.c.bf16 %v2627, %v2627
      %v2884 = vpack.c.bf16 %v2628, %v2628
      %v2885 = vpack.c.bf16 %v2629, %v2629
      %v2886 = vpack.c.bf16 %v2630, %v2630
      %v2887 = vpack.c.bf16 %v2631, %v2631
      %v2888 = vpack.c.bf16 %v2632, %v2632
      %v2889 = vpack.c.bf16 %v2633, %v2633
      %v2890 = vpack.c.bf16 %v2634, %v2634
      %v2891 = vpack.c.bf16 %v2635, %v2635
      %v2892 = vpack.c.bf16 %v2636, %v2636
      %v2893 = vpack.c.bf16 %v2637, %v2637
      %v2894 = vpack.c.bf16 %v2638, %v2638
      %v2895 = vpack.c.bf16 %v2639, %v2639
      %v2896 = vpack.c.bf16 %v2640, %v2640
      %v2897 = vpack.c.bf16 %v2641, %v2641
      %v2898 = vpack.c.bf16 %v2642, %v2642
      %v2899 = vpack.c.bf16 %v2643, %v2643
      %v2900 = vpack.c.bf16 %v2644, %v2644
      %v2901 = vpack.c.bf16 %v2645, %v2645
      %v2902 = vpack.c.bf16 %v2646, %v2646
      %v2903 = vpack.c.bf16 %v2647, %v2647
      %v2904 = vpack.c.bf16 %v2648, %v2648
      %v2905 = vpack.c.bf16 %v2649, %v2649
      %v2906 = vpack.c.bf16 %v2650, %v2650
      %v2907 = vpack.c.bf16 %v2651, %v2651
      %v2908 = vpack.c.bf16 %v2652, %v2652
      %v2909 = vpack.c.bf16 %v2653, %v2653
      %v2910 = vpack.c.bf16 %v2654, %v2654
      %v2911 = vpack.c.bf16 %v2655, %v2655
      %v2912 = vpack.c.bf16 %v2656, %v2656
      %v2913 = vpack.c.bf16 %v2657, %v2657
      %v2914 = vpack.c.bf16 %v2658, %v2658
      %v2915 = vpack.c.bf16 %v2659, %v2659
      %v2916 = vpack.c.bf16 %v2660, %v2660
      %v2917 = vpack.c.bf16 %v2661, %v2661
      %v2918 = vpack.c.bf16 %v2662, %v2662
      %v2919 = vpack.c.bf16 %v2663, %v2663
      %v2920 = vpack.c.bf16 %v2664, %v2664
      %v2921 = vpack.c.bf16 %v2665, %v2665
      %v2922 = vpack.c.bf16 %v2666, %v2666
      %v2923 = vpack.c.bf16 %v2667, %v2667
      %v2924 = vpack.c.bf16 %v2668, %v2668
      %v2925 = vpack.c.bf16 %v2669, %v2669
      %v2926 = vpack.c.bf16 %v2670, %v2670
      %v2927 = vpack.c.bf16 %v2671, %v2671
      %v2928 = vpack.c.bf16 %v2672, %v2672
      %v2929 = vpack.c.bf16 %v2673, %v2673
      %v2930 = vpack.c.bf16 %v2674, %v2674
      %v2931 = vpack.c.bf16 %v2675, %v2675
      %v2932 = vpack.c.bf16 %v2676, %v2676
      %v2933 = vpack.c.bf16 %v2677, %v2677
      %v2934 = vpack.c.bf16 %v2678, %v2678
      %v2935 = vpack.c.bf16 %v2679, %v2679
      %v2936 = vpack.c.bf16 %v2680, %v2680
      %v2937 = vpack.c.bf16 %v2681, %v2681
      %v2938 = vpack.c.bf16 %v2682, %v2682
      %v2939 = vpack.c.bf16 %v2683, %v2683
      %v2940 = vpack.c.bf16 %v2684, %v2684
      %v2941 = vpack.c.bf16 %v2685, %v2685
      %v2942 = vpack.c.bf16 %v2686, %v2686
      %v2943 = vpack.c.bf16 %v2687, %v2687
      %v2944 = vpack.c.bf16 %v2688, %v2688
      %v2945 = vpack.c.bf16 %v2689, %v2689
      %v2946 = vpack.c.bf16 %v2690, %v2690
      %v2947 = vpack.c.bf16 %v2691, %v2691
      %v2948 = vpack.c.bf16 %v2692, %v2692
      %v2949 = vpack.c.bf16 %v2693, %v2693
      %v2950 = vpack.c.bf16 %v2694, %v2694
      %v2951 = vpack.c.bf16 %v2695, %v2695
      %v2952 = vpack.c.bf16 %v2696, %v2696
      %v2953 = vpack.c.bf16 %v2697, %v2697
      %v2954 = vpack.c.bf16 %v2698, %v2698
      %v2955 = vpack.c.bf16 %v2699, %v2699
      %v2956 = vpack.c.bf16 %v2700, %v2700
      %v2957 = vpack.c.bf16 %v2701, %v2701
      %v2958 = vpack.c.bf16 %v2702, %v2702
      %v2959 = vpack.c.bf16 %v2703, %v2703
      %v2960 = vpack.c.bf16 %v2704, %v2704
      %v2961 = vpack.c.bf16 %v2705, %v2705
      %v2962 = vpack.c.bf16 %v2706, %v2706
      %v2963 = vpack.c.bf16 %v2707, %v2707
      %v2964 = vpack.c.bf16 %v2708, %v2708
      %v2965 = vpack.c.bf16 %v2709, %v2709
      %v2966 = vpack.c.bf16 %v2710, %v2710
      %v2967 = vpack.c.bf16 %v2711, %v2711
      %v2968 = vpack.c.bf16 %v2712, %v2712
      %v2969 = vpack.c.bf16 %v2713, %v2713
      %v2970 = vpack.c.bf16 %v2714, %v2714
      %v2971 = vpack.c.bf16 %v2715, %v2715
      %v2972 = vpack.c.bf16 %v2716, %v2716
      %v2973 = vpack.c.bf16 %v2717, %v2717
      %v2974 = vpack.c.bf16 %v2718, %v2718
      %v2975 = vpack.c.bf16 %v2719, %v2719
      %v2976 = vpack.c.bf16 %v2720, %v2720
      %v2977 = vpack.c.bf16 %v2721, %v2721
      %v2978 = vpack.c.bf16 %v2722, %v2722
      %v2979 = vpack.c.bf16 %v2723, %v2723
      %v2980 = vpack.c.bf16 %v2724, %v2724
      %v2981 = vpack.c.bf16 %v2725, %v2725
      %v2982 = vpack.c.bf16 %v2726, %v2726
      %v2983 = vpack.c.bf16 %v2727, %v2727
      %v2984 = vpack.c.bf16 %v2728, %v2728
      %v2985 = vpack.c.bf16 %v2729, %v2729
      %v2986 = vpack.c.bf16 %v2730, %v2730
      %v2987 = vpack.c.bf16 %v2731, %v2731
      %v2988 = vpack.c.bf16 %v2732, %v2732
      %v2989 = vpack.c.bf16 %v2733, %v2733
      %v2990 = vpack.c.bf16 %v2734, %v2734
      %v2991 = vpack.c.bf16 %v2735, %v2735
      %v2992 = vpack.c.bf16 %v2736, %v2736
      %v2993 = vpack.c.bf16 %v2737, %v2737
      %v2994 = vld [vmem:[%s1] sm:$0xf]
      %v2995 = vld [vmem:[%s1 + $0x4] sm:$0xf]
      %v2996 = vld [vmem:[%s1 + $0x8] sm:$0xf]
      %v2997 = vld [vmem:[%s1 + $0xc] sm:$0xf]
      %v2998 = vld [vmem:[%s1 + $0x10] sm:$0xf]
      %v2999 = vld [vmem:[%s1 + $0x14] sm:$0xf]
      %v3000 = vld [vmem:[%s1 + $0x18] sm:$0xf]
      %v3001 = vld [vmem:[%s1 + $0x1c] sm:$0xf]
      %v3002 = vld [vmem:[%s1 + $0x20] sm:$0xf]
      %v3003 = vld [vmem:[%s1 + $0x24] sm:$0xf]
      %v3004 = vld [vmem:[%s1 + $0x28] sm:$0xf]
      %v3005 = vld [vmem:[%s1 + $0x2c] sm:$0xf]
      %v3006 = vld [vmem:[%s1 + $0x30] sm:$0xf]
      %v3007 = vld [vmem:[%s1 + $0x34] sm:$0xf]
      %v3008 = vld [vmem:[%s1 + $0x38] sm:$0xf]
      %v3009 = vld [vmem:[%s1 + $0x3c] sm:$0xf]
      %v3010 = vld [vmem:[%s1 + $0x40] sm:$0xf]
      %v3011 = vld [vmem:[%s1 + $0x44] sm:$0xf]
      %v3012 = vld [vmem:[%s1 + $0x48] sm:$0xf]
      %v3013 = vld [vmem:[%s1 + $0x4c] sm:$0xf]
      %v3014 = vld [vmem:[%s1 + $0x50] sm:$0xf]
      %v3015 = vld [vmem:[%s1 + $0x54] sm:$0xf]
      %v3016 = vld [vmem:[%s1 + $0x58] sm:$0xf]
      %v3017 = vld [vmem:[%s1 + $0x5c] sm:$0xf]
      %v3018 = vld [vmem:[%s1 + $0x60] sm:$0xf]
      %v3019 = vld [vmem:[%s1 + $0x64] sm:$0xf]
      %v3020 = vld [vmem:[%s1 + $0x68] sm:$0xf]
      %v3021 = vld [vmem:[%s1 + $0x6c] sm:$0xf]
      %v3022 = vld [vmem:[%s1 + $0x70] sm:$0xf]
      %v3023 = vld [vmem:[%s1 + $0x74] sm:$0xf]
      %v3024 = vld [vmem:[%s1 + $0x78] sm:$0xf]
      %v3025 = vld [vmem:[%s1 + $0x7c] sm:$0xf]
      %v3026 = vld [vmem:[%s1 + $0x80] sm:$0xf]
      %v3027 = vld [vmem:[%s1 + $0x84] sm:$0xf]
      %v3028 = vld [vmem:[%s1 + $0x88] sm:$0xf]
      %v3029 = vld [vmem:[%s1 + $0x8c] sm:$0xf]
      %v3030 = vld [vmem:[%s1 + $0x90] sm:$0xf]
      %v3031 = vld [vmem:[%s1 + $0x94] sm:$0xf]
      %v3032 = vld [vmem:[%s1 + $0x98] sm:$0xf]
      %v3033 = vld [vmem:[%s1 + $0x9c] sm:$0xf]
      %v3034 = vld [vmem:[%s1 + $0xa0] sm:$0xf]
      %v3035 = vld [vmem:[%s1 + $0xa4] sm:$0xf]
      %v3036 = vld [vmem:[%s1 + $0xa8] sm:$0xf]
      %v3037 = vld [vmem:[%s1 + $0xac] sm:$0xf]
      %v3038 = vld [vmem:[%s1 + $0xb0] sm:$0xf]
      %v3039 = vld [vmem:[%s1 + $0xb4] sm:$0xf]
      %v3040 = vld [vmem:[%s1 + $0xb8] sm:$0xf]
      %v3041 = vld [vmem:[%s1 + $0xbc] sm:$0xf]
      %v3042 = vld [vmem:[%s1 + $0xc0] sm:$0xf]
      %v3043 = vld [vmem:[%s1 + $0xc4] sm:$0xf]
      %v3044 = vld [vmem:[%s1 + $0xc8] sm:$0xf]
      %v3045 = vld [vmem:[%s1 + $0xcc] sm:$0xf]
      %v3046 = vld [vmem:[%s1 + $0xd0] sm:$0xf]
      %v3047 = vld [vmem:[%s1 + $0xd4] sm:$0xf]
      %v3048 = vld [vmem:[%s1 + $0xd8] sm:$0xf]
      %v3049 = vld [vmem:[%s1 + $0xdc] sm:$0xf]
      %v3050 = vld [vmem:[%s1 + $0xe0] sm:$0xf]
      %v3051 = vld [vmem:[%s1 + $0xe4] sm:$0xf]
      %v3052 = vld [vmem:[%s1 + $0xe8] sm:$0xf]
      %v3053 = vld [vmem:[%s1 + $0xec] sm:$0xf]
      %v3054 = vld [vmem:[%s1 + $0xf0] sm:$0xf]
      %v3055 = vld [vmem:[%s1 + $0xf4] sm:$0xf]
      %v3056 = vld [vmem:[%s1 + $0xf8] sm:$0xf]
      %v3057 = vld [vmem:[%s1 + $0xfc] sm:$0xf]
      %v3058 = vld [vmem:[%s1 + $0x100] sm:$0xf]
      %v3059 = vld [vmem:[%s1 + $0x104] sm:$0xf]
      %v3060 = vld [vmem:[%s1 + $0x108] sm:$0xf]
      %v3061 = vld [vmem:[%s1 + $0x10c] sm:$0xf]
      %v3062 = vld [vmem:[%s1 + $0x110] sm:$0xf]
      %v3063 = vld [vmem:[%s1 + $0x114] sm:$0xf]
      %v3064 = vld [vmem:[%s1 + $0x118] sm:$0xf]
      %v3065 = vld [vmem:[%s1 + $0x11c] sm:$0xf]
      %v3066 = vld [vmem:[%s1 + $0x120] sm:$0xf]
      %v3067 = vld [vmem:[%s1 + $0x124] sm:$0xf]
      %v3068 = vld [vmem:[%s1 + $0x128] sm:$0xf]
      %v3069 = vld [vmem:[%s1 + $0x12c] sm:$0xf]
      %v3070 = vld [vmem:[%s1 + $0x130] sm:$0xf]
      %v3071 = vld [vmem:[%s1 + $0x134] sm:$0xf]
      %v3072 = vld [vmem:[%s1 + $0x138] sm:$0xf]
      %v3073 = vld [vmem:[%s1 + $0x13c] sm:$0xf]
      %v3074 = vld [vmem:[%s1 + $0x140] sm:$0xf]
      %v3075 = vld [vmem:[%s1 + $0x144] sm:$0xf]
      %v3076 = vld [vmem:[%s1 + $0x148] sm:$0xf]
      %v3077 = vld [vmem:[%s1 + $0x14c] sm:$0xf]
      %v3078 = vld [vmem:[%s1 + $0x150] sm:$0xf]
      %v3079 = vld [vmem:[%s1 + $0x154] sm:$0xf]
      %v3080 = vld [vmem:[%s1 + $0x158] sm:$0xf]
      %v3081 = vld [vmem:[%s1 + $0x15c] sm:$0xf]
      %v3082 = vld [vmem:[%s1 + $0x160] sm:$0xf]
      %v3083 = vld [vmem:[%s1 + $0x164] sm:$0xf]
      %v3084 = vld [vmem:[%s1 + $0x168] sm:$0xf]
      %v3085 = vld [vmem:[%s1 + $0x16c] sm:$0xf]
      %v3086 = vld [vmem:[%s1 + $0x170] sm:$0xf]
      %v3087 = vld [vmem:[%s1 + $0x174] sm:$0xf]
      %v3088 = vld [vmem:[%s1 + $0x178] sm:$0xf]
      %v3089 = vld [vmem:[%s1 + $0x17c] sm:$0xf]
      %v3090 = vld [vmem:[%s1 + $0x180] sm:$0xf]
      %v3091 = vld [vmem:[%s1 + $0x184] sm:$0xf]
      %v3092 = vld [vmem:[%s1 + $0x188] sm:$0xf]
      %v3093 = vld [vmem:[%s1 + $0x18c] sm:$0xf]
      %v3094 = vld [vmem:[%s1 + $0x190] sm:$0xf]
      %v3095 = vld [vmem:[%s1 + $0x194] sm:$0xf]
      %v3096 = vld [vmem:[%s1 + $0x198] sm:$0xf]
      %v3097 = vld [vmem:[%s1 + $0x19c] sm:$0xf]
      %v3098 = vld [vmem:[%s1 + $0x1a0] sm:$0xf]
      %v3099 = vld [vmem:[%s1 + $0x1a4] sm:$0xf]
      %v3100 = vld [vmem:[%s1 + $0x1a8] sm:$0xf]
      %v3101 = vld [vmem:[%s1 + $0x1ac] sm:$0xf]
      %v3102 = vld [vmem:[%s1 + $0x1b0] sm:$0xf]
      %v3103 = vld [vmem:[%s1 + $0x1b4] sm:$0xf]
      %v3104 = vld [vmem:[%s1 + $0x1b8] sm:$0xf]
      %v3105 = vld [vmem:[%s1 + $0x1bc] sm:$0xf]
      %v3106 = vld [vmem:[%s1 + $0x1c0] sm:$0xf]
      %v3107 = vld [vmem:[%s1 + $0x1c4] sm:$0xf]
      %v3108 = vld [vmem:[%s1 + $0x1c8] sm:$0xf]
      %v3109 = vld [vmem:[%s1 + $0x1cc] sm:$0xf]
      %v3110 = vld [vmem:[%s1 + $0x1d0] sm:$0xf]
      %v3111 = vld [vmem:[%s1 + $0x1d4] sm:$0xf]
      %v3112 = vld [vmem:[%s1 + $0x1d8] sm:$0xf]
      %v3113 = vld [vmem:[%s1 + $0x1dc] sm:$0xf]
      %v3114 = vld [vmem:[%s1 + $0x1e0] sm:$0xf]
      %v3115 = vld [vmem:[%s1 + $0x1e4] sm:$0xf]
      %v3116 = vld [vmem:[%s1 + $0x1e8] sm:$0xf]
      %v3117 = vld [vmem:[%s1 + $0x1ec] sm:$0xf]
      %v3118 = vld [vmem:[%s1 + $0x1f0] sm:$0xf]
      %v3119 = vld [vmem:[%s1 + $0x1f4] sm:$0xf]
      %v3120 = vld [vmem:[%s1 + $0x1f8] sm:$0xf]
      %v3121 = vld [vmem:[%s1 + $0x1fc] sm:$0xf]
      %v3122 = vld [vmem:[%s1 + $0x200] sm:$0xf]
      %v3123 = vld [vmem:[%s1 + $0x204] sm:$0xf]
      %v3124 = vld [vmem:[%s1 + $0x208] sm:$0xf]
      %v3125 = vld [vmem:[%s1 + $0x20c] sm:$0xf]
      %v3126 = vld [vmem:[%s1 + $0x210] sm:$0xf]
      %v3127 = vld [vmem:[%s1 + $0x214] sm:$0xf]
      %v3128 = vld [vmem:[%s1 + $0x218] sm:$0xf]
      %v3129 = vld [vmem:[%s1 + $0x21c] sm:$0xf]
      %v3130 = vld [vmem:[%s1 + $0x220] sm:$0xf]
      %v3131 = vld [vmem:[%s1 + $0x224] sm:$0xf]
      %v3132 = vld [vmem:[%s1 + $0x228] sm:$0xf]
      %v3133 = vld [vmem:[%s1 + $0x22c] sm:$0xf]
      %v3134 = vld [vmem:[%s1 + $0x230] sm:$0xf]
      %v3135 = vld [vmem:[%s1 + $0x234] sm:$0xf]
      %v3136 = vld [vmem:[%s1 + $0x238] sm:$0xf]
      %v3137 = vld [vmem:[%s1 + $0x23c] sm:$0xf]
      %v3138 = vld [vmem:[%s1 + $0x240] sm:$0xf]
      %v3139 = vld [vmem:[%s1 + $0x244] sm:$0xf]
      %v3140 = vld [vmem:[%s1 + $0x248] sm:$0xf]
      %v3141 = vld [vmem:[%s1 + $0x24c] sm:$0xf]
      %v3142 = vld [vmem:[%s1 + $0x250] sm:$0xf]
      %v3143 = vld [vmem:[%s1 + $0x254] sm:$0xf]
      %v3144 = vld [vmem:[%s1 + $0x258] sm:$0xf]
      %v3145 = vld [vmem:[%s1 + $0x25c] sm:$0xf]
      %v3146 = vld [vmem:[%s1 + $0x260] sm:$0xf]
      %v3147 = vld [vmem:[%s1 + $0x264] sm:$0xf]
      %v3148 = vld [vmem:[%s1 + $0x268] sm:$0xf]
      %v3149 = vld [vmem:[%s1 + $0x26c] sm:$0xf]
      %v3150 = vld [vmem:[%s1 + $0x270] sm:$0xf]
      %v3151 = vld [vmem:[%s1 + $0x274] sm:$0xf]
      %v3152 = vld [vmem:[%s1 + $0x278] sm:$0xf]
      %v3153 = vld [vmem:[%s1 + $0x27c] sm:$0xf]
      %v3154 = vld [vmem:[%s1 + $0x280] sm:$0xf]
      %v3155 = vld [vmem:[%s1 + $0x284] sm:$0xf]
      %v3156 = vld [vmem:[%s1 + $0x288] sm:$0xf]
      %v3157 = vld [vmem:[%s1 + $0x28c] sm:$0xf]
      %v3158 = vld [vmem:[%s1 + $0x290] sm:$0xf]
      %v3159 = vld [vmem:[%s1 + $0x294] sm:$0xf]
      %v3160 = vld [vmem:[%s1 + $0x298] sm:$0xf]
      %v3161 = vld [vmem:[%s1 + $0x29c] sm:$0xf]
      %v3162 = vld [vmem:[%s1 + $0x2a0] sm:$0xf]
      %v3163 = vld [vmem:[%s1 + $0x2a4] sm:$0xf]
      %v3164 = vld [vmem:[%s1 + $0x2a8] sm:$0xf]
      %v3165 = vld [vmem:[%s1 + $0x2ac] sm:$0xf]
      %v3166 = vld [vmem:[%s1 + $0x2b0] sm:$0xf]
      %v3167 = vld [vmem:[%s1 + $0x2b4] sm:$0xf]
      %v3168 = vld [vmem:[%s1 + $0x2b8] sm:$0xf]
      %v3169 = vld [vmem:[%s1 + $0x2bc] sm:$0xf]
      %v3170 = vld [vmem:[%s1 + $0x2c0] sm:$0xf]
      %v3171 = vld [vmem:[%s1 + $0x2c4] sm:$0xf]
      %v3172 = vld [vmem:[%s1 + $0x2c8] sm:$0xf]
      %v3173 = vld [vmem:[%s1 + $0x2cc] sm:$0xf]
      %v3174 = vld [vmem:[%s1 + $0x2d0] sm:$0xf]
      %v3175 = vld [vmem:[%s1 + $0x2d4] sm:$0xf]
      %v3176 = vld [vmem:[%s1 + $0x2d8] sm:$0xf]
      %v3177 = vld [vmem:[%s1 + $0x2dc] sm:$0xf]
      %v3178 = vld [vmem:[%s1 + $0x2e0] sm:$0xf]
      %v3179 = vld [vmem:[%s1 + $0x2e4] sm:$0xf]
      %v3180 = vld [vmem:[%s1 + $0x2e8] sm:$0xf]
      %v3181 = vld [vmem:[%s1 + $0x2ec] sm:$0xf]
      %v3182 = vld [vmem:[%s1 + $0x2f0] sm:$0xf]
      %v3183 = vld [vmem:[%s1 + $0x2f4] sm:$0xf]
      %v3184 = vld [vmem:[%s1 + $0x2f8] sm:$0xf]
      %v3185 = vld [vmem:[%s1 + $0x2fc] sm:$0xf]
      %v3186 = vld [vmem:[%s1 + $0x300] sm:$0xf]
      %v3187 = vld [vmem:[%s1 + $0x304] sm:$0xf]
      %v3188 = vld [vmem:[%s1 + $0x308] sm:$0xf]
      %v3189 = vld [vmem:[%s1 + $0x30c] sm:$0xf]
      %v3190 = vld [vmem:[%s1 + $0x310] sm:$0xf]
      %v3191 = vld [vmem:[%s1 + $0x314] sm:$0xf]
      %v3192 = vld [vmem:[%s1 + $0x318] sm:$0xf]
      %v3193 = vld [vmem:[%s1 + $0x31c] sm:$0xf]
      %v3194 = vld [vmem:[%s1 + $0x320] sm:$0xf]
      %v3195 = vld [vmem:[%s1 + $0x324] sm:$0xf]
      %v3196 = vld [vmem:[%s1 + $0x328] sm:$0xf]
      %v3197 = vld [vmem:[%s1 + $0x32c] sm:$0xf]
      %v3198 = vld [vmem:[%s1 + $0x330] sm:$0xf]
      %v3199 = vld [vmem:[%s1 + $0x334] sm:$0xf]
      %v3200 = vld [vmem:[%s1 + $0x338] sm:$0xf]
      %v3201 = vld [vmem:[%s1 + $0x33c] sm:$0xf]
      %v3202 = vld [vmem:[%s1 + $0x340] sm:$0xf]
      %v3203 = vld [vmem:[%s1 + $0x344] sm:$0xf]
      %v3204 = vld [vmem:[%s1 + $0x348] sm:$0xf]
      %v3205 = vld [vmem:[%s1 + $0x34c] sm:$0xf]
      %v3206 = vld [vmem:[%s1 + $0x350] sm:$0xf]
      %v3207 = vld [vmem:[%s1 + $0x354] sm:$0xf]
      %v3208 = vld [vmem:[%s1 + $0x358] sm:$0xf]
      %v3209 = vld [vmem:[%s1 + $0x35c] sm:$0xf]
      %v3210 = vld [vmem:[%s1 + $0x360] sm:$0xf]
      %v3211 = vld [vmem:[%s1 + $0x364] sm:$0xf]
      %v3212 = vld [vmem:[%s1 + $0x368] sm:$0xf]
      %v3213 = vld [vmem:[%s1 + $0x36c] sm:$0xf]
      %v3214 = vld [vmem:[%s1 + $0x370] sm:$0xf]
      %v3215 = vld [vmem:[%s1 + $0x374] sm:$0xf]
      %v3216 = vld [vmem:[%s1 + $0x378] sm:$0xf]
      %v3217 = vld [vmem:[%s1 + $0x37c] sm:$0xf]
      %v3218 = vld [vmem:[%s1 + $0x380] sm:$0xf]
      %v3219 = vld [vmem:[%s1 + $0x384] sm:$0xf]
      %v3220 = vld [vmem:[%s1 + $0x388] sm:$0xf]
      %v3221 = vld [vmem:[%s1 + $0x38c] sm:$0xf]
      %v3222 = vld [vmem:[%s1 + $0x390] sm:$0xf]
      %v3223 = vld [vmem:[%s1 + $0x394] sm:$0xf]
      %v3224 = vld [vmem:[%s1 + $0x398] sm:$0xf]
      %v3225 = vld [vmem:[%s1 + $0x39c] sm:$0xf]
      %v3226 = vld [vmem:[%s1 + $0x3a0] sm:$0xf]
      %v3227 = vld [vmem:[%s1 + $0x3a4] sm:$0xf]
      %v3228 = vld [vmem:[%s1 + $0x3a8] sm:$0xf]
      %v3229 = vld [vmem:[%s1 + $0x3ac] sm:$0xf]
      %v3230 = vld [vmem:[%s1 + $0x3b0] sm:$0xf]
      %v3231 = vld [vmem:[%s1 + $0x3b4] sm:$0xf]
      %v3232 = vld [vmem:[%s1 + $0x3b8] sm:$0xf]
      %v3233 = vld [vmem:[%s1 + $0x3bc] sm:$0xf]
      %v3234 = vld [vmem:[%s1 + $0x3c0] sm:$0xf]
      %v3235 = vld [vmem:[%s1 + $0x3c4] sm:$0xf]
      %v3236 = vld [vmem:[%s1 + $0x3c8] sm:$0xf]
      %v3237 = vld [vmem:[%s1 + $0x3cc] sm:$0xf]
      %v3238 = vld [vmem:[%s1 + $0x3d0] sm:$0xf]
      %v3239 = vld [vmem:[%s1 + $0x3d4] sm:$0xf]
      %v3240 = vld [vmem:[%s1 + $0x3d8] sm:$0xf]
      %v3241 = vld [vmem:[%s1 + $0x3dc] sm:$0xf]
      %v3242 = vld [vmem:[%s1 + $0x3e0] sm:$0xf]
      %v3243 = vld [vmem:[%s1 + $0x3e4] sm:$0xf]
      %v3244 = vld [vmem:[%s1 + $0x3e8] sm:$0xf]
      %v3245 = vld [vmem:[%s1 + $0x3ec] sm:$0xf]
      %v3246 = vld [vmem:[%s1 + $0x3f0] sm:$0xf]
      %v3247 = vld [vmem:[%s1 + $0x3f4] sm:$0xf]
      %v3248 = vld [vmem:[%s1 + $0x3f8] sm:$0xf]
      %v3249 = vld [vmem:[%s1 + $0x3fc] sm:$0xf]
      %v3250 = vld [vmem:[%s2] sm:$0x1]
      %v3252 = vlaneseq
      %v3253 = vshrl.u32 %v3252, 7
      %v3254 = vsub.s32 0, %v3253
      %v3255 = vrot.slane %v3250, %v3254
      %v3513 = vunpack.c.l.b16 %v2738
      %v3514 = vunpack.c.l.b16 %v2739
      %v3515 = vunpack.c.l.b16 %v2740
      %v3516 = vunpack.c.l.b16 %v2741
      %v3517 = vunpack.c.l.b16 %v2742
      %v3518 = vunpack.c.l.b16 %v2743
      %v3519 = vunpack.c.l.b16 %v2744
      %v3520 = vunpack.c.l.b16 %v2745
      %v3521 = vunpack.c.l.b16 %v2746
      %v3522 = vunpack.c.l.b16 %v2747
      %v3523 = vunpack.c.l.b16 %v2748
      %v3524 = vunpack.c.l.b16 %v2749
      %v3525 = vunpack.c.l.b16 %v2750
      %v3526 = vunpack.c.l.b16 %v2751
      %v3527 = vunpack.c.l.b16 %v2752
      %v3528 = vunpack.c.l.b16 %v2753
      %v3529 = vunpack.c.l.b16 %v2754
      %v3530 = vunpack.c.l.b16 %v2755
      %v3531 = vunpack.c.l.b16 %v2756
      %v3532 = vunpack.c.l.b16 %v2757
      %v3533 = vunpack.c.l.b16 %v2758
      %v3534 = vunpack.c.l.b16 %v2759
      %v3535 = vunpack.c.l.b16 %v2760
      %v3536 = vunpack.c.l.b16 %v2761
      %v3537 = vunpack.c.l.b16 %v2762
      %v3538 = vunpack.c.l.b16 %v2763
      %v3539 = vunpack.c.l.b16 %v2764
      %v3540 = vunpack.c.l.b16 %v2765
      %v3541 = vunpack.c.l.b16 %v2766
      %v3542 = vunpack.c.l.b16 %v2767
      %v3543 = vunpack.c.l.b16 %v2768
      %v3544 = vunpack.c.l.b16 %v2769
      %v3545 = vunpack.c.l.b16 %v2770
      %v3546 = vunpack.c.l.b16 %v2771
      %v3547 = vunpack.c.l.b16 %v2772
      %v3548 = vunpack.c.l.b16 %v2773
      %v3549 = vunpack.c.l.b16 %v2774
      %v3550 = vunpack.c.l.b16 %v2775
      %v3551 = vunpack.c.l.b16 %v2776
      %v3552 = vunpack.c.l.b16 %v2777
      %v3553 = vunpack.c.l.b16 %v2778
      %v3554 = vunpack.c.l.b16 %v2779
      %v3555 = vunpack.c.l.b16 %v2780
      %v3556 = vunpack.c.l.b16 %v2781
      %v3557 = vunpack.c.l.b16 %v2782
      %v3558 = vunpack.c.l.b16 %v2783
      %v3559 = vunpack.c.l.b16 %v2784
      %v3560 = vunpack.c.l.b16 %v2785
      %v3561 = vunpack.c.l.b16 %v2786
      %v3562 = vunpack.c.l.b16 %v2787
      %v3563 = vunpack.c.l.b16 %v2788
      %v3564 = vunpack.c.l.b16 %v2789
      %v3565 = vunpack.c.l.b16 %v2790
      %v3566 = vunpack.c.l.b16 %v2791
      %v3567 = vunpack.c.l.b16 %v2792
      %v3568 = vunpack.c.l.b16 %v2793
      %v3569 = vunpack.c.l.b16 %v2794
      %v3570 = vunpack.c.l.b16 %v2795
      %v3571 = vunpack.c.l.b16 %v2796
      %v3572 = vunpack.c.l.b16 %v2797
      %v3573 = vunpack.c.l.b16 %v2798
      %v3574 = vunpack.c.l.b16 %v2799
      %v3575 = vunpack.c.l.b16 %v2800
      %v3576 = vunpack.c.l.b16 %v2801
      %v3577 = vunpack.c.l.b16 %v2802
      %v3578 = vunpack.c.l.b16 %v2803
      %v3579 = vunpack.c.l.b16 %v2804
      %v3580 = vunpack.c.l.b16 %v2805
      %v3581 = vunpack.c.l.b16 %v2806
      %v3582 = vunpack.c.l.b16 %v2807
      %v3583 = vunpack.c.l.b16 %v2808
      %v3584 = vunpack.c.l.b16 %v2809
      %v3585 = vunpack.c.l.b16 %v2810
      %v3586 = vunpack.c.l.b16 %v2811
      %v3587 = vunpack.c.l.b16 %v2812
      %v3588 = vunpack.c.l.b16 %v2813
      %v3589 = vunpack.c.l.b16 %v2814
      %v3590 = vunpack.c.l.b16 %v2815
      %v3591 = vunpack.c.l.b16 %v2816
      %v3592 = vunpack.c.l.b16 %v2817
      %v3593 = vunpack.c.l.b16 %v2818
      %v3594 = vunpack.c.l.b16 %v2819
      %v3595 = vunpack.c.l.b16 %v2820
      %v3596 = vunpack.c.l.b16 %v2821
      %v3597 = vunpack.c.l.b16 %v2822
      %v3598 = vunpack.c.l.b16 %v2823
      %v3599 = vunpack.c.l.b16 %v2824
      %v3600 = vunpack.c.l.b16 %v2825
      %v3601 = vunpack.c.l.b16 %v2826
      %v3602 = vunpack.c.l.b16 %v2827
      %v3603 = vunpack.c.l.b16 %v2828
      %v3604 = vunpack.c.l.b16 %v2829
      %v3605 = vunpack.c.l.b16 %v2830
      %v3606 = vunpack.c.l.b16 %v2831
      %v3607 = vunpack.c.l.b16 %v2832
      %v3608 = vunpack.c.l.b16 %v2833
      %v3609 = vunpack.c.l.b16 %v2834
      %v3610 = vunpack.c.l.b16 %v2835
      %v3611 = vunpack.c.l.b16 %v2836
      %v3612 = vunpack.c.l.b16 %v2837
      %v3613 = vunpack.c.l.b16 %v2838
      %v3614 = vunpack.c.l.b16 %v2839
      %v3615 = vunpack.c.l.b16 %v2840
      %v3616 = vunpack.c.l.b16 %v2841
      %v3617 = vunpack.c.l.b16 %v2842
      %v3618 = vunpack.c.l.b16 %v2843
      %v3619 = vunpack.c.l.b16 %v2844
      %v3620 = vunpack.c.l.b16 %v2845
      %v3621 = vunpack.c.l.b16 %v2846
      %v3622 = vunpack.c.l.b16 %v2847
      %v3623 = vunpack.c.l.b16 %v2848
      %v3624 = vunpack.c.l.b16 %v2849
      %v3625 = vunpack.c.l.b16 %v2850
      %v3626 = vunpack.c.l.b16 %v2851
      %v3627 = vunpack.c.l.b16 %v2852
      %v3628 = vunpack.c.l.b16 %v2853
      %v3629 = vunpack.c.l.b16 %v2854
      %v3630 = vunpack.c.l.b16 %v2855
      %v3631 = vunpack.c.l.b16 %v2856
      %v3632 = vunpack.c.l.b16 %v2857
      %v3633 = vunpack.c.l.b16 %v2858
      %v3634 = vunpack.c.l.b16 %v2859
      %v3635 = vunpack.c.l.b16 %v2860
      %v3636 = vunpack.c.l.b16 %v2861
      %v3637 = vunpack.c.l.b16 %v2862
      %v3638 = vunpack.c.l.b16 %v2863
      %v3639 = vunpack.c.l.b16 %v2864
      %v3640 = vunpack.c.l.b16 %v2865
      %v3641 = vunpack.c.l.b16 %v2866
      %v3642 = vunpack.c.l.b16 %v2867
      %v3643 = vunpack.c.l.b16 %v2868
      %v3644 = vunpack.c.l.b16 %v2869
      %v3645 = vunpack.c.l.b16 %v2870
      %v3646 = vunpack.c.l.b16 %v2871
      %v3647 = vunpack.c.l.b16 %v2872
      %v3648 = vunpack.c.l.b16 %v2873
      %v3649 = vunpack.c.l.b16 %v2874
      %v3650 = vunpack.c.l.b16 %v2875
      %v3651 = vunpack.c.l.b16 %v2876
      %v3652 = vunpack.c.l.b16 %v2877
      %v3653 = vunpack.c.l.b16 %v2878
      %v3654 = vunpack.c.l.b16 %v2879
      %v3655 = vunpack.c.l.b16 %v2880
      %v3656 = vunpack.c.l.b16 %v2881
      %v3657 = vunpack.c.l.b16 %v2882
      %v3658 = vunpack.c.l.b16 %v2883
      %v3659 = vunpack.c.l.b16 %v2884
      %v3660 = vunpack.c.l.b16 %v2885
      %v3661 = vunpack.c.l.b16 %v2886
      %v3662 = vunpack.c.l.b16 %v2887
      %v3663 = vunpack.c.l.b16 %v2888
      %v3664 = vunpack.c.l.b16 %v2889
      %v3665 = vunpack.c.l.b16 %v2890
      %v3666 = vunpack.c.l.b16 %v2891
      %v3667 = vunpack.c.l.b16 %v2892
      %v3668 = vunpack.c.l.b16 %v2893
      %v3669 = vunpack.c.l.b16 %v2894
      %v3670 = vunpack.c.l.b16 %v2895
      %v3671 = vunpack.c.l.b16 %v2896
      %v3672 = vunpack.c.l.b16 %v2897
      %v3673 = vunpack.c.l.b16 %v2898
      %v3674 = vunpack.c.l.b16 %v2899
      %v3675 = vunpack.c.l.b16 %v2900
      %v3676 = vunpack.c.l.b16 %v2901
      %v3677 = vunpack.c.l.b16 %v2902
      %v3678 = vunpack.c.l.b16 %v2903
      %v3679 = vunpack.c.l.b16 %v2904
      %v3680 = vunpack.c.l.b16 %v2905
      %v3681 = vunpack.c.l.b16 %v2906
      %v3682 = vunpack.c.l.b16 %v2907
      %v3683 = vunpack.c.l.b16 %v2908
      %v3684 = vunpack.c.l.b16 %v2909
      %v3685 = vunpack.c.l.b16 %v2910
      %v3686 = vunpack.c.l.b16 %v2911
      %v3687 = vunpack.c.l.b16 %v2912
      %v3688 = vunpack.c.l.b16 %v2913
      %v3689 = vunpack.c.l.b16 %v2914
      %v3690 = vunpack.c.l.b16 %v2915
      %v3691 = vunpack.c.l.b16 %v2916
      %v3692 = vunpack.c.l.b16 %v2917
      %v3693 = vunpack.c.l.b16 %v2918
      %v3694 = vunpack.c.l.b16 %v2919
      %v3695 = vunpack.c.l.b16 %v2920
      %v3696 = vunpack.c.l.b16 %v2921
      %v3697 = vunpack.c.l.b16 %v2922
      %v3698 = vunpack.c.l.b16 %v2923
      %v3699 = vunpack.c.l.b16 %v2924
      %v3700 = vunpack.c.l.b16 %v2925
      %v3701 = vunpack.c.l.b16 %v2926
      %v3702 = vunpack.c.l.b16 %v2927
      %v3703 = vunpack.c.l.b16 %v2928
      %v3704 = vunpack.c.l.b16 %v2929
      %v3705 = vunpack.c.l.b16 %v2930
      %v3706 = vunpack.c.l.b16 %v2931
      %v3707 = vunpack.c.l.b16 %v2932
      %v3708 = vunpack.c.l.b16 %v2933
      %v3709 = vunpack.c.l.b16 %v2934
      %v3710 = vunpack.c.l.b16 %v2935
      %v3711 = vunpack.c.l.b16 %v2936
      %v3712 = vunpack.c.l.b16 %v2937
      %v3713 = vunpack.c.l.b16 %v2938
      %v3714 = vunpack.c.l.b16 %v2939
      %v3715 = vunpack.c.l.b16 %v2940
      %v3716 = vunpack.c.l.b16 %v2941
      %v3717 = vunpack.c.l.b16 %v2942
      %v3718 = vunpack.c.l.b16 %v2943
      %v3719 = vunpack.c.l.b16 %v2944
      %v3720 = vunpack.c.l.b16 %v2945
      %v3721 = vunpack.c.l.b16 %v2946
      %v3722 = vunpack.c.l.b16 %v2947
      %v3723 = vunpack.c.l.b16 %v2948
      %v3724 = vunpack.c.l.b16 %v2949
      %v3725 = vunpack.c.l.b16 %v2950
      %v3726 = vunpack.c.l.b16 %v2951
      %v3727 = vunpack.c.l.b16 %v2952
      %v3728 = vunpack.c.l.b16 %v2953
      %v3729 = vunpack.c.l.b16 %v2954
      %v3730 = vunpack.c.l.b16 %v2955
      %v3731 = vunpack.c.l.b16 %v2956
      %v3732 = vunpack.c.l.b16 %v2957
      %v3733 = vunpack.c.l.b16 %v2958
      %v3734 = vunpack.c.l.b16 %v2959
      %v3735 = vunpack.c.l.b16 %v2960
      %v3736 = vunpack.c.l.b16 %v2961
      %v3737 = vunpack.c.l.b16 %v2962
      %v3738 = vunpack.c.l.b16 %v2963
      %v3739 = vunpack.c.l.b16 %v2964
      %v3740 = vunpack.c.l.b16 %v2965
      %v3741 = vunpack.c.l.b16 %v2966
      %v3742 = vunpack.c.l.b16 %v2967
      %v3743 = vunpack.c.l.b16 %v2968
      %v3744 = vunpack.c.l.b16 %v2969
      %v3745 = vunpack.c.l.b16 %v2970
      %v3746 = vunpack.c.l.b16 %v2971
      %v3747 = vunpack.c.l.b16 %v2972
      %v3748 = vunpack.c.l.b16 %v2973
      %v3749 = vunpack.c.l.b16 %v2974
      %v3750 = vunpack.c.l.b16 %v2975
      %v3751 = vunpack.c.l.b16 %v2976
      %v3752 = vunpack.c.l.b16 %v2977
      %v3753 = vunpack.c.l.b16 %v2978
      %v3754 = vunpack.c.l.b16 %v2979
      %v3755 = vunpack.c.l.b16 %v2980
      %v3756 = vunpack.c.l.b16 %v2981
      %v3757 = vunpack.c.l.b16 %v2982
      %v3758 = vunpack.c.l.b16 %v2983
      %v3759 = vunpack.c.l.b16 %v2984
      %v3760 = vunpack.c.l.b16 %v2985
      %v3761 = vunpack.c.l.b16 %v2986
      %v3762 = vunpack.c.l.b16 %v2987
      %v3763 = vunpack.c.l.b16 %v2988
      %v3764 = vunpack.c.l.b16 %v2989
      %v3765 = vunpack.c.l.b16 %v2990
      %v3766 = vunpack.c.l.b16 %v2991
      %v3767 = vunpack.c.l.b16 %v2992
      %v3768 = vunpack.c.l.b16 %v2993
      %vm3769 = vcmask 1041409
      %v3770 = vsel %vm3769, %v3529, %v3513
      %vm3771 = vcmask 1042434
      %v3772 = vsel %vm3771, %v3545, %v3770
      %vm3773 = vcmask 1043459
      %v3774 = vsel %vm3773, %v3561, %v3772
      %vm3775 = vcmask 1044484
      %v3776 = vsel %vm3775, %v3577, %v3774
      %vm3777 = vcmask 1045509
      %v3778 = vsel %vm3777, %v3593, %v3776
      %vm3779 = vcmask 1046534
      %v3780 = vsel %vm3779, %v3609, %v3778
      %vm3781 = vcmask 1047559
      %v3782 = vsel %vm3781, %v3625, %v3780
      %v3783 = vsel %vm3769, %v3530, %v3514
      %v3784 = vsel %vm3771, %v3546, %v3783
      %v3785 = vsel %vm3773, %v3562, %v3784
      %v3786 = vsel %vm3775, %v3578, %v3785
      %v3787 = vsel %vm3777, %v3594, %v3786
      %v3788 = vsel %vm3779, %v3610, %v3787
      %v3789 = vsel %vm3781, %v3626, %v3788
      %v3790 = vsel %vm3769, %v3531, %v3515
      %v3791 = vsel %vm3771, %v3547, %v3790
      %v3792 = vsel %vm3773, %v3563, %v3791
      %v3793 = vsel %vm3775, %v3579, %v3792
      %v3794 = vsel %vm3777, %v3595, %v3793
      %v3795 = vsel %vm3779, %v3611, %v3794
      %v3796 = vsel %vm3781, %v3627, %v3795
      %v3797 = vsel %vm3769, %v3532, %v3516
      %v3798 = vsel %vm3771, %v3548, %v3797
      %v3799 = vsel %vm3773, %v3564, %v3798
      %v3800 = vsel %vm3775, %v3580, %v3799
      %v3801 = vsel %vm3777, %v3596, %v3800
      %v3802 = vsel %vm3779, %v3612, %v3801
      %v3803 = vsel %vm3781, %v3628, %v3802
      %v3804 = vsel %vm3769, %v3533, %v3517
      %v3805 = vsel %vm3771, %v3549, %v3804
      %v3806 = vsel %vm3773, %v3565, %v3805
      %v3807 = vsel %vm3775, %v3581, %v3806
      %v3808 = vsel %vm3777, %v3597, %v3807
      %v3809 = vsel %vm3779, %v3613, %v3808
      %v3810 = vsel %vm3781, %v3629, %v3809
      %v3811 = vsel %vm3769, %v3534, %v3518
      %v3812 = vsel %vm3771, %v3550, %v3811
      %v3813 = vsel %vm3773, %v3566, %v3812
      %v3814 = vsel %vm3775, %v3582, %v3813
      %v3815 = vsel %vm3777, %v3598, %v3814
      %v3816 = vsel %vm3779, %v3614, %v3815
      %v3817 = vsel %vm3781, %v3630, %v3816
      %v3818 = vsel %vm3769, %v3535, %v3519
      %v3819 = vsel %vm3771, %v3551, %v3818
      %v3820 = vsel %vm3773, %v3567, %v3819
      %v3821 = vsel %vm3775, %v3583, %v3820
      %v3822 = vsel %vm3777, %v3599, %v3821
      %v3823 = vsel %vm3779, %v3615, %v3822
      %v3824 = vsel %vm3781, %v3631, %v3823
      %v3825 = vsel %vm3769, %v3536, %v3520
      %v3826 = vsel %vm3771, %v3552, %v3825
      %v3827 = vsel %vm3773, %v3568, %v3826
      %v3828 = vsel %vm3775, %v3584, %v3827
      %v3829 = vsel %vm3777, %v3600, %v3828
      %v3830 = vsel %vm3779, %v3616, %v3829
      %v3831 = vsel %vm3781, %v3632, %v3830
      %v3832 = vsel %vm3769, %v3537, %v3521
      %v3833 = vsel %vm3771, %v3553, %v3832
      %v3834 = vsel %vm3773, %v3569, %v3833
      %v3835 = vsel %vm3775, %v3585, %v3834
      %v3836 = vsel %vm3777, %v3601, %v3835
      %v3837 = vsel %vm3779, %v3617, %v3836
      %v3838 = vsel %vm3781, %v3633, %v3837
      %v3839 = vsel %vm3769, %v3538, %v3522
      %v3840 = vsel %vm3771, %v3554, %v3839
      %v3841 = vsel %vm3773, %v3570, %v3840
      %v3842 = vsel %vm3775, %v3586, %v3841
      %v3843 = vsel %vm3777, %v3602, %v3842
      %v3844 = vsel %vm3779, %v3618, %v3843
      %v3845 = vsel %vm3781, %v3634, %v3844
      %v3846 = vsel %vm3769, %v3539, %v3523
      %v3847 = vsel %vm3771, %v3555, %v3846
      %v3848 = vsel %vm3773, %v3571, %v3847
      %v3849 = vsel %vm3775, %v3587, %v3848
      %v3850 = vsel %vm3777, %v3603, %v3849
      %v3851 = vsel %vm3779, %v3619, %v3850
      %v3852 = vsel %vm3781, %v3635, %v3851
      %v3853 = vsel %vm3769, %v3540, %v3524
      %v3854 = vsel %vm3771, %v3556, %v3853
      %v3855 = vsel %vm3773, %v3572, %v3854
      %v3856 = vsel %vm3775, %v3588, %v3855
      %v3857 = vsel %vm3777, %v3604, %v3856
      %v3858 = vsel %vm3779, %v3620, %v3857
      %v3859 = vsel %vm3781, %v3636, %v3858
      %v3860 = vsel %vm3769, %v3541, %v3525
      %v3861 = vsel %vm3771, %v3557, %v3860
      %v3862 = vsel %vm3773, %v3573, %v3861
      %v3863 = vsel %vm3775, %v3589, %v3862
      %v3864 = vsel %vm3777, %v3605, %v3863
      %v3865 = vsel %vm3779, %v3621, %v3864
      %v3866 = vsel %vm3781, %v3637, %v3865
      %v3867 = vsel %vm3769, %v3542, %v3526
      %v3868 = vsel %vm3771, %v3558, %v3867
      %v3869 = vsel %vm3773, %v3574, %v3868
      %v3870 = vsel %vm3775, %v3590, %v3869
      %v3871 = vsel %vm3777, %v3606, %v3870
      %v3872 = vsel %vm3779, %v3622, %v3871
      %v3873 = vsel %vm3781, %v3638, %v3872
      %v3874 = vsel %vm3769, %v3543, %v3527
      %v3875 = vsel %vm3771, %v3559, %v3874
      %v3876 = vsel %vm3773, %v3575, %v3875
      %v3877 = vsel %vm3775, %v3591, %v3876
      %v3878 = vsel %vm3777, %v3607, %v3877
      %v3879 = vsel %vm3779, %v3623, %v3878
      %v3880 = vsel %vm3781, %v3639, %v3879
      %v3881 = vsel %vm3769, %v3544, %v3528
      %v3882 = vsel %vm3771, %v3560, %v3881
      %v3883 = vsel %vm3773, %v3576, %v3882
      %v3884 = vsel %vm3775, %v3592, %v3883
      %v3885 = vsel %vm3777, %v3608, %v3884
      %v3886 = vsel %vm3779, %v3624, %v3885
      %v3887 = vsel %vm3781, %v3640, %v3886
      %v3888 = vsel %vm3769, %v3657, %v3641
      %v3889 = vsel %vm3771, %v3673, %v3888
      %v3890 = vsel %vm3773, %v3689, %v3889
      %v3891 = vsel %vm3775, %v3705, %v3890
      %v3892 = vsel %vm3777, %v3721, %v3891
      %v3893 = vsel %vm3779, %v3737, %v3892
      %v3894 = vsel %vm3781, %v3753, %v3893
      %v3895 = vsel %vm3769, %v3658, %v3642
      %v3896 = vsel %vm3771, %v3674, %v3895
      %v3897 = vsel %vm3773, %v3690, %v3896
      %v3898 = vsel %vm3775, %v3706, %v3897
      %v3899 = vsel %vm3777, %v3722, %v3898
      %v3900 = vsel %vm3779, %v3738, %v3899
      %v3901 = vsel %vm3781, %v3754, %v3900
      %v3902 = vsel %vm3769, %v3659, %v3643
      %v3903 = vsel %vm3771, %v3675, %v3902
      %v3904 = vsel %vm3773, %v3691, %v3903
      %v3905 = vsel %vm3775, %v3707, %v3904
      %v3906 = vsel %vm3777, %v3723, %v3905
      %v3907 = vsel %vm3779, %v3739, %v3906
      %v3908 = vsel %vm3781, %v3755, %v3907
      %v3909 = vsel %vm3769, %v3660, %v3644
      %v3910 = vsel %vm3771, %v3676, %v3909
      %v3911 = vsel %vm3773, %v3692, %v3910
      %v3912 = vsel %vm3775, %v3708, %v3911
      %v3913 = vsel %vm3777, %v3724, %v3912
      %v3914 = vsel %vm3779, %v3740, %v3913
      %v3915 = vsel %vm3781, %v3756, %v3914
      %v3916 = vsel %vm3769, %v3661, %v3645
      %v3917 = vsel %vm3771, %v3677, %v3916
      %v3918 = vsel %vm3773, %v3693, %v3917
      %v3919 = vsel %vm3775, %v3709, %v3918
      %v3920 = vsel %vm3777, %v3725, %v3919
      %v3921 = vsel %vm3779, %v3741, %v3920
      %v3922 = vsel %vm3781, %v3757, %v3921
      %v3923 = vsel %vm3769, %v3662, %v3646
      %v3924 = vsel %vm3771, %v3678, %v3923
      %v3925 = vsel %vm3773, %v3694, %v3924
      %v3926 = vsel %vm3775, %v3710, %v3925
      %v3927 = vsel %vm3777, %v3726, %v3926
      %v3928 = vsel %vm3779, %v3742, %v3927
      %v3929 = vsel %vm3781, %v3758, %v3928
      %v3930 = vsel %vm3769, %v3663, %v3647
      %v3931 = vsel %vm3771, %v3679, %v3930
      %v3932 = vsel %vm3773, %v3695, %v3931
      %v3933 = vsel %vm3775, %v3711, %v3932
      %v3934 = vsel %vm3777, %v3727, %v3933
      %v3935 = vsel %vm3779, %v3743, %v3934
      %v3936 = vsel %vm3781, %v3759, %v3935
      %v3937 = vsel %vm3769, %v3664, %v3648
      %v3938 = vsel %vm3771, %v3680, %v3937
      %v3939 = vsel %vm3773, %v3696, %v3938
      %v3940 = vsel %vm3775, %v3712, %v3939
      %v3941 = vsel %vm3777, %v3728, %v3940
      %v3942 = vsel %vm3779, %v3744, %v3941
      %v3943 = vsel %vm3781, %v3760, %v3942
      %v3944 = vsel %vm3769, %v3665, %v3649
      %v3945 = vsel %vm3771, %v3681, %v3944
      %v3946 = vsel %vm3773, %v3697, %v3945
      %v3947 = vsel %vm3775, %v3713, %v3946
      %v3948 = vsel %vm3777, %v3729, %v3947
      %v3949 = vsel %vm3779, %v3745, %v3948
      %v3950 = vsel %vm3781, %v3761, %v3949
      %v3951 = vsel %vm3769, %v3666, %v3650
      %v3952 = vsel %vm3771, %v3682, %v3951
      %v3953 = vsel %vm3773, %v3698, %v3952
      %v3954 = vsel %vm3775, %v3714, %v3953
      %v3955 = vsel %vm3777, %v3730, %v3954
      %v3956 = vsel %vm3779, %v3746, %v3955
      %v3957 = vsel %vm3781, %v3762, %v3956
      %v3958 = vsel %vm3769, %v3667, %v3651
      %v3959 = vsel %vm3771, %v3683, %v3958
      %v3960 = vsel %vm3773, %v3699, %v3959
      %v3961 = vsel %vm3775, %v3715, %v3960
      %v3962 = vsel %vm3777, %v3731, %v3961
      %v3963 = vsel %vm3779, %v3747, %v3962
      %v3964 = vsel %vm3781, %v3763, %v3963
      %v3965 = vsel %vm3769, %v3668, %v3652
      %v3966 = vsel %vm3771, %v3684, %v3965
      %v3967 = vsel %vm3773, %v3700, %v3966
      %v3968 = vsel %vm3775, %v3716, %v3967
      %v3969 = vsel %vm3777, %v3732, %v3968
      %v3970 = vsel %vm3779, %v3748, %v3969
      %v3971 = vsel %vm3781, %v3764, %v3970
      %v3972 = vsel %vm3769, %v3669, %v3653
      %v3973 = vsel %vm3771, %v3685, %v3972
      %v3974 = vsel %vm3773, %v3701, %v3973
      %v3975 = vsel %vm3775, %v3717, %v3974
      %v3976 = vsel %vm3777, %v3733, %v3975
      %v3977 = vsel %vm3779, %v3749, %v3976
      %v3978 = vsel %vm3781, %v3765, %v3977
      %v3979 = vsel %vm3769, %v3670, %v3654
      %v3980 = vsel %vm3771, %v3686, %v3979
      %v3981 = vsel %vm3773, %v3702, %v3980
      %v3982 = vsel %vm3775, %v3718, %v3981
      %v3983 = vsel %vm3777, %v3734, %v3982
      %v3984 = vsel %vm3779, %v3750, %v3983
      %v3985 = vsel %vm3781, %v3766, %v3984
      %v3986 = vsel %vm3769, %v3671, %v3655
      %v3987 = vsel %vm3771, %v3687, %v3986
      %v3988 = vsel %vm3773, %v3703, %v3987
      %v3989 = vsel %vm3775, %v3719, %v3988
      %v3990 = vsel %vm3777, %v3735, %v3989
      %v3991 = vsel %vm3779, %v3751, %v3990
      %v3992 = vsel %vm3781, %v3767, %v3991
      %v3993 = vsel %vm3769, %v3672, %v3656
      %v3994 = vsel %vm3771, %v3688, %v3993
      %v3995 = vsel %vm3773, %v3704, %v3994
      %v3996 = vsel %vm3775, %v3720, %v3995
      %v3997 = vsel %vm3777, %v3736, %v3996
      %v3998 = vsel %vm3779, %v3752, %v3997
      %v3999 = vsel %vm3781, %v3768, %v3998
      %v4000 = vpack.c.b16 %v3894, %v3782
      %v4001 = vpack.c.b16 %v3901, %v3789
      %v4002 = vpack.c.b16 %v3908, %v3796
      %v4003 = vpack.c.b16 %v3915, %v3803
      %v4004 = vpack.c.b16 %v3922, %v3810
      %v4005 = vpack.c.b16 %v3929, %v3817
      %v4006 = vpack.c.b16 %v3936, %v3824
      %v4007 = vpack.c.b16 %v3943, %v3831
      %v4008 = vpack.c.b16 %v3950, %v3838
      %v4009 = vpack.c.b16 %v3957, %v3845
      %v4010 = vpack.c.b16 %v3964, %v3852
      %v4011 = vpack.c.b16 %v3971, %v3859
      %v4012 = vpack.c.b16 %v3978, %v3866
      %v4013 = vpack.c.b16 %v3985, %v3873
      %v4014 = vpack.c.b16 %v3992, %v3880
      %v4015 = vpack.c.b16 %v3999, %v3887
      %v4288 = vunpack.c.l.b16 %v2994
      %v4289 = vunpack.c.l.b16 %v2995
      %v4290 = vunpack.c.l.b16 %v2996
      %v4291 = vunpack.c.l.b16 %v2997
      %v4292 = vunpack.c.l.b16 %v2998
      %v4293 = vunpack.c.l.b16 %v2999
      %v4294 = vunpack.c.l.b16 %v3000
      %v4295 = vunpack.c.l.b16 %v3001
      %v4296 = vunpack.c.l.b16 %v3002
      %v4297 = vunpack.c.l.b16 %v3003
      %v4298 = vunpack.c.l.b16 %v3004
      %v4299 = vunpack.c.l.b16 %v3005
      %v4300 = vunpack.c.l.b16 %v3006
      %v4301 = vunpack.c.l.b16 %v3007
      %v4302 = vunpack.c.l.b16 %v3008
      %v4303 = vunpack.c.l.b16 %v3009
      %v4304 = vunpack.c.l.b16 %v3010
      %v4305 = vunpack.c.l.b16 %v3011
      %v4306 = vunpack.c.l.b16 %v3012
      %v4307 = vunpack.c.l.b16 %v3013
      %v4308 = vunpack.c.l.b16 %v3014
      %v4309 = vunpack.c.l.b16 %v3015
      %v4310 = vunpack.c.l.b16 %v3016
      %v4311 = vunpack.c.l.b16 %v3017
      %v4312 = vunpack.c.l.b16 %v3018
      %v4313 = vunpack.c.l.b16 %v3019
      %v4314 = vunpack.c.l.b16 %v3020
      %v4315 = vunpack.c.l.b16 %v3021
      %v4316 = vunpack.c.l.b16 %v3022
      %v4317 = vunpack.c.l.b16 %v3023
      %v4318 = vunpack.c.l.b16 %v3024
      %v4319 = vunpack.c.l.b16 %v3025
      %v4320 = vunpack.c.l.b16 %v3026
      %v4321 = vunpack.c.l.b16 %v3027
      %v4322 = vunpack.c.l.b16 %v3028
      %v4323 = vunpack.c.l.b16 %v3029
      %v4324 = vunpack.c.l.b16 %v3030
      %v4325 = vunpack.c.l.b16 %v3031
      %v4326 = vunpack.c.l.b16 %v3032
      %v4327 = vunpack.c.l.b16 %v3033
      %v4328 = vunpack.c.l.b16 %v3034
      %v4329 = vunpack.c.l.b16 %v3035
      %v4330 = vunpack.c.l.b16 %v3036
      %v4331 = vunpack.c.l.b16 %v3037
      %v4332 = vunpack.c.l.b16 %v3038
      %v4333 = vunpack.c.l.b16 %v3039
      %v4334 = vunpack.c.l.b16 %v3040
      %v4335 = vunpack.c.l.b16 %v3041
      %v4336 = vunpack.c.l.b16 %v3042
      %v4337 = vunpack.c.l.b16 %v3043
      %v4338 = vunpack.c.l.b16 %v3044
      %v4339 = vunpack.c.l.b16 %v3045
      %v4340 = vunpack.c.l.b16 %v3046
      %v4341 = vunpack.c.l.b16 %v3047
      %v4342 = vunpack.c.l.b16 %v3048
      %v4343 = vunpack.c.l.b16 %v3049
      %v4344 = vunpack.c.l.b16 %v3050
      %v4345 = vunpack.c.l.b16 %v3051
      %v4346 = vunpack.c.l.b16 %v3052
      %v4347 = vunpack.c.l.b16 %v3053
      %v4348 = vunpack.c.l.b16 %v3054
      %v4349 = vunpack.c.l.b16 %v3055
      %v4350 = vunpack.c.l.b16 %v3056
      %v4351 = vunpack.c.l.b16 %v3057
      %v4352 = vunpack.c.l.b16 %v3058
      %v4353 = vunpack.c.l.b16 %v3059
      %v4354 = vunpack.c.l.b16 %v3060
      %v4355 = vunpack.c.l.b16 %v3061
      %v4356 = vunpack.c.l.b16 %v3062
      %v4357 = vunpack.c.l.b16 %v3063
      %v4358 = vunpack.c.l.b16 %v3064
      %v4359 = vunpack.c.l.b16 %v3065
      %v4360 = vunpack.c.l.b16 %v3066
      %v4361 = vunpack.c.l.b16 %v3067
      %v4362 = vunpack.c.l.b16 %v3068
      %v4363 = vunpack.c.l.b16 %v3069
      %v4364 = vunpack.c.l.b16 %v3070
      %v4365 = vunpack.c.l.b16 %v3071
      %v4366 = vunpack.c.l.b16 %v3072
      %v4367 = vunpack.c.l.b16 %v3073
      %v4368 = vunpack.c.l.b16 %v3074
      %v4369 = vunpack.c.l.b16 %v3075
      %v4370 = vunpack.c.l.b16 %v3076
      %v4371 = vunpack.c.l.b16 %v3077
      %v4372 = vunpack.c.l.b16 %v3078
      %v4373 = vunpack.c.l.b16 %v3079
      %v4374 = vunpack.c.l.b16 %v3080
      %v4375 = vunpack.c.l.b16 %v3081
      %v4376 = vunpack.c.l.b16 %v3082
      %v4377 = vunpack.c.l.b16 %v3083
      %v4378 = vunpack.c.l.b16 %v3084
      %v4379 = vunpack.c.l.b16 %v3085
      %v4380 = vunpack.c.l.b16 %v3086
      %v4381 = vunpack.c.l.b16 %v3087
      %v4382 = vunpack.c.l.b16 %v3088
      %v4383 = vunpack.c.l.b16 %v3089
      %v4384 = vunpack.c.l.b16 %v3090
      %v4385 = vunpack.c.l.b16 %v3091
      %v4386 = vunpack.c.l.b16 %v3092
      %v4387 = vunpack.c.l.b16 %v3093
      %v4388 = vunpack.c.l.b16 %v3094
      %v4389 = vunpack.c.l.b16 %v3095
      %v4390 = vunpack.c.l.b16 %v3096
      %v4391 = vunpack.c.l.b16 %v3097
      %v4392 = vunpack.c.l.b16 %v3098
      %v4393 = vunpack.c.l.b16 %v3099
      %v4394 = vunpack.c.l.b16 %v3100
      %v4395 = vunpack.c.l.b16 %v3101
      %v4396 = vunpack.c.l.b16 %v3102
      %v4397 = vunpack.c.l.b16 %v3103
      %v4398 = vunpack.c.l.b16 %v3104
      %v4399 = vunpack.c.l.b16 %v3105
      %v4400 = vunpack.c.l.b16 %v3106
      %v4401 = vunpack.c.l.b16 %v3107
      %v4402 = vunpack.c.l.b16 %v3108
      %v4403 = vunpack.c.l.b16 %v3109
      %v4404 = vunpack.c.l.b16 %v3110
      %v4405 = vunpack.c.l.b16 %v3111
      %v4406 = vunpack.c.l.b16 %v3112
      %v4407 = vunpack.c.l.b16 %v3113
      %v4408 = vunpack.c.l.b16 %v3114
      %v4409 = vunpack.c.l.b16 %v3115
      %v4410 = vunpack.c.l.b16 %v3116
      %v4411 = vunpack.c.l.b16 %v3117
      %v4412 = vunpack.c.l.b16 %v3118
      %v4413 = vunpack.c.l.b16 %v3119
      %v4414 = vunpack.c.l.b16 %v3120
      %v4415 = vunpack.c.l.b16 %v3121
      %v4416 = vunpack.c.l.b16 %v3122
      %v4417 = vunpack.c.l.b16 %v3123
      %v4418 = vunpack.c.l.b16 %v3124
      %v4419 = vunpack.c.l.b16 %v3125
      %v4420 = vunpack.c.l.b16 %v3126
      %v4421 = vunpack.c.l.b16 %v3127
      %v4422 = vunpack.c.l.b16 %v3128
      %v4423 = vunpack.c.l.b16 %v3129
      %v4424 = vunpack.c.l.b16 %v3130
      %v4425 = vunpack.c.l.b16 %v3131
      %v4426 = vunpack.c.l.b16 %v3132
      %v4427 = vunpack.c.l.b16 %v3133
      %v4428 = vunpack.c.l.b16 %v3134
      %v4429 = vunpack.c.l.b16 %v3135
      %v4430 = vunpack.c.l.b16 %v3136
      %v4431 = vunpack.c.l.b16 %v3137
      %v4432 = vunpack.c.l.b16 %v3138
      %v4433 = vunpack.c.l.b16 %v3139
      %v4434 = vunpack.c.l.b16 %v3140
      %v4435 = vunpack.c.l.b16 %v3141
      %v4436 = vunpack.c.l.b16 %v3142
      %v4437 = vunpack.c.l.b16 %v3143
      %v4438 = vunpack.c.l.b16 %v3144
      %v4439 = vunpack.c.l.b16 %v3145
      %v4440 = vunpack.c.l.b16 %v3146
      %v4441 = vunpack.c.l.b16 %v3147
      %v4442 = vunpack.c.l.b16 %v3148
      %v4443 = vunpack.c.l.b16 %v3149
      %v4444 = vunpack.c.l.b16 %v3150
      %v4445 = vunpack.c.l.b16 %v3151
      %v4446 = vunpack.c.l.b16 %v3152
      %v4447 = vunpack.c.l.b16 %v3153
      %v4448 = vunpack.c.l.b16 %v3154
      %v4449 = vunpack.c.l.b16 %v3155
      %v4450 = vunpack.c.l.b16 %v3156
      %v4451 = vunpack.c.l.b16 %v3157
      %v4452 = vunpack.c.l.b16 %v3158
      %v4453 = vunpack.c.l.b16 %v3159
      %v4454 = vunpack.c.l.b16 %v3160
      %v4455 = vunpack.c.l.b16 %v3161
      %v4456 = vunpack.c.l.b16 %v3162
      %v4457 = vunpack.c.l.b16 %v3163
      %v4458 = vunpack.c.l.b16 %v3164
      %v4459 = vunpack.c.l.b16 %v3165
      %v4460 = vunpack.c.l.b16 %v3166
      %v4461 = vunpack.c.l.b16 %v3167
      %v4462 = vunpack.c.l.b16 %v3168
      %v4463 = vunpack.c.l.b16 %v3169
      %v4464 = vunpack.c.l.b16 %v3170
      %v4465 = vunpack.c.l.b16 %v3171
      %v4466 = vunpack.c.l.b16 %v3172
      %v4467 = vunpack.c.l.b16 %v3173
      %v4468 = vunpack.c.l.b16 %v3174
      %v4469 = vunpack.c.l.b16 %v3175
      %v4470 = vunpack.c.l.b16 %v3176
      %v4471 = vunpack.c.l.b16 %v3177
      %v4472 = vunpack.c.l.b16 %v3178
      %v4473 = vunpack.c.l.b16 %v3179
      %v4474 = vunpack.c.l.b16 %v3180
      %v4475 = vunpack.c.l.b16 %v3181
      %v4476 = vunpack.c.l.b16 %v3182
      %v4477 = vunpack.c.l.b16 %v3183
      %v4478 = vunpack.c.l.b16 %v3184
      %v4479 = vunpack.c.l.b16 %v3185
      %v4480 = vunpack.c.l.b16 %v3186
      %v4481 = vunpack.c.l.b16 %v3187
      %v4482 = vunpack.c.l.b16 %v3188
      %v4483 = vunpack.c.l.b16 %v3189
      %v4484 = vunpack.c.l.b16 %v3190
      %v4485 = vunpack.c.l.b16 %v3191
      %v4486 = vunpack.c.l.b16 %v3192
      %v4487 = vunpack.c.l.b16 %v3193
      %v4488 = vunpack.c.l.b16 %v3194
      %v4489 = vunpack.c.l.b16 %v3195
      %v4490 = vunpack.c.l.b16 %v3196
      %v4491 = vunpack.c.l.b16 %v3197
      %v4492 = vunpack.c.l.b16 %v3198
      %v4493 = vunpack.c.l.b16 %v3199
      %v4494 = vunpack.c.l.b16 %v3200
      %v4495 = vunpack.c.l.b16 %v3201
      %v4496 = vunpack.c.l.b16 %v3202
      %v4497 = vunpack.c.l.b16 %v3203
      %v4498 = vunpack.c.l.b16 %v3204
      %v4499 = vunpack.c.l.b16 %v3205
      %v4500 = vunpack.c.l.b16 %v3206
      %v4501 = vunpack.c.l.b16 %v3207
      %v4502 = vunpack.c.l.b16 %v3208
      %v4503 = vunpack.c.l.b16 %v3209
      %v4504 = vunpack.c.l.b16 %v3210
      %v4505 = vunpack.c.l.b16 %v3211
      %v4506 = vunpack.c.l.b16 %v3212
      %v4507 = vunpack.c.l.b16 %v3213
      %v4508 = vunpack.c.l.b16 %v3214
      %v4509 = vunpack.c.l.b16 %v3215
      %v4510 = vunpack.c.l.b16 %v3216
      %v4511 = vunpack.c.l.b16 %v3217
      %v4512 = vunpack.c.l.b16 %v3218
      %v4513 = vunpack.c.l.b16 %v3219
      %v4514 = vunpack.c.l.b16 %v3220
      %v4515 = vunpack.c.l.b16 %v3221
      %v4516 = vunpack.c.l.b16 %v3222
      %v4517 = vunpack.c.l.b16 %v3223
      %v4518 = vunpack.c.l.b16 %v3224
      %v4519 = vunpack.c.l.b16 %v3225
      %v4520 = vunpack.c.l.b16 %v3226
      %v4521 = vunpack.c.l.b16 %v3227
      %v4522 = vunpack.c.l.b16 %v3228
      %v4523 = vunpack.c.l.b16 %v3229
      %v4524 = vunpack.c.l.b16 %v3230
      %v4525 = vunpack.c.l.b16 %v3231
      %v4526 = vunpack.c.l.b16 %v3232
      %v4527 = vunpack.c.l.b16 %v3233
      %v4528 = vunpack.c.l.b16 %v3234
      %v4529 = vunpack.c.l.b16 %v3235
      %v4530 = vunpack.c.l.b16 %v3236
      %v4531 = vunpack.c.l.b16 %v3237
      %v4532 = vunpack.c.l.b16 %v3238
      %v4533 = vunpack.c.l.b16 %v3239
      %v4534 = vunpack.c.l.b16 %v3240
      %v4535 = vunpack.c.l.b16 %v3241
      %v4536 = vunpack.c.l.b16 %v3242
      %v4537 = vunpack.c.l.b16 %v3243
      %v4538 = vunpack.c.l.b16 %v3244
      %v4539 = vunpack.c.l.b16 %v3245
      %v4540 = vunpack.c.l.b16 %v3246
      %v4541 = vunpack.c.l.b16 %v3247
      %v4542 = vunpack.c.l.b16 %v3248
      %v4543 = vunpack.c.l.b16 %v3249
      %v4544 = vpack.c.b16 %v4289, %v4288
      %v4545 = vpack.c.b16 %v4291, %v4290
      %v4546 = vpack.c.b16 %v4293, %v4292
      %v4547 = vpack.c.b16 %v4295, %v4294
      %v4548 = vpack.c.b16 %v4297, %v4296
      %v4549 = vpack.c.b16 %v4299, %v4298
      %v4550 = vpack.c.b16 %v4301, %v4300
      %v4551 = vpack.c.b16 %v4303, %v4302
      %v4552 = vpack.c.b16 %v4305, %v4304
      %v4553 = vpack.c.b16 %v4307, %v4306
      %v4554 = vpack.c.b16 %v4309, %v4308
      %v4555 = vpack.c.b16 %v4311, %v4310
      %v4556 = vpack.c.b16 %v4313, %v4312
      %v4557 = vpack.c.b16 %v4315, %v4314
      %v4558 = vpack.c.b16 %v4317, %v4316
      %v4559 = vpack.c.b16 %v4319, %v4318
      %v4560 = vpack.c.b16 %v4321, %v4320
      %v4561 = vpack.c.b16 %v4323, %v4322
      %v4562 = vpack.c.b16 %v4325, %v4324
      %v4563 = vpack.c.b16 %v4327, %v4326
      %v4564 = vpack.c.b16 %v4329, %v4328
      %v4565 = vpack.c.b16 %v4331, %v4330
      %v4566 = vpack.c.b16 %v4333, %v4332
      %v4567 = vpack.c.b16 %v4335, %v4334
      %v4568 = vpack.c.b16 %v4337, %v4336
      %v4569 = vpack.c.b16 %v4339, %v4338
      %v4570 = vpack.c.b16 %v4341, %v4340
      %v4571 = vpack.c.b16 %v4343, %v4342
      %v4572 = vpack.c.b16 %v4345, %v4344
      %v4573 = vpack.c.b16 %v4347, %v4346
      %v4574 = vpack.c.b16 %v4349, %v4348
      %v4575 = vpack.c.b16 %v4351, %v4350
      %v4576 = vpack.c.b16 %v4353, %v4352
      %v4577 = vpack.c.b16 %v4355, %v4354
      %v4578 = vpack.c.b16 %v4357, %v4356
      %v4579 = vpack.c.b16 %v4359, %v4358
      %v4580 = vpack.c.b16 %v4361, %v4360
      %v4581 = vpack.c.b16 %v4363, %v4362
      %v4582 = vpack.c.b16 %v4365, %v4364
      %v4583 = vpack.c.b16 %v4367, %v4366
      %v4584 = vpack.c.b16 %v4369, %v4368
      %v4585 = vpack.c.b16 %v4371, %v4370
      %v4586 = vpack.c.b16 %v4373, %v4372
      %v4587 = vpack.c.b16 %v4375, %v4374
      %v4588 = vpack.c.b16 %v4377, %v4376
      %v4589 = vpack.c.b16 %v4379, %v4378
      %v4590 = vpack.c.b16 %v4381, %v4380
      %v4591 = vpack.c.b16 %v4383, %v4382
      %v4592 = vpack.c.b16 %v4385, %v4384
      %v4593 = vpack.c.b16 %v4387, %v4386
      %v4594 = vpack.c.b16 %v4389, %v4388
      %v4595 = vpack.c.b16 %v4391, %v4390
      %v4596 = vpack.c.b16 %v4393, %v4392
      %v4597 = vpack.c.b16 %v4395, %v4394
      %v4598 = vpack.c.b16 %v4397, %v4396
      %v4599 = vpack.c.b16 %v4399, %v4398
      %v4600 = vpack.c.b16 %v4401, %v4400
      %v4601 = vpack.c.b16 %v4403, %v4402
      %v4602 = vpack.c.b16 %v4405, %v4404
      %v4603 = vpack.c.b16 %v4407, %v4406
      %v4604 = vpack.c.b16 %v4409, %v4408
      %v4605 = vpack.c.b16 %v4411, %v4410
      %v4606 = vpack.c.b16 %v4413, %v4412
      %v4607 = vpack.c.b16 %v4415, %v4414
      %v4608 = vpack.c.b16 %v4417, %v4416
      %v4609 = vpack.c.b16 %v4419, %v4418
      %v4610 = vpack.c.b16 %v4421, %v4420
      %v4611 = vpack.c.b16 %v4423, %v4422
      %v4612 = vpack.c.b16 %v4425, %v4424
      %v4613 = vpack.c.b16 %v4427, %v4426
      %v4614 = vpack.c.b16 %v4429, %v4428
      %v4615 = vpack.c.b16 %v4431, %v4430
      %v4616 = vpack.c.b16 %v4433, %v4432
      %v4617 = vpack.c.b16 %v4435, %v4434
      %v4618 = vpack.c.b16 %v4437, %v4436
      %v4619 = vpack.c.b16 %v4439, %v4438
      %v4620 = vpack.c.b16 %v4441, %v4440
      %v4621 = vpack.c.b16 %v4443, %v4442
      %v4622 = vpack.c.b16 %v4445, %v4444
      %v4623 = vpack.c.b16 %v4447, %v4446
      %v4624 = vpack.c.b16 %v4449, %v4448
      %v4625 = vpack.c.b16 %v4451, %v4450
      %v4626 = vpack.c.b16 %v4453, %v4452
      %v4627 = vpack.c.b16 %v4455, %v4454
      %v4628 = vpack.c.b16 %v4457, %v4456
      %v4629 = vpack.c.b16 %v4459, %v4458
      %v4630 = vpack.c.b16 %v4461, %v4460
      %v4631 = vpack.c.b16 %v4463, %v4462
      %v4632 = vpack.c.b16 %v4465, %v4464
      %v4633 = vpack.c.b16 %v4467, %v4466
      %v4634 = vpack.c.b16 %v4469, %v4468
      %v4635 = vpack.c.b16 %v4471, %v4470
      %v4636 = vpack.c.b16 %v4473, %v4472
      %v4637 = vpack.c.b16 %v4475, %v4474
      %v4638 = vpack.c.b16 %v4477, %v4476
      %v4639 = vpack.c.b16 %v4479, %v4478
      %v4640 = vpack.c.b16 %v4481, %v4480
      %v4641 = vpack.c.b16 %v4483, %v4482
      %v4642 = vpack.c.b16 %v4485, %v4484
      %v4643 = vpack.c.b16 %v4487, %v4486
      %v4644 = vpack.c.b16 %v4489, %v4488
      %v4645 = vpack.c.b16 %v4491, %v4490
      %v4646 = vpack.c.b16 %v4493, %v4492
      %v4647 = vpack.c.b16 %v4495, %v4494
      %v4648 = vpack.c.b16 %v4497, %v4496
      %v4649 = vpack.c.b16 %v4499, %v4498
      %v4650 = vpack.c.b16 %v4501, %v4500
      %v4651 = vpack.c.b16 %v4503, %v4502
      %v4652 = vpack.c.b16 %v4505, %v4504
      %v4653 = vpack.c.b16 %v4507, %v4506
      %v4654 = vpack.c.b16 %v4509, %v4508
      %v4655 = vpack.c.b16 %v4511, %v4510
      %v4656 = vpack.c.b16 %v4513, %v4512
      %v4657 = vpack.c.b16 %v4515, %v4514
      %v4658 = vpack.c.b16 %v4517, %v4516
      %v4659 = vpack.c.b16 %v4519, %v4518
      %v4660 = vpack.c.b16 %v4521, %v4520
      %v4661 = vpack.c.b16 %v4523, %v4522
      %v4662 = vpack.c.b16 %v4525, %v4524
      %v4663 = vpack.c.b16 %v4527, %v4526
      %v4664 = vpack.c.b16 %v4529, %v4528
      %v4665 = vpack.c.b16 %v4531, %v4530
      %v4666 = vpack.c.b16 %v4533, %v4532
      %v4667 = vpack.c.b16 %v4535, %v4534
      %v4668 = vpack.c.b16 %v4537, %v4536
      %v4669 = vpack.c.b16 %v4539, %v4538
      %v4670 = vpack.c.b16 %v4541, %v4540
      %v4671 = vpack.c.b16 %v4543, %v4542
      %4800 = vmatprep.subr.bf16.mxu0 0
      %4801 = vmatpush1.bf16.msra.mxu0 %v4544
      %4802 = vmatprep.subr.bf16.mxu0 0
      %4803 = vmatpush1.bf16.msra.mxu0 %v4545
      %4804 = vmatprep.subr.bf16.mxu0 0
      %4805 = vmatpush1.bf16.msra.mxu0 %v4546
      %4806 = vmatprep.subr.bf16.mxu0 0
      %4807 = vmatpush1.bf16.msra.mxu0 %v4547
      %4808 = vmatprep.subr.bf16.mxu0 0
      %4809 = vmatpush1.bf16.msra.mxu0 %v4548
      %4810 = vmatprep.subr.bf16.mxu0 0
      %4811 = vmatpush1.bf16.msra.mxu0 %v4549
      %4812 = vmatprep.subr.bf16.mxu0 0
      %4813 = vmatpush1.bf16.msra.mxu0 %v4550
      %4814 = vmatprep.subr.bf16.mxu0 0
      %4815 = vmatpush1.bf16.msra.mxu0 %v4551
      %4816 = vmatprep.subr.bf16.mxu0 0
      %4817 = vmatpush1.bf16.msra.mxu0 %v4552
      %4818 = vmatprep.subr.bf16.mxu0 0
      %4819 = vmatpush1.bf16.msra.mxu0 %v4553
      %4820 = vmatprep.subr.bf16.mxu0 0
      %4821 = vmatpush1.bf16.msra.mxu0 %v4554
      %4822 = vmatprep.subr.bf16.mxu0 0
      %4823 = vmatpush1.bf16.msra.mxu0 %v4555
      %4824 = vmatprep.subr.bf16.mxu0 0
      %4825 = vmatpush1.bf16.msra.mxu0 %v4556
      %4826 = vmatprep.subr.bf16.mxu0 0
      %4827 = vmatpush1.bf16.msra.mxu0 %v4557
      %4828 = vmatprep.subr.bf16.mxu0 0
      %4829 = vmatpush1.bf16.msra.mxu0 %v4558
      %4830 = vmatprep.subr.bf16.mxu0 0
      %4831 = vmatpush1.bf16.msra.mxu0 %v4559
      %4832 = vmatprep.mubr.bf16.mxu0 %v4001
      %4833 = vmatmul.mubr.bf16.gmra.mrb[0].mxu0 %v4000
      %v4834 = vpop.f32.mrb[0].mxu0
      %v4835 = vadd.f32 %v3255, %v4834
      %v4836 = vpop.f32.mrb[0].mxu0
      %v4837 = vpop.f32.mrb[0].mxu0
      %v4838 = vadd.f32 %v3255, %v4837
      %v4839 = vpop.f32.mrb[0].mxu0
      %4840 = vdwg.mxu0
      %4841 = vmatprep.subr.bf16.mxu0 0
      %4842 = vmatpush1.bf16.msra.mxu0 %v4560
      %4843 = vmatprep.subr.bf16.mxu0 0
      %4844 = vmatpush1.bf16.msra.mxu0 %v4561
      %4845 = vmatprep.subr.bf16.mxu0 0
      %4846 = vmatpush1.bf16.msra.mxu0 %v4562
      %4847 = vmatprep.subr.bf16.mxu0 0
      %4848 = vmatpush1.bf16.msra.mxu0 %v4563
      %4849 = vmatprep.subr.bf16.mxu0 0
      %4850 = vmatpush1.bf16.msra.mxu0 %v4564
      %4851 = vmatprep.subr.bf16.mxu0 0
      %4852 = vmatpush1.bf16.msra.mxu0 %v4565
      %4853 = vmatprep.subr.bf16.mxu0 0
      %4854 = vmatpush1.bf16.msra.mxu0 %v4566
      %4855 = vmatprep.subr.bf16.mxu0 0
      %4856 = vmatpush1.bf16.msra.mxu0 %v4567
      %4857 = vmatprep.subr.bf16.mxu0 0
      %4858 = vmatpush1.bf16.msra.mxu0 %v4568
      %4859 = vmatprep.subr.bf16.mxu0 0
      %4860 = vmatpush1.bf16.msra.mxu0 %v4569
      %4861 = vmatprep.subr.bf16.mxu0 0
      %4862 = vmatpush1.bf16.msra.mxu0 %v4570
      %4863 = vmatprep.subr.bf16.mxu0 0
      %4864 = vmatpush1.bf16.msra.mxu0 %v4571
      %4865 = vmatprep.subr.bf16.mxu0 0
      %4866 = vmatpush1.bf16.msra.mxu0 %v4572
      %4867 = vmatprep.subr.bf16.mxu0 0
      %4868 = vmatpush1.bf16.msra.mxu0 %v4573
      %4869 = vmatprep.subr.bf16.mxu0 0
      %4870 = vmatpush1.bf16.msra.mxu0 %v4574
      %4871 = vmatprep.subr.bf16.mxu0 0
      %4872 = vmatpush1.bf16.msra.mxu0 %v4575
      %4873 = vmatprep.mubr.bf16.mxu0 %v4003
      %4874 = vmatmul.mubr.bf16.gmra.mrb[0].mxu0 %v4002
      %v4875 = vpop.f32.mrb[0].mxu0
      %v4876 = vadd.f32 %v4835, %v4875
      %v4877 = vpop.f32.mrb[0].mxu0
      %v4878 = vpop.f32.mrb[0].mxu0
      %v4879 = vadd.f32 %v4838, %v4878
      %v4880 = vpop.f32.mrb[0].mxu0
      %4881 = vdwg.mxu0
      %4882 = vmatprep.subr.bf16.mxu0 0
      %4883 = vmatpush1.bf16.msra.mxu0 %v4576
      %4884 = vmatprep.subr.bf16.mxu0 0
      %4885 = vmatpush1.bf16.msra.mxu0 %v4577
      %4886 = vmatprep.subr.bf16.mxu0 0
      %4887 = vmatpush1.bf16.msra.mxu0 %v4578
      %4888 = vmatprep.subr.bf16.mxu0 0
      %4889 = vmatpush1.bf16.msra.mxu0 %v4579
      %4890 = vmatprep.subr.bf16.mxu0 0
      %4891 = vmatpush1.bf16.msra.mxu0 %v4580
      %4892 = vmatprep.subr.bf16.mxu0 0
      %4893 = vmatpush1.bf16.msra.mxu0 %v4581
      %4894 = vmatprep.subr.bf16.mxu0 0
      %4895 = vmatpush1.bf16.msra.mxu0 %v4582
      %4896 = vmatprep.subr.bf16.mxu0 0
      %4897 = vmatpush1.bf16.msra.mxu0 %v4583
      %4898 = vmatprep.subr.bf16.mxu0 0
      %4899 = vmatpush1.bf16.msra.mxu0 %v4584
      %4900 = vmatprep.subr.bf16.mxu0 0
      %4901 = vmatpush1.bf16.msra.mxu0 %v4585
      %4902 = vmatprep.subr.bf16.mxu0 0
      %4903 = vmatpush1.bf16.msra.mxu0 %v4586
      %4904 = vmatprep.subr.bf16.mxu0 0
      %4905 = vmatpush1.bf16.msra.mxu0 %v4587
      %4906 = vmatprep.subr.bf16.mxu0 0
      %4907 = vmatpush1.bf16.msra.mxu0 %v4588
      %4908 = vmatprep.subr.bf16.mxu0 0
      %4909 = vmatpush1.bf16.msra.mxu0 %v4589
      %4910 = vmatprep.subr.bf16.mxu0 0
      %4911 = vmatpush1.bf16.msra.mxu0 %v4590
      %4912 = vmatprep.subr.bf16.mxu0 0
      %4913 = vmatpush1.bf16.msra.mxu0 %v4591
      %4914 = vmatprep.mubr.bf16.mxu0 %v4005
      %4915 = vmatmul.mubr.bf16.gmra.mrb[0].mxu0 %v4004
      %v4916 = vpop.f32.mrb[0].mxu0
      %v4917 = vadd.f32 %v4876, %v4916
      %v4918 = vpop.f32.mrb[0].mxu0
      %v4919 = vpop.f32.mrb[0].mxu0
      %v4920 = vadd.f32 %v4879, %v4919
      %v4921 = vpop.f32.mrb[0].mxu0
      %4922 = vdwg.mxu0
      %4923 = vmatprep.subr.bf16.mxu0 0
      %4924 = vmatpush1.bf16.msra.mxu0 %v4592
      %4925 = vmatprep.subr.bf16.mxu0 0
      %4926 = vmatpush1.bf16.msra.mxu0 %v4593
      %4927 = vmatprep.subr.bf16.mxu0 0
      %4928 = vmatpush1.bf16.msra.mxu0 %v4594
      %4929 = vmatprep.subr.bf16.mxu0 0
      %4930 = vmatpush1.bf16.msra.mxu0 %v4595
      %4931 = vmatprep.subr.bf16.mxu0 0
      %4932 = vmatpush1.bf16.msra.mxu0 %v4596
      %4933 = vmatprep.subr.bf16.mxu0 0
      %4934 = vmatpush1.bf16.msra.mxu0 %v4597
      %4935 = vmatprep.subr.bf16.mxu0 0
      %4936 = vmatpush1.bf16.msra.mxu0 %v4598
      %4937 = vmatprep.subr.bf16.mxu0 0
      %4938 = vmatpush1.bf16.msra.mxu0 %v4599
      %4939 = vmatprep.subr.bf16.mxu0 0
      %4940 = vmatpush1.bf16.msra.mxu0 %v4600
      %4941 = vmatprep.subr.bf16.mxu0 0
      %4942 = vmatpush1.bf16.msra.mxu0 %v4601
      %4943 = vmatprep.subr.bf16.mxu0 0
      %4944 = vmatpush1.bf16.msra.mxu0 %v4602
      %4945 = vmatprep.subr.bf16.mxu0 0
      %4946 = vmatpush1.bf16.msra.mxu0 %v4603
      %4947 = vmatprep.subr.bf16.mxu0 0
      %4948 = vmatpush1.bf16.msra.mxu0 %v4604
      %4949 = vmatprep.subr.bf16.mxu0 0
      %4950 = vmatpush1.bf16.msra.mxu0 %v4605
      %4951 = vmatprep.subr.bf16.mxu0 0
      %4952 = vmatpush1.bf16.msra.mxu0 %v4606
      %4953 = vmatprep.subr.bf16.mxu0 0
      %4954 = vmatpush1.bf16.msra.mxu0 %v4607
      %4955 = vmatprep.mubr.bf16.mxu0 %v4007
      %4956 = vmatmul.mubr.bf16.gmra.mrb[0].mxu0 %v4006
      %v4957 = vpop.f32.mrb[0].mxu0
      %v4958 = vadd.f32 %v4917, %v4957
      %v4959 = vpop.f32.mrb[0].mxu0
      %v4960 = vpop.f32.mrb[0].mxu0
      %v4961 = vadd.f32 %v4920, %v4960
      %v4962 = vpop.f32.mrb[0].mxu0
      %4963 = vdwg.mxu0
      %4964 = vmatprep.subr.bf16.mxu0 0
      %4965 = vmatpush1.bf16.msra.mxu0 %v4608
      %4966 = vmatprep.subr.bf16.mxu0 0
      %4967 = vmatpush1.bf16.msra.mxu0 %v4609
      %4968 = vmatprep.subr.bf16.mxu0 0
      %4969 = vmatpush1.bf16.msra.mxu0 %v4610
      %4970 = vmatprep.subr.bf16.mxu0 0
      %4971 = vmatpush1.bf16.msra.mxu0 %v4611
      %4972 = vmatprep.subr.bf16.mxu0 0
      %4973 = vmatpush1.bf16.msra.mxu0 %v4612
      %4974 = vmatprep.subr.bf16.mxu0 0
      %4975 = vmatpush1.bf16.msra.mxu0 %v4613
      %4976 = vmatprep.subr.bf16.mxu0 0
      %4977 = vmatpush1.bf16.msra.mxu0 %v4614
      %4978 = vmatprep.subr.bf16.mxu0 0
      %4979 = vmatpush1.bf16.msra.mxu0 %v4615
      %4980 = vmatprep.subr.bf16.mxu0 0
      %4981 = vmatpush1.bf16.msra.mxu0 %v4616
      %4982 = vmatprep.subr.bf16.mxu0 0
      %4983 = vmatpush1.bf16.msra.mxu0 %v4617
      %4984 = vmatprep.subr.bf16.mxu0 0
      %4985 = vmatpush1.bf16.msra.mxu0 %v4618
      %4986 = vmatprep.subr.bf16.mxu0 0
      %4987 = vmatpush1.bf16.msra.mxu0 %v4619
      %4988 = vmatprep.subr.bf16.mxu0 0
      %4989 = vmatpush1.bf16.msra.mxu0 %v4620
      %4990 = vmatprep.subr.bf16.mxu0 0
      %4991 = vmatpush1.bf16.msra.mxu0 %v4621
      %4992 = vmatprep.subr.bf16.mxu0 0
      %4993 = vmatpush1.bf16.msra.mxu0 %v4622
      %4994 = vmatprep.subr.bf16.mxu0 0
      %4995 = vmatpush1.bf16.msra.mxu0 %v4623
      %4996 = vmatprep.mubr.bf16.mxu0 %v4009
      %4997 = vmatmul.mubr.bf16.gmra.mrb[0].mxu0 %v4008
      %v4998 = vpop.f32.mrb[0].mxu0
      %v4999 = vadd.f32 %v4958, %v4998
      %v5000 = vpop.f32.mrb[0].mxu0
      %v5001 = vpop.f32.mrb[0].mxu0
      %v5002 = vadd.f32 %v4961, %v5001
      %v5003 = vpop.f32.mrb[0].mxu0
      %5004 = vdwg.mxu0
      %5005 = vmatprep.subr.bf16.mxu0 0
      %5006 = vmatpush1.bf16.msra.mxu0 %v4624
      %5007 = vmatprep.subr.bf16.mxu0 0
      %5008 = vmatpush1.bf16.msra.mxu0 %v4625
      %5009 = vmatprep.subr.bf16.mxu0 0
      %5010 = vmatpush1.bf16.msra.mxu0 %v4626
      %5011 = vmatprep.subr.bf16.mxu0 0
      %5012 = vmatpush1.bf16.msra.mxu0 %v4627
      %5013 = vmatprep.subr.bf16.mxu0 0
      %5014 = vmatpush1.bf16.msra.mxu0 %v4628
      %5015 = vmatprep.subr.bf16.mxu0 0
      %5016 = vmatpush1.bf16.msra.mxu0 %v4629
      %5017 = vmatprep.subr.bf16.mxu0 0
      %5018 = vmatpush1.bf16.msra.mxu0 %v4630
      %5019 = vmatprep.subr.bf16.mxu0 0
      %5020 = vmatpush1.bf16.msra.mxu0 %v4631
      %5021 = vmatprep.subr.bf16.mxu0 0
      %5022 = vmatpush1.bf16.msra.mxu0 %v4632
      %5023 = vmatprep.subr.bf16.mxu0 0
      %5024 = vmatpush1.bf16.msra.mxu0 %v4633
      %5025 = vmatprep.subr.bf16.mxu0 0
      %5026 = vmatpush1.bf16.msra.mxu0 %v4634
      %5027 = vmatprep.subr.bf16.mxu0 0
      %5028 = vmatpush1.bf16.msra.mxu0 %v4635
      %5029 = vmatprep.subr.bf16.mxu0 0
      %5030 = vmatpush1.bf16.msra.mxu0 %v4636
      %5031 = vmatprep.subr.bf16.mxu0 0
      %5032 = vmatpush1.bf16.msra.mxu0 %v4637
      %5033 = vmatprep.subr.bf16.mxu0 0
      %5034 = vmatpush1.bf16.msra.mxu0 %v4638
      %5035 = vmatprep.subr.bf16.mxu0 0
      %5036 = vmatpush1.bf16.msra.mxu0 %v4639
      %5037 = vmatprep.mubr.bf16.mxu0 %v4011
      %5038 = vmatmul.mubr.bf16.gmra.mrb[0].mxu0 %v4010
      %v5039 = vpop.f32.mrb[0].mxu0
      %v5040 = vadd.f32 %v4999, %v5039
      %v5041 = vpop.f32.mrb[0].mxu0
      %v5042 = vpop.f32.mrb[0].mxu0
      %v5043 = vadd.f32 %v5002, %v5042
      %v5044 = vpop.f32.mrb[0].mxu0
      %5045 = vdwg.mxu0
      %5046 = vmatprep.subr.bf16.mxu0 0
      %5047 = vmatpush1.bf16.msra.mxu0 %v4640
      %5048 = vmatprep.subr.bf16.mxu0 0
      %5049 = vmatpush1.bf16.msra.mxu0 %v4641
      %5050 = vmatprep.subr.bf16.mxu0 0
      %5051 = vmatpush1.bf16.msra.mxu0 %v4642
      %5052 = vmatprep.subr.bf16.mxu0 0
      %5053 = vmatpush1.bf16.msra.mxu0 %v4643
      %5054 = vmatprep.subr.bf16.mxu0 0
      %5055 = vmatpush1.bf16.msra.mxu0 %v4644
      %5056 = vmatprep.subr.bf16.mxu0 0
      %5057 = vmatpush1.bf16.msra.mxu0 %v4645
      %5058 = vmatprep.subr.bf16.mxu0 0
      %5059 = vmatpush1.bf16.msra.mxu0 %v4646
      %5060 = vmatprep.subr.bf16.mxu0 0
      %5061 = vmatpush1.bf16.msra.mxu0 %v4647
      %5062 = vmatprep.subr.bf16.mxu0 0
      %5063 = vmatpush1.bf16.msra.mxu0 %v4648
      %5064 = vmatprep.subr.bf16.mxu0 0
      %5065 = vmatpush1.bf16.msra.mxu0 %v4649
      %5066 = vmatprep.subr.bf16.mxu0 0
      %5067 = vmatpush1.bf16.msra.mxu0 %v4650
      %5068 = vmatprep.subr.bf16.mxu0 0
      %5069 = vmatpush1.bf16.msra.mxu0 %v4651
      %5070 = vmatprep.subr.bf16.mxu0 0
      %5071 = vmatpush1.bf16.msra.mxu0 %v4652
      %5072 = vmatprep.subr.bf16.mxu0 0
      %5073 = vmatpush1.bf16.msra.mxu0 %v4653
      %5074 = vmatprep.subr.bf16.mxu0 0
      %5075 = vmatpush1.bf16.msra.mxu0 %v4654
      %5076 = vmatprep.subr.bf16.mxu0 0
      %5077 = vmatpush1.bf16.msra.mxu0 %v4655
      %5078 = vmatprep.mubr.bf16.mxu0 %v4013
      %5079 = vmatmul.mubr.bf16.gmra.mrb[0].mxu0 %v4012
      %v5080 = vpop.f32.mrb[0].mxu0
      %v5081 = vadd.f32 %v5040, %v5080
      %v5082 = vpop.f32.mrb[0].mxu0
      %v5083 = vpop.f32.mrb[0].mxu0
      %v5084 = vadd.f32 %v5043, %v5083
      %v5085 = vpop.f32.mrb[0].mxu0
      %5086 = vdwg.mxu0
      %5087 = vmatprep.subr.bf16.mxu0 0
      %5088 = vmatpush1.bf16.msra.mxu0 %v4656
      %5089 = vmatprep.subr.bf16.mxu0 0
      %5090 = vmatpush1.bf16.msra.mxu0 %v4657
      %5091 = vmatprep.subr.bf16.mxu0 0
      %5092 = vmatpush1.bf16.msra.mxu0 %v4658
      %5093 = vmatprep.subr.bf16.mxu0 0
      %5094 = vmatpush1.bf16.msra.mxu0 %v4659
      %5095 = vmatprep.subr.bf16.mxu0 0
      %5096 = vmatpush1.bf16.msra.mxu0 %v4660
      %5097 = vmatprep.subr.bf16.mxu0 0
      %5098 = vmatpush1.bf16.msra.mxu0 %v4661
      %5099 = vmatprep.subr.bf16.mxu0 0
      %5100 = vmatpush1.bf16.msra.mxu0 %v4662
      %5101 = vmatprep.subr.bf16.mxu0 0
      %5102 = vmatpush1.bf16.msra.mxu0 %v4663
      %5103 = vmatprep.subr.bf16.mxu0 0
      %5104 = vmatpush1.bf16.msra.mxu0 %v4664
      %5105 = vmatprep.subr.bf16.mxu0 0
      %5106 = vmatpush1.bf16.msra.mxu0 %v4665
      %5107 = vmatprep.subr.bf16.mxu0 0
      %5108 = vmatpush1.bf16.msra.mxu0 %v4666
      %5109 = vmatprep.subr.bf16.mxu0 0
      %5110 = vmatpush1.bf16.msra.mxu0 %v4667
      %5111 = vmatprep.subr.bf16.mxu0 0
      %5112 = vmatpush1.bf16.msra.mxu0 %v4668
      %5113 = vmatprep.subr.bf16.mxu0 0
      %5114 = vmatpush1.bf16.msra.mxu0 %v4669
      %5115 = vmatprep.subr.bf16.mxu0 0
      %5116 = vmatpush1.bf16.msra.mxu0 %v4670
      %5117 = vmatprep.subr.bf16.mxu0 0
      %5118 = vmatpush1.bf16.msra.mxu0 %v4671
      %5119 = vmatprep.mubr.bf16.mxu0 %v4015
      %5120 = vmatmul.mubr.bf16.gmra.mrb[0].mxu0 %v4014
      %v5121 = vpop.f32.mrb[0].mxu0
      %v5122 = vadd.f32 %v5081, %v5121
      %v5123 = vpop.f32.mrb[0].mxu0
      %v5124 = vpop.f32.mrb[0].mxu0
      %v5125 = vadd.f32 %v5084, %v5124
      %v5126 = vpop.f32.mrb[0].mxu0
      %5127 = vdwg.mxu0
      %5128 = vst [vmem:[%s175] sm:$0xff] %v5122
      %5129 = vst [vmem:[%s175 + $0x8] sm:$0xff] %v5125
      %s5130 = smul.u32 2, %s14
      %p5131 = scmp.lt.s32.totalorder %s5130, 3
      %s5132 = scalar_select %p5131, %s5130, 3
      %s5133 = smul.addr %s5132, 8
      %s5134 = scalar_lea.vmem %s3, %s5133
      // Predicated region
      $region33: #{resnet101_head.1} parent=31 // pred_check
        %p5135 = pneg %p100
      $region34: #{resnet101_head.1} parent=31 // pred_check_branch
        %5137 = sbr.rel (%p5135) target = $region36
      $region35: #{resnet101_head.1} parent=31 // pred_region
        %s5138 = smul.u32 2, %s14
      $region36: #{resnet101_head.1} parent=31 // pred_fallthru
        _
    $region32: #{resnet101_head.1} parent=5 // pred_fallthru
      _
    %p5139 = scmp.le.s32.totalorder 2, %s9
    // Predicated region
    $region37: #{resnet101_head.1} parent=5 // pred_check
      %p5140 = pneg %p5139
    $region38: #{resnet101_head.1} parent=5 // pred_check_branch
      %5142 = sbr.rel (%p5140) target = $region40
    $region39: #{resnet101_head.1} parent=5 // pred_region
      %s5143 = ssub.s32 %s9, 2
      // Predicated region
      $region41: #{resnet101_head.1} parent=39 // pred_check
        %p5144 = pneg %p106
      $region42: #{resnet101_head.1} parent=39 // pred_check_branch
        %5146 = sbr.rel (%p5144) target = $region44
      $region43: #{resnet101_head.1} parent=39 // pred_region
        %s5147 = smul.u32 2, %s15
        %p5148 = scmp.lt.s32.totalorder %s5147, 3
        %s5149 = scalar_select %p5148, %s5147, 3
        %s5150 = smul.addr %s5149, 8
        %s5151 = scalar_lea.vmem %s3, %s5150
      $region44: #{resnet101_head.1} parent=39 // pred_fallthru
        _
    $region40: #{resnet101_head.1} parent=5 // pred_fallthru
      _
  $region6: #{resnet101_head.1} parent=0 // loop_footer
    %s13 = sadd.s32 1, %s9
  $region7: #{resnet101_head.1} parent=0 // loop_footer_branch
    %8 = sbr.rel target = $region3
  $region8: #{resnet101_head.1} parent=0 // loop_exit
    _

</llo_original>
